<compile_context>
chip_gen: v7x
topology: tpu7x:2x2x1
jax: 0.10.0
libtpu: 0.0.40
codegen_flags: <defaults>
</compile_context>

<pallas_src>
import functools

import jax
import jax.numpy as jnp
from jax.experimental import pallas as pl
from jax.experimental.pallas import tpu as pltpu


def _round_up(x, m):
    return ((x + m - 1) // m) * m


# --------------------------------------------------------------------------- #
# In-kernel helpers
# --------------------------------------------------------------------------- #
def _im2col_conv_bias(xpad, w_ref, b_ref, H, W, CP, d):
    """3x3 (dilation d) conv as a single im2col matmul + bias add.

    xpad : (H + 2d, W + 2d, CP) value (bf16) -- input with a d-wide zero halo.
    w_ref: (9*CP, CP) ref (bf16)             -- weight with BN scale folded in,
                                                rows ordered (kh, kw, cin).
    b_ref: (1, CP) ref (f32)                 -- folded BN bias.
    returns (H*W, CP) f32.
    """
    taps = [xpad[kh * d:kh * d + H, kw * d:kw * d + W, :]
            for kh in range(3) for kw in range(3)]
    patches = jnp.concatenate(taps, axis=-1).reshape(H * W, 9 * CP)
    acc = jnp.dot(patches, w_ref[...], preferred_element_type=jnp.float32)
    return acc + b_ref[...]


def _k2_kernel(xp_ref, w_ref, b_ref, o_ref, *, Hr, Wr, CP, d):
    # xp_ref: (Hr+2d, Wr+2d, CP) pooled input (bf16);  o_ref: (Hr, Wr, CP) f32
    y = _im2col_conv_bias(xp_ref[...], w_ref, b_ref, Hr, Wr, CP, d)
    o_ref[...] = y.reshape(Hr, Wr, CP)


def _gate_k3_k4_kernel(x_ref, k2_ref, w3_ref, b3_ref, w4_ref, b4_ref,
                       o_ref, mid_ref, *, H, W, CP, d, r):
    # x_ref  : (H+2d, W+2d, CP) bf16 -- identity / k3 input with zero halo
    # k2_ref : (H//r, W, CP) f32     -- k2 output, already upsampled along W
    # o_ref  : (H, W, CP) f32
    # mid_ref: (H+2d, W+2d, CP) bf16 VMEM scratch (zero-halo buffer for k4)
    Hr = H // r
    xpad = x_ref[...]

    # ---- k3: conv3x3 + folded BN (one MXU matmul) ---------------------------
    y3 = _im2col_conv_bias(xpad, w3_ref, b3_ref, H, W, CP, d)       # (H*W, CP)

    # ---- calibration gate: sigmoid(x + nearest_upsample(k2)) ----------------
    # W-axis repeat of k2 was done in the wrapper (tiny tensor); the H-axis
    # repeat is a broadcast over an outer axis here (no lane/sublane relayout).
    identity = xpad[d:d + H, d:d + W, :].astype(jnp.float32)        # (H, W, CP)
    gate = jax.nn.sigmoid(identity.reshape(Hr, r, W, CP)
                          + k2_ref[...][:, None, :, :])             # (Hr,r,W,CP)
    mid = (y3.reshape(Hr, r, W, CP) * gate).reshape(H, W, CP)

    # ---- k4: conv3x3 + folded BN on zero-padded mid (never leaves VMEM) -----
    mid_ref[...] = jnp.zeros_like(mid_ref)
    mid_ref[d:d + H, d:d + W, :] = mid.astype(mid_ref.dtype)
    y4 = _im2col_conv_bias(mid_ref[...], w4_ref, b4_ref, H, W, CP, d)
    o_ref[...] = y4.reshape(H, W, CP)


# --------------------------------------------------------------------------- #
# pallas_call wrappers
# --------------------------------------------------------------------------- #
def _k2_pallas(xp_pad, w2, b2, *, Hr, Wr, CP, d):
    N = xp_pad.shape[0]
    kernel = functools.partial(_k2_kernel, Hr=Hr, Wr=Wr, CP=CP, d=d)
    return pl.pallas_call(
        kernel,
        grid=(N,),
        in_specs=[
            pl.BlockSpec((None, Hr + 2 * d, Wr + 2 * d, CP),
                         lambda n: (n, 0, 0, 0)),
            pl.BlockSpec((9 * CP, CP), lambda n: (0, 0)),
            pl.BlockSpec((1, CP), lambda n: (0, 0)),
        ],
        out_specs=pl.BlockSpec((None, Hr, Wr, CP), lambda n: (n, 0, 0, 0)),
        out_shape=jax.ShapeDtypeStruct((N, Hr, Wr, CP), jnp.float32),
        compiler_params=pltpu.CompilerParams(dimension_semantics=("parallel",)),
    )(xp_pad, w2, b2)


def _gate_k3_k4_pallas(x_pad, k2_up_w, w3, b3, w4, b4, *, H, W, CP, d, r):
    # TODO(synk): for large images (e.g. 256x256, C>=256) the per-image block
    # exceeds v7x's 64 MiB VMEM; add an H-tile grid axis with a 2*dilation-row
    # halo (pl.ANY input + manual make_async_copy) and mark it "parallel".
    N = x_pad.shape[0]
    Hr = H // r
    kernel = functools.partial(_gate_k3_k4_kernel, H=H, W=W, CP=CP, d=d, r=r)
    return pl.pallas_call(
        kernel,
        grid=(N,),
        in_specs=[
            pl.BlockSpec((None, H + 2 * d, W + 2 * d, CP),
                         lambda n: (n, 0, 0, 0)),
            pl.BlockSpec((None, Hr, W, CP), lambda n: (n, 0, 0, 0)),
            pl.BlockSpec((9 * CP, CP), lambda n: (0, 0)),
            pl.BlockSpec((1, CP), lambda n: (0, 0)),
            pl.BlockSpec((9 * CP, CP), lambda n: (0, 0)),
            pl.BlockSpec((1, CP), lambda n: (0, 0)),
        ],
        out_specs=pl.BlockSpec((None, H, W, CP), lambda n: (n, 0, 0, 0)),
        out_shape=jax.ShapeDtypeStruct((N, H, W, CP), jnp.float32),
        scratch_shapes=[pltpu.VMEM((H + 2 * d, W + 2 * d, CP), jnp.bfloat16)],
        compiler_params=pltpu.CompilerParams(dimension_semantics=("parallel",)),
    )(x_pad, k2_up_w, w3, b3, w4, b4)


# --------------------------------------------------------------------------- #
# Host-side parameter prep + forward
# --------------------------------------------------------------------------- #
def _fold_bn_into_weight(w, scale, bias, CP):
    """Fold eval-mode BN into the conv weight; pad channels to CP; cast bf16.

    w: (3, 3, Cin, Cout); scale/bias: (Cout,).
    Returns (9*CP, CP) bf16 weight and (1, CP) f32 bias.
    """
    c_in, c_out = w.shape[2], w.shape[3]
    wf = w.astype(jnp.float32) * scale.astype(jnp.float32)[None, None, None, :]
    wf = jnp.pad(wf, ((0, 0), (0, 0), (0, CP - c_in), (0, CP - c_out)))
    wf = wf.reshape(9 * CP, CP).astype(jnp.bfloat16)
    bf = jnp.pad(bias.astype(jnp.float32), (0, CP - c_out)).reshape(1, CP)
    return wf, bf


def scconv_forward(x_nchw, params, *, pooling_r, dilation):
    """SCConv.forward. x_nchw: (N, C, H, W) float32 -> (N, C, H, W) float32.

    Assumes stride == 1, padding == dilation and H, W divisible by pooling_r
    (the configuration used in the sep_aspp decode head).
    """
    N, C, H, W = x_nchw.shape
    r, d = pooling_r, dilation
    # TODO(synk): H/W not divisible by pooling_r (AvgPool floor + interpolate
    # size mismatch) and k4 stride > 1 are not implemented.
    assert H % r == 0 and W % r == 0, "H and W must be divisible by pooling_r"
    CP = max(128, _round_up(C, 128))   # lane-dense / MXU-friendly channel count

    x = jnp.transpose(x_nchw, (0, 2, 3, 1)).astype(jnp.float32)       # NHWC

    # Folded-BN, channel-padded bf16 weights (trace-time, tiny).
    w2, b2 = _fold_bn_into_weight(params["w2"], params["s2"], params["b2"], CP)
    w3, b3 = _fold_bn_into_weight(params["w3"], params["s3"], params["b3"], CP)
    w4, b4 = _fold_bn_into_weight(params["w4"], params["s4"], params["b4"], CP)

    # Pad ONCE: d-wide spatial halo + channel pad to CP, cast to bf16.
    x_pad = jnp.pad(x, ((0, 0), (d, d), (d, d), (0, CP - C))).astype(jnp.bfloat16)

    # ---- k2 branch at pooled resolution (glue avg-pool, Pallas conv) --------
    Hr, Wr = H // r, W // r
    xp = x.reshape(N, Hr, r, Wr, r, C).mean(axis=(2, 4))              # avg pool
    xp_pad = jnp.pad(xp, ((0, 0), (d, d), (d, d),
                          (0, CP - C))).astype(jnp.bfloat16)
    k2 = _k2_pallas(xp_pad, w2, b2, Hr=Hr, Wr=Wr, CP=CP, d=d)         # (N,Hr,Wr,CP)
    # Nearest upsample along W only (r^2 smaller than a full-size upsample);
    # the H-axis repeat happens inside the fused kernel.
    k2_up_w = jnp.repeat(k2, r, axis=2)                               # (N,Hr,W,CP)

    # ---- fused sigmoid-gate * k3, then k4 (mid never touches HBM) -----------
    out = _gate_k3_k4_pallas(x_pad, k2_up_w, w3, b3, w4, b4,
                             H=H, W=W, CP=CP, d=d, r=r)               # (N,H,W,CP)

    return jnp.transpose(out[..., :C], (0, 3, 1, 2))                  # NCHW


# --------------------------------------------------------------------------- #
# Pure-JAX reference (f32) for a correctness check
# --------------------------------------------------------------------------- #
def _ref_conv_bn(x, w, scale, bias, d):
    y = jax.lax.conv_general_dilated(
        x, w, window_strides=(1, 1), padding=((d, d), (d, d)),
        rhs_dilation=(d, d), dimension_numbers=("NHWC", "HWIO", "NHWC"))
    return y * scale + bias


def _ref_scconv(x_nchw, params, *, pooling_r, dilation):
    x = jnp.transpose(x_nchw, (0, 2, 3, 1)).astype(jnp.float32)
    N, H, W, C = x.shape
    r, d = pooling_r, dilation
    xp = x.reshape(N, H // r, r, W // r, r, C).mean(axis=(2, 4))
    k2 = _ref_conv_bn(xp, params["w2"], params["s2"], params["b2"], d)
    up = jnp.repeat(jnp.repeat(k2, r, axis=1), r, axis=2)
    gate = jax.nn.sigmoid(x + up)
    mid = _ref_conv_bn(x, params["w3"], params["s3"], params["b3"], d) * gate
    out = _ref_conv_bn(mid, params["w4"], params["s4"], params["b4"], d)
    return jnp.transpose(out, (0, 3, 1, 2))


def _make_bn_affine(keys, c, eps=1e-5):
    """Deterministic eval-mode BatchNorm folded into per-channel scale/bias."""
    kg, kb, km, kv = keys
    gamma = 1.0 + 0.1 * jax.random.normal(kg, (c,), jnp.float32)
    beta = 0.1 * jax.random.normal(kb, (c,), jnp.float32)
    mean = 0.1 * jax.random.normal(km, (c,), jnp.float32)
    var = 1.0 + 0.1 * jnp.abs(jax.random.normal(kv, (c,), jnp.float32))
    scale = gamma / jnp.sqrt(var + eps)
    bias = beta - mean * scale
    return scale, bias


if __name__ == "__main__":
    # SCConv(inplanes=C, planes=C, stride=1, padding=1, dilation=1, groups=1,
    #        pooling_r=4, norm_layer=BatchNorm2d)
    N, C, H, W = 2, 8, 16, 16
    pooling_r = 4
    dilation = 1

    key = jax.random.PRNGKey(0)
    ks = jax.random.split(key, 16)
    x = jax.random.normal(ks[0], (N, C, H, W), jnp.float32)

    # Conv weights stored as (3, 3, Cin, Cout) for the NHWC kernels.
    w2 = 0.1 * jax.random.normal(ks[1], (3, 3, C, C), jnp.float32)
    w3 = 0.1 * jax.random.normal(ks[2], (3, 3, C, C), jnp.float32)
    w4 = 0.1 * jax.random.normal(ks[3], (3, 3, C, C), jnp.float32)
    s2, b2 = _make_bn_affine(ks[4:8], C)
    s3, b3 = _make_bn_affine(ks[8:12], C)
    s4, b4 = _make_bn_affine(ks[12:16], C)

    params = {"w2": w2, "s2": s2, "b2": b2,
              "w3": w3, "s3": s3, "b3": b3,
              "w4": w4, "s4": s4, "b4": b4}

    fwd = jax.jit(functools.partial(scconv_forward,
                                    pooling_r=pooling_r, dilation=dilation))
    out = fwd(x, params)
    jax.block_until_ready(out)
    assert out.shape == (N, C, H, W)

    # Correctness check vs. pure-JAX f32 reference (tolerance covers the bf16
    # activation/weight cast used inside the Pallas kernels).
    ref = _ref_scconv(x, params, pooling_r=pooling_r, dilation=dilation)
    max_err = float(jnp.max(jnp.abs(out - ref)))
    assert max_err < 5e-2, f"max abs error {max_err:.4f} vs reference"
    print("KERNEL_OK")
</pallas_src>

<mosaic_0001>
module attributes {stable_mosaic.version = 11 : i64} {
  func.func @_k2_kernel(%arg0: i32, %arg1: memref<1x6x6x128xbf16, #tpu.memory_space<vmem>>, %arg2: memref<1152x128xbf16, #tpu.memory_space<vmem>>, %arg3: memref<1x128xf32, #tpu.memory_space<vmem>>, %arg4: memref<1x4x4x128xf32, #tpu.memory_space<vmem>>) attributes {dimension_semantics = [#tpu.dimension_semantics<parallel>], iteration_bounds = array<i64: 2>, scalar_prefetch = 0 : i64, scratch_operands = 0 : i64, tpu.core_type = #tpu.core_type<tc>, window_params = [{transform_indices = @transform_0, window_bounds = array<i64: 1, 6, 6, 128>}, {pipeline_mode = #tpu.pipeline_mode<synchronous>, transform_indices = @transform_1, window_bounds = array<i64: 1152, 128>}, {pipeline_mode = #tpu.pipeline_mode<synchronous>, transform_indices = @transform_2, window_bounds = array<i64: 1, 128>}, {transform_indices = @transform_3, window_bounds = array<i64: 1, 4, 4, 128>}]} {
    %c0 = arith.constant 0 : index
    %c0_0 = arith.constant 0 : index
    %c0_1 = arith.constant 0 : index
    %c0_2 = arith.constant 0 : index
    %0 = vector.load %arg1[%c0, %c0_0, %c0_1, %c0_2] : memref<1x6x6x128xbf16, #tpu.memory_space<vmem>>, vector<1x6x6x128xbf16>
    %1 = vector.shape_cast %0 : vector<1x6x6x128xbf16> to vector<6x6x128xbf16>
    %2 = vector.extract_strided_slice %1 {offsets = [0, 0, 0], sizes = [4, 4, 128], strides = [1, 1, 1]} : vector<6x6x128xbf16> to vector<4x4x128xbf16>
    %3 = vector.extract_strided_slice %1 {offsets = [0, 1, 0], sizes = [4, 4, 128], strides = [1, 1, 1]} : vector<6x6x128xbf16> to vector<4x4x128xbf16>
    %4 = vector.extract_strided_slice %1 {offsets = [0, 2, 0], sizes = [4, 4, 128], strides = [1, 1, 1]} : vector<6x6x128xbf16> to vector<4x4x128xbf16>
    %5 = vector.extract_strided_slice %1 {offsets = [1, 0, 0], sizes = [4, 4, 128], strides = [1, 1, 1]} : vector<6x6x128xbf16> to vector<4x4x128xbf16>
    %6 = vector.extract_strided_slice %1 {offsets = [1, 1, 0], sizes = [4, 4, 128], strides = [1, 1, 1]} : vector<6x6x128xbf16> to vector<4x4x128xbf16>
    %7 = vector.extract_strided_slice %1 {offsets = [1, 2, 0], sizes = [4, 4, 128], strides = [1, 1, 1]} : vector<6x6x128xbf16> to vector<4x4x128xbf16>
    %8 = vector.extract_strided_slice %1 {offsets = [2, 0, 0], sizes = [4, 4, 128], strides = [1, 1, 1]} : vector<6x6x128xbf16> to vector<4x4x128xbf16>
    %9 = vector.extract_strided_slice %1 {offsets = [2, 1, 0], sizes = [4, 4, 128], strides = [1, 1, 1]} : vector<6x6x128xbf16> to vector<4x4x128xbf16>
    %10 = vector.extract_strided_slice %1 {offsets = [2, 2, 0], sizes = [4, 4, 128], strides = [1, 1, 1]} : vector<6x6x128xbf16> to vector<4x4x128xbf16>
    %11 = tpu.concatenate %2, %3, %4, %5, %6, %7, %8, %9, %10 in 2 : vector<4x4x128xbf16>, vector<4x4x128xbf16>, vector<4x4x128xbf16>, vector<4x4x128xbf16>, vector<4x4x128xbf16>, vector<4x4x128xbf16>, vector<4x4x128xbf16>, vector<4x4x128xbf16>, vector<4x4x128xbf16> -> vector<4x4x1152xbf16>
    %12 = vector.shape_cast %11 : vector<4x4x1152xbf16> to vector<16x1152xbf16>
    %c0_3 = arith.constant 0 : index
    %c0_4 = arith.constant 0 : index
    %13 = vector.load %arg2[%c0_3, %c0_4] : memref<1152x128xbf16, #tpu.memory_space<vmem>>, vector<1152x128xbf16>
    %cst = arith.constant dense<0.000000e+00> : vector<16x128xf32>
    %14 = tpu.matmul %12, %13, %cst {dimension_numbers = #tpu.dot_dimension_numbers<[1], [0], [0], [1], [0, 0, 1, 1], [], []>} : vector<16x1152xbf16>, vector<1152x128xbf16>, vector<16x128xf32> -> vector<16x128xf32>
    %c0_5 = arith.constant 0 : index
    %c0_6 = arith.constant 0 : index
    %15 = vector.load %arg3[%c0_5, %c0_6] : memref<1x128xf32, #tpu.memory_space<vmem>>, vector<1x128xf32>
    %16 = vector.broadcast %15 : vector<1x128xf32> to vector<16x128xf32>
    %17 = arith.addf %14, %16 : vector<16x128xf32>
    %18 = vector.shape_cast %17 : vector<16x128xf32> to vector<4x4x128xf32>
    %c0_7 = arith.constant 0 : index
    %c0_8 = arith.constant 0 : index
    %c0_9 = arith.constant 0 : index
    %c0_10 = arith.constant 0 : index
    %19 = vector.load %arg4[%c0_7, %c0_8, %c0_9, %c0_10] : memref<1x4x4x128xf32, #tpu.memory_space<vmem>>, vector<1x4x4x128xf32>
    %20 = vector.shape_cast %19 : vector<1x4x4x128xf32> to vector<4x4x128xf32>
    %21 = vector.shape_cast %18 : vector<4x4x128xf32> to vector<1x4x4x128xf32>
    tpu.vector_store %arg4[%c0_7, %c0_8, %c0_9, %c0_10], %21 {strides = array<i32>} : memref<1x4x4x128xf32, #tpu.memory_space<vmem>>, vector<1x4x4x128xf32>,
    return
  }
  func.func @transform_0(%arg0: i32) -> (i32, i32, i32, i32) {
    %c0_i32 = arith.constant 0 : i32
    %c0_i32_0 = arith.constant 0 : i32
    %c0_i32_1 = arith.constant 0 : i32
    %c0_i32_2 = arith.constant 0 : i32
    return %arg0, %c0_i32, %c0_i32_0, %c0_i32_1 : i32, i32, i32, i32
  }
  func.func @transform_1(%arg0: i32) -> (i32, i32) {
    %c0_i32 = arith.constant 0 : i32
    %c0_i32_0 = arith.constant 0 : i32
    %c0_i32_1 = arith.constant 0 : i32
    return %c0_i32, %c0_i32_0 : i32, i32
  }
  func.func @transform_2(%arg0: i32) -> (i32, i32) {
    %c0_i32 = arith.constant 0 : i32
    %c0_i32_0 = arith.constant 0 : i32
    %c0_i32_1 = arith.constant 0 : i32
    return %c0_i32, %c0_i32_0 : i32, i32
  }
  func.func @transform_3(%arg0: i32) -> (i32, i32, i32, i32) {
    %c0_i32 = arith.constant 0 : i32
    %c0_i32_0 = arith.constant 0 : i32
    %c0_i32_1 = arith.constant 0 : i32
    %c0_i32_2 = arith.constant 0 : i32
    return %arg0, %c0_i32, %c0_i32_0, %c0_i32_1 : i32, i32, i32, i32
  }
}

module attributes {stable_mosaic.version = 11 : i64} {
  func.func @_gate_k3_k4_kernel(%arg0: i32, %arg1: memref<1x18x18x128xbf16, #tpu.memory_space<vmem>>, %arg2: memref<1x4x16x128xf32, #tpu.memory_space<vmem>>, %arg3: memref<1152x128xbf16, #tpu.memory_space<vmem>>, %arg4: memref<1x128xf32, #tpu.memory_space<vmem>>, %arg5: memref<1152x128xbf16, #tpu.memory_space<vmem>>, %arg6: memref<1x128xf32, #tpu.memory_space<vmem>>, %arg7: memref<1x16x16x128xf32, #tpu.memory_space<vmem>>, %arg8: memref<18x18x128xbf16, #tpu.memory_space<vmem>>) attributes {dimension_semantics = [#tpu.dimension_semantics<parallel>], iteration_bounds = array<i64: 2>, scalar_prefetch = 0 : i64, scratch_operands = 1 : i64, tpu.core_type = #tpu.core_type<tc>, window_params = [{transform_indices = @transform_0, window_bounds = array<i64: 1, 18, 18, 128>}, {transform_indices = @transform_1, window_bounds = array<i64: 1, 4, 16, 128>}, {pipeline_mode = #tpu.pipeline_mode<synchronous>, transform_indices = @transform_2, window_bounds = array<i64: 1152, 128>}, {pipeline_mode = #tpu.pipeline_mode<synchronous>, transform_indices = @transform_3, window_bounds = array<i64: 1, 128>}, {pipeline_mode = #tpu.pipeline_mode<synchronous>, transform_indices = @transform_4, window_bounds = array<i64: 1152, 128>}, {pipeline_mode = #tpu.pipeline_mode<synchronous>, transform_indices = @transform_5, window_bounds = array<i64: 1, 128>}, {transform_indices = @transform_6, window_bounds = array<i64: 1, 16, 16, 128>}]} {
    %c0 = arith.constant 0 : index
    %c0_0 = arith.constant 0 : index
    %c0_1 = arith.constant 0 : index
    %c0_2 = arith.constant 0 : index
    %0 = vector.load %arg1[%c0, %c0_0, %c0_1, %c0_2] : memref<1x18x18x128xbf16, #tpu.memory_space<vmem>>, vector<1x18x18x128xbf16>
    %1 = vector.shape_cast %0 : vector<1x18x18x128xbf16> to vector<18x18x128xbf16>
    %2 = vector.extract_strided_slice %1 {offsets = [0, 0, 0], sizes = [16, 16, 128], strides = [1, 1, 1]} : vector<18x18x128xbf16> to vector<16x16x128xbf16>
    %3 = vector.extract_strided_slice %1 {offsets = [0, 1, 0], sizes = [16, 16, 128], strides = [1, 1, 1]} : vector<18x18x128xbf16> to vector<16x16x128xbf16>
    %4 = vector.extract_strided_slice %1 {offsets = [0, 2, 0], sizes = [16, 16, 128], strides = [1, 1, 1]} : vector<18x18x128xbf16> to vector<16x16x128xbf16>
    %5 = vector.extract_strided_slice %1 {offsets = [1, 0, 0], sizes = [16, 16, 128], strides = [1, 1, 1]} : vector<18x18x128xbf16> to vector<16x16x128xbf16>
    %6 = vector.extract_strided_slice %1 {offsets = [1, 1, 0], sizes = [16, 16, 128], strides = [1, 1, 1]} : vector<18x18x128xbf16> to vector<16x16x128xbf16>
    %7 = vector.extract_strided_slice %1 {offsets = [1, 2, 0], sizes = [16, 16, 128], strides = [1, 1, 1]} : vector<18x18x128xbf16> to vector<16x16x128xbf16>
    %8 = vector.extract_strided_slice %1 {offsets = [2, 0, 0], sizes = [16, 16, 128], strides = [1, 1, 1]} : vector<18x18x128xbf16> to vector<16x16x128xbf16>
    %9 = vector.extract_strided_slice %1 {offsets = [2, 1, 0], sizes = [16, 16, 128], strides = [1, 1, 1]} : vector<18x18x128xbf16> to vector<16x16x128xbf16>
    %10 = vector.extract_strided_slice %1 {offsets = [2, 2, 0], sizes = [16, 16, 128], strides = [1, 1, 1]} : vector<18x18x128xbf16> to vector<16x16x128xbf16>
    %11 = tpu.concatenate %2, %3, %4, %5, %6, %7, %8, %9, %10 in 2 : vector<16x16x128xbf16>, vector<16x16x128xbf16>, vector<16x16x128xbf16>, vector<16x16x128xbf16>, vector<16x16x128xbf16>, vector<16x16x128xbf16>, vector<16x16x128xbf16>, vector<16x16x128xbf16>, vector<16x16x128xbf16> -> vector<16x16x1152xbf16>
    %12 = vector.shape_cast %11 : vector<16x16x1152xbf16> to vector<256x1152xbf16>
    %c0_3 = arith.constant 0 : index
    %c0_4 = arith.constant 0 : index
    %13 = vector.load %arg3[%c0_3, %c0_4] : memref<1152x128xbf16, #tpu.memory_space<vmem>>, vector<1152x128xbf16>
    %cst = arith.constant dense<0.000000e+00> : vector<256x128xf32>
    %14 = tpu.matmul %12, %13, %cst {dimension_numbers = #tpu.dot_dimension_numbers<[1], [0], [0], [1], [0, 0, 1, 1], [], []>} : vector<256x1152xbf16>, vector<1152x128xbf16>, vector<256x128xf32> -> vector<256x128xf32>
    %c0_5 = arith.constant 0 : index
    %c0_6 = arith.constant 0 : index
    %15 = vector.load %arg4[%c0_5, %c0_6] : memref<1x128xf32, #tpu.memory_space<vmem>>, vector<1x128xf32>
    %16 = vector.broadcast %15 : vector<1x128xf32> to vector<256x128xf32>
    %17 = arith.addf %14, %16 : vector<256x128xf32>
    %18 = vector.extract_strided_slice %1 {offsets = [1, 1, 0], sizes = [16, 16, 128], strides = [1, 1, 1]} : vector<18x18x128xbf16> to vector<16x16x128xbf16>
    %19 = arith.extf %18 : vector<16x16x128xbf16> to vector<16x16x128xf32>
    %20 = vector.shape_cast %19 : vector<16x16x128xf32> to vector<4x4x16x128xf32>
    %c0_7 = arith.constant 0 : index
    %c0_8 = arith.constant 0 : index
    %c0_9 = arith.constant 0 : index
    %c0_10 = arith.constant 0 : index
    %21 = vector.load %arg2[%c0_7, %c0_8, %c0_9, %c0_10] : memref<1x4x16x128xf32, #tpu.memory_space<vmem>>, vector<1x4x16x128xf32>
    %22 = vector.shape_cast %21 : vector<1x4x16x128xf32> to vector<4x16x128xf32>
    %23 = vector.shape_cast %22 : vector<4x16x128xf32> to vector<4x1x16x128xf32>
    %24 = vector.broadcast %23 : vector<4x1x16x128xf32> to vector<4x4x16x128xf32>
    %25 = arith.addf %20, %24 : vector<4x4x16x128xf32>
    %26 = arith.negf %25 : vector<4x4x16x128xf32>
    %27 = math.exp %26 : vector<4x4x16x128xf32>
    %cst_11 = arith.constant 1.000000e+00 : f32
    %28 = vector.broadcast %cst_11 : f32 to vector<4x4x16x128xf32>
    %29 = arith.addf %28, %27 : vector<4x4x16x128xf32>
    %30 = arith.divf %28, %29 : vector<4x4x16x128xf32>
    %31 = vector.shape_cast %17 : vector<256x128xf32> to vector<4x4x16x128xf32>
    %32 = arith.mulf %31, %30 : vector<4x4x16x128xf32>
    %33 = vector.shape_cast %32 : vector<4x4x16x128xf32> to vector<16x16x128xf32>
    %cst_12 = arith.constant 0.000000e+00 : bf16
    %34 = vector.broadcast %cst_12 : bf16 to vector<18x18x128xbf16>
    %c0_13 = arith.constant 0 : index
    %c0_14 = arith.constant 0 : index
    %c0_15 = arith.constant 0 : index
    %35 = vector.load %arg8[%c0_13, %c0_14, %c0_15] : memref<18x18x128xbf16, #tpu.memory_space<vmem>>, vector<18x18x128xbf16>
    tpu.vector_store %arg8[%c0_13, %c0_14, %c0_15], %34 {strides = array<i32>} : memref<18x18x128xbf16, #tpu.memory_space<vmem>>, vector<18x18x128xbf16>,
    %36 = arith.truncf %33 : vector<16x16x128xf32> to vector<16x16x128xbf16>
    %c1 = arith.constant 1 : index
    %c1_16 = arith.constant 1 : index
    %c0_17 = arith.constant 0 : index
    %37 = vector.load %arg8[%c1, %c1_16, %c0_17] : memref<18x18x128xbf16, #tpu.memory_space<vmem>>, vector<16x16x128xbf16>
    tpu.vector_store %arg8[%c1, %c1_16, %c0_17], %36 {strides = array<i32>} : memref<18x18x128xbf16, #tpu.memory_space<vmem>>, vector<16x16x128xbf16>,
    %c0_18 = arith.constant 0 : index
    %c0_19 = arith.constant 0 : index
    %c0_20 = arith.constant 0 : index
    %38 = vector.load %arg8[%c0_18, %c0_19, %c0_20] : memref<18x18x128xbf16, #tpu.memory_space<vmem>>, vector<18x18x128xbf16>
    %39 = vector.extract_strided_slice %38 {offsets = [0, 0, 0], sizes = [16, 16, 128], strides = [1, 1, 1]} : vector<18x18x128xbf16> to vector<16x16x128xbf16>
    %40 = vector.extract_strided_slice %38 {offsets = [0, 1, 0], sizes = [16, 16, 128], strides = [1, 1, 1]} : vector<18x18x128xbf16> to vector<16x16x128xbf16>
    %41 = vector.extract_strided_slice %38 {offsets = [0, 2, 0], sizes = [16, 16, 128], strides = [1, 1, 1]} : vector<18x18x128xbf16> to vector<16x16x128xbf16>
    %42 = vector.extract_strided_slice %38 {offsets = [1, 0, 0], sizes = [16, 16, 128], strides = [1, 1, 1]} : vector<18x18x128xbf16> to vector<16x16x128xbf16>
    %43 = vector.extract_strided_slice %38 {offsets = [1, 1, 0], sizes = [16, 16, 128], strides = [1, 1, 1]} : vector<18x18x128xbf16> to vector<16x16x128xbf16>
    %44 = vector.extract_strided_slice %38 {offsets = [1, 2, 0], sizes = [16, 16, 128], strides = [1, 1, 1]} : vector<18x18x128xbf16> to vector<16x16x128xbf16>
    %45 = vector.extract_strided_slice %38 {offsets = [2, 0, 0], sizes = [16, 16, 128], strides = [1, 1, 1]} : vector<18x18x128xbf16> to vector<16x16x128xbf16>
    %46 = vector.extract_strided_slice %38 {offsets = [2, 1, 0], sizes = [16, 16, 128], strides = [1, 1, 1]} : vector<18x18x128xbf16> to vector<16x16x128xbf16>
    %47 = vector.extract_strided_slice %38 {offsets = [2, 2, 0], sizes = [16, 16, 128], strides = [1, 1, 1]} : vector<18x18x128xbf16> to vector<16x16x128xbf16>
    %48 = tpu.concatenate %39, %40, %41, %42, %43, %44, %45, %46, %47 in 2 : vector<16x16x128xbf16>, vector<16x16x128xbf16>, vector<16x16x128xbf16>, vector<16x16x128xbf16>, vector<16x16x128xbf16>, vector<16x16x128xbf16>, vector<16x16x128xbf16>, vector<16x16x128xbf16>, vector<16x16x128xbf16> -> vector<16x16x1152xbf16>
    %49 = vector.shape_cast %48 : vector<16x16x1152xbf16> to vector<256x1152xbf16>
    %c0_21 = arith.constant 0 : index
    %c0_22 = arith.constant 0 : index
    %50 = vector.load %arg5[%c0_21, %c0_22] : memref<1152x128xbf16, #tpu.memory_space<vmem>>, vector<1152x128xbf16>
    %cst_23 = arith.constant dense<0.000000e+00> : vector<256x128xf32>
    %51 = tpu.matmul %49, %50, %cst_23 {dimension_numbers = #tpu.dot_dimension_numbers<[1], [0], [0], [1], [0, 0, 1, 1], [], []>} : vector<256x1152xbf16>, vector<1152x128xbf16>, vector<256x128xf32> -> vector<256x128xf32>
    %c0_24 = arith.constant 0 : index
    %c0_25 = arith.constant 0 : index
    %52 = vector.load %arg6[%c0_24, %c0_25] : memref<1x128xf32, #tpu.memory_space<vmem>>, vector<1x128xf32>
    %53 = vector.broadcast %52 : vector<1x128xf32> to vector<256x128xf32>
    %54 = arith.addf %51, %53 : vector<256x128xf32>
    %55 = vector.shape_cast %54 : vector<256x128xf32> to vector<16x16x128xf32>
    %c0_26 = arith.constant 0 : index
    %c0_27 = arith.constant 0 : index
    %c0_28 = arith.constant 0 : index
    %c0_29 = arith.constant 0 : index
    %56 = vector.load %arg7[%c0_26, %c0_27, %c0_28, %c0_29] : memref<1x16x16x128xf32, #tpu.memory_space<vmem>>, vector<1x16x16x128xf32>
    %57 = vector.shape_cast %56 : vector<1x16x16x128xf32> to vector<16x16x128xf32>
    %58 = vector.shape_cast %55 : vector<16x16x128xf32> to vector<1x16x16x128xf32>
    tpu.vector_store %arg7[%c0_26, %c0_27, %c0_28, %c0_29], %58 {strides = array<i32>} : memref<1x16x16x128xf32, #tpu.memory_space<vmem>>, vector<1x16x16x128xf32>,
    return
  }
  func.func @transform_0(%arg0: i32) -> (i32, i32, i32, i32) {
    %c0_i32 = arith.constant 0 : i32
    %c0_i32_0 = arith.constant 0 : i32
    %c0_i32_1 = arith.constant 0 : i32
    %c0_i32_2 = arith.constant 0 : i32
    return %arg0, %c0_i32, %c0_i32_0, %c0_i32_1 : i32, i32, i32, i32
  }
  func.func @transform_1(%arg0: i32) -> (i32, i32, i32, i32) {
    %c0_i32 = arith.constant 0 : i32
    %c0_i32_0 = arith.constant 0 : i32
    %c0_i32_1 = arith.constant 0 : i32
    %c0_i32_2 = arith.constant 0 : i32
    return %arg0, %c0_i32, %c0_i32_0, %c0_i32_1 : i32, i32, i32, i32
  }
  func.func @transform_2(%arg0: i32) -> (i32, i32) {
    %c0_i32 = arith.constant 0 : i32
    %c0_i32_0 = arith.constant 0 : i32
    %c0_i32_1 = arith.constant 0 : i32
    return %c0_i32, %c0_i32_0 : i32, i32
  }
  func.func @transform_3(%arg0: i32) -> (i32, i32) {
    %c0_i32 = arith.constant 0 : i32
    %c0_i32_0 = arith.constant 0 : i32
    %c0_i32_1 = arith.constant 0 : i32
    return %c0_i32, %c0_i32_0 : i32, i32
  }
  func.func @transform_4(%arg0: i32) -> (i32, i32) {
    %c0_i32 = arith.constant 0 : i32
    %c0_i32_0 = arith.constant 0 : i32
    %c0_i32_1 = arith.constant 0 : i32
    return %c0_i32, %c0_i32_0 : i32, i32
  }
  func.func @transform_5(%arg0: i32) -> (i32, i32) {
    %c0_i32 = arith.constant 0 : i32
    %c0_i32_0 = arith.constant 0 : i32
    %c0_i32_1 = arith.constant 0 : i32
    return %c0_i32, %c0_i32_0 : i32, i32
  }
  func.func @transform_6(%arg0: i32) -> (i32, i32, i32, i32) {
    %c0_i32 = arith.constant 0 : i32
    %c0_i32_0 = arith.constant 0 : i32
    %c0_i32_1 = arith.constant 0 : i32
    %c0_i32_2 = arith.constant 0 : i32
    return %arg0, %c0_i32, %c0_i32_0, %c0_i32_1 : i32, i32, i32, i32
  }
}

</mosaic_0001>

<llo_original>
// kernel: scconv_forward.2
$region0: #{scconv_forward.2}
  #allocation0 [shape = 'u32[]', space=smem, size = 0x4, offset = 0x4, fixed_abs, tag = 'smem constant byte address 0x4 - core index']
  #allocation1 [shape = 'u32[144,128]{1,0:T(1,128)}', space=vmem, size = 0x12000, scoped, tag = 'internal scratch']
  %s0 = inlined_call_operand.vmem [shape: bf16[2,6,6,128], index: 0, kind: input, shape index: {}]
  %s1 = inlined_call_operand.vmem [shape: bf16[1152,128], index: 1, kind: input, shape index: {}]
  %s2 = inlined_call_operand.vmem [shape: f32[1,128], index: 2, kind: input, shape index: {}]
  %s3 = inlined_call_operand.vmem [shape: f32[2,4,4,128], index: 3, kind: output, shape index: {}]
  %s4 = sld [smem:[#allocation0]]
  $region45: #{scconv_forward.2} parent=0
    _
  %s6 = ssub.s32 1, %s4
  %s7 = scalar_select 0, %s6, %s4
  loop: start=0, step=1, limit=4
  $region2: #{scconv_forward.2} parent=0 // loop_pre_header
    _
  $region3: #{scconv_forward.2} parent=0 // loop_header
    %s9 = sphi 0, %s13
    %p10 = scmp.ge.s32.totalorder %s9, 4
    %s19 = sphi 0, %s21
    %s22 = sphi 0, %s19
    %s23 = sphi 0, %s22
    %s39 = sphi 0, %s23
    %s43 = sphi 0, %s43
    %s45 = sphi 0, %s43
    %s46 = sphi 0, %s45
    %s60 = sphi 0, %s46
    %s64 = sphi 0, %s64
    %s66 = sphi 0, %s64
    %s67 = sphi 0, %s66
    %s81 = sphi 0, %s67
    %s87 = sphi 0, %s89
    %s90 = sphi 0, %s87
    %s91 = sphi 0, %s90
    %s107 = sphi 0, %s91
  $region4: #{scconv_forward.2} parent=0 // loop_header_branch
    %12 = sbr.rel (%p10) target = $region8
  $region5: #{scconv_forward.2} parent=0 // loop_body
    %s14 = ssub.s32 %s9, 1
    %s15 = ssub.s32 %s9, 2
    %s16 = sadd.s32 %s9, 1
    %s17 = ssub.s32 %s9, %s16
    %p18 = scmp.eq.s32.totalorder %s17, 0
    %s20 = sadd.s32 %s19, 1
    %s21 = scalar_select %p18, %s19, %s20
    %p24 = pneg %p18
    %p25 = scmp.eq.s32.totalorder %s9, 1
    %p26 = por %p24, %p25
    %p27 = scmp.ne.s32.totalorder %s19, %s22
    %p28 = scmp.eq.s32.totalorder %s9, 0
    %p29 = por %p27, %p28
    %p30 = scmp.ne.s32.totalorder %s19, %s22
    %p31 = scmp.eq.s32.totalorder %s14, 1
    %p32 = por %p30, %p31
    %p33 = scmp.ne.s32.totalorder %s22, %s23
    %p34 = scmp.eq.s32.totalorder %s14, 0
    %p35 = por %p33, %p34
    %p36 = scmp.ne.s32.totalorder %s22, %s23
    %p37 = scmp.eq.s32.totalorder %s15, 1
    %p38 = por %p36, %p37
    %p40 = scmp.ne.s32.totalorder %s23, %s39
    %p41 = scmp.eq.s32.totalorder %s15, 0
    %p42 = por %p40, %p41
    %s44 = sadd.s32 %s43, 1
    %p47 = scmp.eq.s32.totalorder %s9, 1
    %p48 = scmp.ne.s32.totalorder %s43, %s45
    %p49 = scmp.eq.s32.totalorder %s9, 0
    %p50 = por %p48, %p49
    %p51 = scmp.ne.s32.totalorder %s43, %s45
    %p52 = scmp.eq.s32.totalorder %s14, 1
    %p53 = por %p51, %p52
    %p54 = scmp.ne.s32.totalorder %s45, %s46
    %p55 = scmp.eq.s32.totalorder %s14, 0
    %p56 = por %p54, %p55
    %p57 = scmp.ne.s32.totalorder %s45, %s46
    %p58 = scmp.eq.s32.totalorder %s15, 1
    %p59 = por %p57, %p58
    %p61 = scmp.ne.s32.totalorder %s46, %s60
    %p62 = scmp.eq.s32.totalorder %s15, 0
    %p63 = por %p61, %p62
    %s65 = sadd.s32 %s64, 1
    %p68 = scmp.eq.s32.totalorder %s9, 1
    %p69 = scmp.ne.s32.totalorder %s64, %s66
    %p70 = scmp.eq.s32.totalorder %s9, 0
    %p71 = por %p69, %p70
    %p72 = scmp.ne.s32.totalorder %s64, %s66
    %p73 = scmp.eq.s32.totalorder %s14, 1
    %p74 = por %p72, %p73
    %p75 = scmp.ne.s32.totalorder %s66, %s67
    %p76 = scmp.eq.s32.totalorder %s14, 0
    %p77 = por %p75, %p76
    %p78 = scmp.ne.s32.totalorder %s66, %s67
    %p79 = scmp.eq.s32.totalorder %s15, 1
    %p80 = por %p78, %p79
    %p82 = scmp.ne.s32.totalorder %s67, %s81
    %p83 = scmp.eq.s32.totalorder %s15, 0
    %p84 = por %p82, %p83
    %s85 = ssub.s32 %s9, %s16
    %p86 = scmp.eq.s32.totalorder %s85, 0
    %s88 = sadd.s32 %s87, 1
    %s89 = scalar_select %p86, %s87, %s88
    %p92 = pneg %p86
    %p93 = scmp.eq.s32.totalorder %s9, 1
    %p94 = por %p92, %p93
    %p95 = scmp.ne.s32.totalorder %s87, %s90
    %p96 = scmp.eq.s32.totalorder %s9, 0
    %p97 = por %p95, %p96
    %p98 = scmp.ne.s32.totalorder %s87, %s90
    %p99 = scmp.eq.s32.totalorder %s14, 1
    %p100 = por %p98, %p99
    %p101 = scmp.ne.s32.totalorder %s90, %s91
    %p102 = scmp.eq.s32.totalorder %s14, 0
    %p103 = por %p101, %p102
    %p104 = scmp.ne.s32.totalorder %s90, %s91
    %p105 = scmp.eq.s32.totalorder %s15, 1
    %p106 = por %p104, %p105
    %p108 = scmp.ne.s32.totalorder %s91, %s107
    %p109 = scmp.eq.s32.totalorder %s15, 0
    %p110 = por %p108, %p109
    %p111 = scmp.le.s32.totalorder 1, %s9
    %p112 = scmp.lt.s32.totalorder %s9, 3
    %p113 = pnand %p111, %p112
    %p114 = pneg %p113
    // Predicated region
    $region9: #{scconv_forward.2} parent=5 // pred_check
      _
    $region10: #{scconv_forward.2} parent=5 // pred_check_branch
      %116 = sbr.rel (%p113) target = $region12
    $region11: #{scconv_forward.2} parent=5 // pred_region
      %s117 = ssub.s32 %s9, 1
      // Predicated region
      $region13: #{scconv_forward.2} parent=11 // pred_check
        %p118 = pneg %p56
      $region14: #{scconv_forward.2} parent=11 // pred_check_branch
        %120 = sbr.rel (%p118) target = $region16
      $region15: #{scconv_forward.2} parent=11 // pred_region
        _
      $region16: #{scconv_forward.2} parent=11 // pred_fallthru
        _
      // Predicated region
      $region17: #{scconv_forward.2} parent=11 // pred_check
        %p121 = pneg %p77
      $region18: #{scconv_forward.2} parent=11 // pred_check_branch
        %123 = sbr.rel (%p121) target = $region20
      $region19: #{scconv_forward.2} parent=11 // pred_region
        _
      $region20: #{scconv_forward.2} parent=11 // pred_fallthru
        _
    $region12: #{scconv_forward.2} parent=5 // pred_fallthru
      _
    %p124 = scmp.lt.s32.totalorder %s9, 2
    // Predicated region
    $region21: #{scconv_forward.2} parent=5 // pred_check
      %p125 = pneg %p124
    $region22: #{scconv_forward.2} parent=5 // pred_check_branch
      %127 = sbr.rel (%p125) target = $region24
    $region23: #{scconv_forward.2} parent=5 // pred_region
      // Predicated region
      $region25: #{scconv_forward.2} parent=23 // pred_check
        %p128 = pneg %p29
      $region26: #{scconv_forward.2} parent=23 // pred_check_branch
        %130 = sbr.rel (%p128) target = $region28
      $region27: #{scconv_forward.2} parent=23 // pred_region
        %p131 = scmp.lt.s32.totalorder %s9, 1
        %s132 = scalar_select %p131, %s9, 1
        %s133 = smul.addr %s132, 6
        %s134 = smul.addr %s133, 4
        %s135 = scalar_lea.vmem %s0, %s134
      $region28: #{scconv_forward.2} parent=23 // pred_fallthru
        _
    $region24: #{scconv_forward.2} parent=5 // pred_fallthru
      _
    %p136 = scmp.le.s32.totalorder 1, %s9
    %p137 = scmp.lt.s32.totalorder %s9, 3
    %p138 = pnand %p136, %p137
    %p139 = pneg %p138
    // Predicated region
    $region29: #{scconv_forward.2} parent=5 // pred_check
      _
    $region30: #{scconv_forward.2} parent=5 // pred_check_branch
      %141 = sbr.rel (%p138) target = $region32
    $region31: #{scconv_forward.2} parent=5 // pred_region
      %s142 = ssub.s32 %s9, 1
      %p143 = scmp.lt.s32.totalorder %s14, 1
      %s144 = scalar_select %p143, %s14, 1
      %s145 = smul.addr %s144, 6
      %s146 = smul.addr %s145, 4
      %s147 = scalar_lea.vmem %s0, %s146
      %p148 = pneg %p35
      %p149 = pneg %p32
      %p150 = pneg %p56
      %p151 = pneg %p53
      %p152 = pneg %p77
      %p153 = pneg %p74
      %p154 = pneg %p103
      %p155 = pneg %p100
      %p156 = scmp.lt.s32.totalorder %s14, 1
      %s157 = scalar_select %p156, %s14, 1
      %s158 = smul.addr %s157, 4
      %s159 = smul.addr %s158, 4
      %s160 = scalar_lea.vmem %s3, %s159
      %p161 = scmp.lt.s32.totalorder %s14, 1
      %s162 = scalar_select %p161, %s14, 1
      %s163 = smul.addr %s162, 6
      %s164 = smul.addr %s163, 4
      %s165 = scalar_lea.vmem %s0, %s164
      %p166 = scmp.lt.s32.totalorder %s14, 1
      %s167 = scalar_select %p166, %s14, 1
      %s168 = smul.addr %s167, 4
      %s169 = smul.addr %s168, 4
      %s170 = scalar_lea.vmem %s3, %s169
      %v172 = vld [vmem:[%s165] sm:$0x7]
      %v173 = vld [vmem:[%s165 + $0x4] sm:$0x7]
      %v174 = vld [vmem:[%s165 + $0x8] sm:$0x7]
      %v175 = vld [vmem:[%s165 + $0xc] sm:$0x7]
      %v176 = vld [vmem:[%s165 + $0x10] sm:$0x7]
      %v177 = vld [vmem:[%s165 + $0x14] sm:$0x7]
      %v182 = vunpack.c.l.b16 %v172
      %v183 = vunpack.c.l.b16 %v173
      %v184 = vunpack.c.l.b16 %v174
      %v185 = vunpack.c.l.b16 %v175
      %v186 = vpack.c.b16 %v182, %v182
      %v187 = vpack.c.b16 %v183, %v183
      %v188 = vpack.c.b16 %v184, %v184
      %v189 = vpack.c.b16 %v185, %v185
      %v191 = vshrl.u32 %v186, 16
      %v193 = vshll.u32 %v186, 16
      %v195 = vrot.slane %v193, 1
      %v196 = vor.u32 %v191, %v195
      %v198 = vshrl.u32 %v187, 16
      %v200 = vshll.u32 %v187, 16
      %v202 = vrot.slane %v200, 1
      %v203 = vor.u32 %v198, %v202
      %v205 = vshrl.u32 %v188, 16
      %v207 = vshll.u32 %v188, 16
      %v209 = vrot.slane %v207, 1
      %v210 = vor.u32 %v205, %v209
      %v212 = vshrl.u32 %v189, 16
      %v214 = vshll.u32 %v189, 16
      %v216 = vrot.slane %v214, 1
      %v217 = vor.u32 %v212, %v216
      %v218 = vrot.slane %v186, 1
      %v219 = vrot.slane %v187, 1
      %v220 = vrot.slane %v188, 1
      %v221 = vrot.slane %v189, 1
      %v223 = vunpack.c.l.b16 %v176
      %v224 = vpack.c.b16 %v223, %v223
      %v226 = vshrl.u32 %v224, 16
      %v228 = vshll.u32 %v224, 16
      %v230 = vrot.slane %v228, 1
      %v231 = vor.u32 %v226, %v230
      %v232 = vrot.slane %v224, 1
      %v234 = vunpack.c.l.b16 %v177
      %v235 = vpack.c.b16 %v234, %v234
      %v237 = vshrl.u32 %v235, 16
      %v239 = vshll.u32 %v235, 16
      %v241 = vrot.slane %v239, 1
      %v242 = vor.u32 %v237, %v241
      %v243 = vrot.slane %v235, 1
      %v244 = vcombine.low %v172, %v196
      %v245 = vcombine.low %v218, %v173
      %v247 = vunpack.c.l.s4 1983009808
      %v248 = vunpack.c.0.s8 %v247
      %v249 = vlaneseq
      %v250 = vshrl.u32 %v249, 7
      %v251 = vsub.s32 %v248, %v250
      %v252 = vrot.slane %v244, %v251
      %v254 = vunpack.c.l.s4 1983009808
      %v255 = vunpack.c.0.s8 %v254
      %v256 = vlaneseq
      %v257 = vshrl.u32 %v256, 7
      %v258 = vsub.s32 %v255, %v257
      %v259 = vrot.slane %v245, %v258
      %v260 = vcombine.low %v252, %v259
      %v261 = vcombine.low %v203, %v219
      %v262 = vcombine.low %v174, %v210
      %v264 = vunpack.c.l.s4 1983009808
      %v265 = vunpack.c.0.s8 %v264
      %v266 = vlaneseq
      %v267 = vshrl.u32 %v266, 7
      %v268 = vsub.s32 %v265, %v267
      %v269 = vrot.slane %v261, %v268
      %v271 = vunpack.c.l.s4 1983009808
      %v272 = vunpack.c.0.s8 %v271
      %v273 = vlaneseq
      %v274 = vshrl.u32 %v273, 7
      %v275 = vsub.s32 %v272, %v274
      %v276 = vrot.slane %v262, %v275
      %v277 = vcombine.low %v269, %v276
      %v279 = vunpack.c.l.s4 1983009808
      %v280 = vunpack.c.0.s8 %v279
      %v281 = vlaneseq
      %v282 = vshrl.u32 %v281, 7
      %v283 = vsub.s32 %v280, %v282
      %v284 = vrot.slane %v220, %v283
      %v285 = vcombine.low %v173, %v203
      %v286 = vcombine.low %v219, %v174
      %v288 = vunpack.c.l.s4 1983009808
      %v289 = vunpack.c.0.s8 %v288
      %v290 = vlaneseq
      %v291 = vshrl.u32 %v290, 7
      %v292 = vsub.s32 %v289, %v291
      %v293 = vrot.slane %v285, %v292
      %v295 = vunpack.c.l.s4 1983009808
      %v296 = vunpack.c.0.s8 %v295
      %v297 = vlaneseq
      %v298 = vshrl.u32 %v297, 7
      %v299 = vsub.s32 %v296, %v298
      %v300 = vrot.slane %v286, %v299
      %v301 = vcombine.low %v293, %v300
      %v302 = vcombine.low %v210, %v220
      %v303 = vcombine.low %v175, %v217
      %v305 = vunpack.c.l.s4 1983009808
      %v306 = vunpack.c.0.s8 %v305
      %v307 = vlaneseq
      %v308 = vshrl.u32 %v307, 7
      %v309 = vsub.s32 %v306, %v308
      %v310 = vrot.slane %v302, %v309
      %v312 = vunpack.c.l.s4 1983009808
      %v313 = vunpack.c.0.s8 %v312
      %v314 = vlaneseq
      %v315 = vshrl.u32 %v314, 7
      %v316 = vsub.s32 %v313, %v315
      %v317 = vrot.slane %v303, %v316
      %v318 = vcombine.low %v310, %v317
      %v320 = vunpack.c.l.s4 1983009808
      %v321 = vunpack.c.0.s8 %v320
      %v322 = vlaneseq
      %v323 = vshrl.u32 %v322, 7
      %v324 = vsub.s32 %v321, %v323
      %v325 = vrot.slane %v221, %v324
      %v326 = vcombine.low %v220, %v175
      %v328 = vunpack.c.l.s4 1983009808
      %v329 = vunpack.c.0.s8 %v328
      %v330 = vlaneseq
      %v331 = vshrl.u32 %v330, 7
      %v332 = vsub.s32 %v329, %v331
      %v333 = vrot.slane %v326, %v332
      %v334 = vcombine.low %v276, %v333
      %v335 = vcombine.low %v217, %v221
      %v336 = vcombine.low %v176, %v231
      %v338 = vunpack.c.l.s4 1983009808
      %v339 = vunpack.c.0.s8 %v338
      %v340 = vlaneseq
      %v341 = vshrl.u32 %v340, 7
      %v342 = vsub.s32 %v339, %v341
      %v343 = vrot.slane %v335, %v342
      %v345 = vunpack.c.l.s4 1983009808
      %v346 = vunpack.c.0.s8 %v345
      %v347 = vlaneseq
      %v348 = vshrl.u32 %v347, 7
      %v349 = vsub.s32 %v346, %v348
      %v350 = vrot.slane %v336, %v349
      %v351 = vcombine.low %v343, %v350
      %v353 = vunpack.c.l.s4 1983009808
      %v354 = vunpack.c.0.s8 %v353
      %v355 = vlaneseq
      %v356 = vshrl.u32 %v355, 7
      %v357 = vsub.s32 %v354, %v356
      %v358 = vrot.slane %v232, %v357
      %v359 = vcombine.low %v221, %v176
      %v361 = vunpack.c.l.s4 1983009808
      %v362 = vunpack.c.0.s8 %v361
      %v363 = vlaneseq
      %v364 = vshrl.u32 %v363, 7
      %v365 = vsub.s32 %v362, %v364
      %v366 = vrot.slane %v359, %v365
      %v367 = vcombine.low %v317, %v366
      %v368 = vcombine.low %v231, %v232
      %v369 = vcombine.low %v177, %v242
      %v371 = vunpack.c.l.s4 1983009808
      %v372 = vunpack.c.0.s8 %v371
      %v373 = vlaneseq
      %v374 = vshrl.u32 %v373, 7
      %v375 = vsub.s32 %v372, %v374
      %v376 = vrot.slane %v368, %v375
      %v378 = vunpack.c.l.s4 1983009808
      %v379 = vunpack.c.0.s8 %v378
      %v380 = vlaneseq
      %v381 = vshrl.u32 %v380, 7
      %v382 = vsub.s32 %v379, %v381
      %v383 = vrot.slane %v369, %v382
      %v384 = vcombine.low %v376, %v383
      %v386 = vunpack.c.l.s4 1983009808
      %v387 = vunpack.c.0.s8 %v386
      %v388 = vlaneseq
      %v389 = vshrl.u32 %v388, 7
      %v390 = vsub.s32 %v387, %v389
      %v391 = vrot.slane %v243, %v390
      %v392 = vld [vmem:[%s1] sm:$0xf]
      %v393 = vld [vmem:[%s1 + $0x4] sm:$0xf]
      %v394 = vld [vmem:[%s1 + $0x8] sm:$0xf]
      %v395 = vld [vmem:[%s1 + $0xc] sm:$0xf]
      %v396 = vld [vmem:[%s1 + $0x10] sm:$0xf]
      %v397 = vld [vmem:[%s1 + $0x14] sm:$0xf]
      %v398 = vld [vmem:[%s1 + $0x18] sm:$0xf]
      %v399 = vld [vmem:[%s1 + $0x1c] sm:$0xf]
      %v400 = vld [vmem:[%s1 + $0x20] sm:$0xf]
      %v401 = vld [vmem:[%s1 + $0x24] sm:$0xf]
      %v402 = vld [vmem:[%s1 + $0x28] sm:$0xf]
      %v403 = vld [vmem:[%s1 + $0x2c] sm:$0xf]
      %v404 = vld [vmem:[%s1 + $0x30] sm:$0xf]
      %v405 = vld [vmem:[%s1 + $0x34] sm:$0xf]
      %v406 = vld [vmem:[%s1 + $0x38] sm:$0xf]
      %v407 = vld [vmem:[%s1 + $0x3c] sm:$0xf]
      %v408 = vld [vmem:[%s1 + $0x40] sm:$0xf]
      %v409 = vld [vmem:[%s1 + $0x44] sm:$0xf]
      %v410 = vld [vmem:[%s1 + $0x48] sm:$0xf]
      %v411 = vld [vmem:[%s1 + $0x4c] sm:$0xf]
      %v412 = vld [vmem:[%s1 + $0x50] sm:$0xf]
      %v413 = vld [vmem:[%s1 + $0x54] sm:$0xf]
      %v414 = vld [vmem:[%s1 + $0x58] sm:$0xf]
      %v415 = vld [vmem:[%s1 + $0x5c] sm:$0xf]
      %v416 = vld [vmem:[%s1 + $0x60] sm:$0xf]
      %v417 = vld [vmem:[%s1 + $0x64] sm:$0xf]
      %v418 = vld [vmem:[%s1 + $0x68] sm:$0xf]
      %v419 = vld [vmem:[%s1 + $0x6c] sm:$0xf]
      %v420 = vld [vmem:[%s1 + $0x70] sm:$0xf]
      %v421 = vld [vmem:[%s1 + $0x74] sm:$0xf]
      %v422 = vld [vmem:[%s1 + $0x78] sm:$0xf]
      %v423 = vld [vmem:[%s1 + $0x7c] sm:$0xf]
      %v424 = vld [vmem:[%s1 + $0x80] sm:$0xf]
      %v425 = vld [vmem:[%s1 + $0x84] sm:$0xf]
      %v426 = vld [vmem:[%s1 + $0x88] sm:$0xf]
      %v427 = vld [vmem:[%s1 + $0x8c] sm:$0xf]
      %v428 = vld [vmem:[%s1 + $0x90] sm:$0xf]
      %v429 = vld [vmem:[%s1 + $0x94] sm:$0xf]
      %v430 = vld [vmem:[%s1 + $0x98] sm:$0xf]
      %v431 = vld [vmem:[%s1 + $0x9c] sm:$0xf]
      %v432 = vld [vmem:[%s1 + $0xa0] sm:$0xf]
      %v433 = vld [vmem:[%s1 + $0xa4] sm:$0xf]
      %v434 = vld [vmem:[%s1 + $0xa8] sm:$0xf]
      %v435 = vld [vmem:[%s1 + $0xac] sm:$0xf]
      %v436 = vld [vmem:[%s1 + $0xb0] sm:$0xf]
      %v437 = vld [vmem:[%s1 + $0xb4] sm:$0xf]
      %v438 = vld [vmem:[%s1 + $0xb8] sm:$0xf]
      %v439 = vld [vmem:[%s1 + $0xbc] sm:$0xf]
      %v440 = vld [vmem:[%s1 + $0xc0] sm:$0xf]
      %v441 = vld [vmem:[%s1 + $0xc4] sm:$0xf]
      %v442 = vld [vmem:[%s1 + $0xc8] sm:$0xf]
      %v443 = vld [vmem:[%s1 + $0xcc] sm:$0xf]
      %v444 = vld [vmem:[%s1 + $0xd0] sm:$0xf]
      %v445 = vld [vmem:[%s1 + $0xd4] sm:$0xf]
      %v446 = vld [vmem:[%s1 + $0xd8] sm:$0xf]
      %v447 = vld [vmem:[%s1 + $0xdc] sm:$0xf]
      %v448 = vld [vmem:[%s1 + $0xe0] sm:$0xf]
      %v449 = vld [vmem:[%s1 + $0xe4] sm:$0xf]
      %v450 = vld [vmem:[%s1 + $0xe8] sm:$0xf]
      %v451 = vld [vmem:[%s1 + $0xec] sm:$0xf]
      %v452 = vld [vmem:[%s1 + $0xf0] sm:$0xf]
      %v453 = vld [vmem:[%s1 + $0xf4] sm:$0xf]
      %v454 = vld [vmem:[%s1 + $0xf8] sm:$0xf]
      %v455 = vld [vmem:[%s1 + $0xfc] sm:$0xf]
      %v456 = vld [vmem:[%s1 + $0x100] sm:$0xf]
      %v457 = vld [vmem:[%s1 + $0x104] sm:$0xf]
      %v458 = vld [vmem:[%s1 + $0x108] sm:$0xf]
      %v459 = vld [vmem:[%s1 + $0x10c] sm:$0xf]
      %v460 = vld [vmem:[%s1 + $0x110] sm:$0xf]
      %v461 = vld [vmem:[%s1 + $0x114] sm:$0xf]
      %v462 = vld [vmem:[%s1 + $0x118] sm:$0xf]
      %v463 = vld [vmem:[%s1 + $0x11c] sm:$0xf]
      %v464 = vld [vmem:[%s1 + $0x120] sm:$0xf]
      %v465 = vld [vmem:[%s1 + $0x124] sm:$0xf]
      %v466 = vld [vmem:[%s1 + $0x128] sm:$0xf]
      %v467 = vld [vmem:[%s1 + $0x12c] sm:$0xf]
      %v468 = vld [vmem:[%s1 + $0x130] sm:$0xf]
      %v469 = vld [vmem:[%s1 + $0x134] sm:$0xf]
      %v470 = vld [vmem:[%s1 + $0x138] sm:$0xf]
      %v471 = vld [vmem:[%s1 + $0x13c] sm:$0xf]
      %v472 = vld [vmem:[%s1 + $0x140] sm:$0xf]
      %v473 = vld [vmem:[%s1 + $0x144] sm:$0xf]
      %v474 = vld [vmem:[%s1 + $0x148] sm:$0xf]
      %v475 = vld [vmem:[%s1 + $0x14c] sm:$0xf]
      %v476 = vld [vmem:[%s1 + $0x150] sm:$0xf]
      %v477 = vld [vmem:[%s1 + $0x154] sm:$0xf]
      %v478 = vld [vmem:[%s1 + $0x158] sm:$0xf]
      %v479 = vld [vmem:[%s1 + $0x15c] sm:$0xf]
      %v480 = vld [vmem:[%s1 + $0x160] sm:$0xf]
      %v481 = vld [vmem:[%s1 + $0x164] sm:$0xf]
      %v482 = vld [vmem:[%s1 + $0x168] sm:$0xf]
      %v483 = vld [vmem:[%s1 + $0x16c] sm:$0xf]
      %v484 = vld [vmem:[%s1 + $0x170] sm:$0xf]
      %v485 = vld [vmem:[%s1 + $0x174] sm:$0xf]
      %v486 = vld [vmem:[%s1 + $0x178] sm:$0xf]
      %v487 = vld [vmem:[%s1 + $0x17c] sm:$0xf]
      %v488 = vld [vmem:[%s1 + $0x180] sm:$0xf]
      %v489 = vld [vmem:[%s1 + $0x184] sm:$0xf]
      %v490 = vld [vmem:[%s1 + $0x188] sm:$0xf]
      %v491 = vld [vmem:[%s1 + $0x18c] sm:$0xf]
      %v492 = vld [vmem:[%s1 + $0x190] sm:$0xf]
      %v493 = vld [vmem:[%s1 + $0x194] sm:$0xf]
      %v494 = vld [vmem:[%s1 + $0x198] sm:$0xf]
      %v495 = vld [vmem:[%s1 + $0x19c] sm:$0xf]
      %v496 = vld [vmem:[%s1 + $0x1a0] sm:$0xf]
      %v497 = vld [vmem:[%s1 + $0x1a4] sm:$0xf]
      %v498 = vld [vmem:[%s1 + $0x1a8] sm:$0xf]
      %v499 = vld [vmem:[%s1 + $0x1ac] sm:$0xf]
      %v500 = vld [vmem:[%s1 + $0x1b0] sm:$0xf]
      %v501 = vld [vmem:[%s1 + $0x1b4] sm:$0xf]
      %v502 = vld [vmem:[%s1 + $0x1b8] sm:$0xf]
      %v503 = vld [vmem:[%s1 + $0x1bc] sm:$0xf]
      %v504 = vld [vmem:[%s1 + $0x1c0] sm:$0xf]
      %v505 = vld [vmem:[%s1 + $0x1c4] sm:$0xf]
      %v506 = vld [vmem:[%s1 + $0x1c8] sm:$0xf]
      %v507 = vld [vmem:[%s1 + $0x1cc] sm:$0xf]
      %v508 = vld [vmem:[%s1 + $0x1d0] sm:$0xf]
      %v509 = vld [vmem:[%s1 + $0x1d4] sm:$0xf]
      %v510 = vld [vmem:[%s1 + $0x1d8] sm:$0xf]
      %v511 = vld [vmem:[%s1 + $0x1dc] sm:$0xf]
      %v512 = vld [vmem:[%s1 + $0x1e0] sm:$0xf]
      %v513 = vld [vmem:[%s1 + $0x1e4] sm:$0xf]
      %v514 = vld [vmem:[%s1 + $0x1e8] sm:$0xf]
      %v515 = vld [vmem:[%s1 + $0x1ec] sm:$0xf]
      %v516 = vld [vmem:[%s1 + $0x1f0] sm:$0xf]
      %v517 = vld [vmem:[%s1 + $0x1f4] sm:$0xf]
      %v518 = vld [vmem:[%s1 + $0x1f8] sm:$0xf]
      %v519 = vld [vmem:[%s1 + $0x1fc] sm:$0xf]
      %v520 = vld [vmem:[%s1 + $0x200] sm:$0xf]
      %v521 = vld [vmem:[%s1 + $0x204] sm:$0xf]
      %v522 = vld [vmem:[%s1 + $0x208] sm:$0xf]
      %v523 = vld [vmem:[%s1 + $0x20c] sm:$0xf]
      %v524 = vld [vmem:[%s1 + $0x210] sm:$0xf]
      %v525 = vld [vmem:[%s1 + $0x214] sm:$0xf]
      %v526 = vld [vmem:[%s1 + $0x218] sm:$0xf]
      %v527 = vld [vmem:[%s1 + $0x21c] sm:$0xf]
      %v528 = vld [vmem:[%s1 + $0x220] sm:$0xf]
      %v529 = vld [vmem:[%s1 + $0x224] sm:$0xf]
      %v530 = vld [vmem:[%s1 + $0x228] sm:$0xf]
      %v531 = vld [vmem:[%s1 + $0x22c] sm:$0xf]
      %v532 = vld [vmem:[%s1 + $0x230] sm:$0xf]
      %v533 = vld [vmem:[%s1 + $0x234] sm:$0xf]
      %v534 = vld [vmem:[%s1 + $0x238] sm:$0xf]
      %v535 = vld [vmem:[%s1 + $0x23c] sm:$0xf]
      %v536 = vld [vmem:[%s2] sm:$0x1]
      %v538 = vlaneseq
      %v539 = vshrl.u32 %v538, 7
      %v540 = vsub.s32 0, %v539
      %v541 = vrot.slane %v536, %v540
      %v543 = vcombine.low %v260, %v301
      %v544 = vcombine.high %v260, %v301
      %v545 = vcombine.low %v334, %v367
      %v546 = vcombine.high %v334, %v367
      %v548 = vunpack.c.l.s4 1983009808
      %v549 = vunpack.c.0.s8 %v548
      %v550 = vlaneseq
      %v551 = vshrl.u32 %v550, 7
      %v552 = vsub.s32 %v549, %v551
      %v553 = vrot.slane %v543, %v552
      %v555 = vunpack.c.l.s4 1983009808
      %v556 = vunpack.c.0.s8 %v555
      %v557 = vlaneseq
      %v558 = vshrl.u32 %v557, 7
      %v559 = vsub.s32 %v556, %v558
      %v560 = vrot.slane %v544, %v559
      %v562 = vunpack.c.l.s4 1983009808
      %v563 = vunpack.c.0.s8 %v562
      %v564 = vlaneseq
      %v565 = vshrl.u32 %v564, 7
      %v566 = vsub.s32 %v563, %v565
      %v567 = vrot.slane %v545, %v566
      %v569 = vunpack.c.l.s4 1983009808
      %v570 = vunpack.c.0.s8 %v569
      %v571 = vlaneseq
      %v572 = vshrl.u32 %v571, 7
      %v573 = vsub.s32 %v570, %v572
      %v574 = vrot.slane %v546, %v573
      %v575 = vcombine.low %v553, %v567
      %v576 = vcombine.high %v553, %v567
      %v577 = vcombine.low %v560, %v574
      %v578 = vcombine.high %v560, %v574
      %v579 = vcombine.low %v277, %v318
      %v580 = vcombine.high %v277, %v318
      %v581 = vcombine.low %v351, %v384
      %v582 = vcombine.high %v351, %v384
      %v584 = vunpack.c.l.s4 1983009808
      %v585 = vunpack.c.0.s8 %v584
      %v586 = vlaneseq
      %v587 = vshrl.u32 %v586, 7
      %v588 = vsub.s32 %v585, %v587
      %v589 = vrot.slane %v579, %v588
      %v591 = vunpack.c.l.s4 1983009808
      %v592 = vunpack.c.0.s8 %v591
      %v593 = vlaneseq
      %v594 = vshrl.u32 %v593, 7
      %v595 = vsub.s32 %v592, %v594
      %v596 = vrot.slane %v580, %v595
      %v598 = vunpack.c.l.s4 1983009808
      %v599 = vunpack.c.0.s8 %v598
      %v600 = vlaneseq
      %v601 = vshrl.u32 %v600, 7
      %v602 = vsub.s32 %v599, %v601
      %v603 = vrot.slane %v581, %v602
      %v605 = vunpack.c.l.s4 1983009808
      %v606 = vunpack.c.0.s8 %v605
      %v607 = vlaneseq
      %v608 = vshrl.u32 %v607, 7
      %v609 = vsub.s32 %v606, %v608
      %v610 = vrot.slane %v582, %v609
      %v611 = vcombine.low %v589, %v603
      %v612 = vcombine.high %v589, %v603
      %v613 = vcombine.low %v596, %v610
      %v614 = vcombine.high %v596, %v610
      %v615 = vcombine.low %v284, %v325
      %v616 = vcombine.low %v358, %v391
      %v618 = vunpack.c.l.s4 1983009808
      %v619 = vunpack.c.0.s8 %v618
      %v620 = vlaneseq
      %v621 = vshrl.u32 %v620, 7
      %v622 = vsub.s32 %v619, %v621
      %v623 = vrot.slane %v615, %v622
      %v625 = vunpack.c.l.s4 1983009808
      %v626 = vunpack.c.0.s8 %v625
      %v627 = vlaneseq
      %v628 = vshrl.u32 %v627, 7
      %v629 = vsub.s32 %v626, %v628
      %v630 = vrot.slane %v616, %v629
      %v631 = vcombine.low %v623, %v630
      %v785 = vunpack.c.l.b16 %v392
      %v786 = vunpack.c.l.b16 %v393
      %v787 = vunpack.c.l.b16 %v394
      %v788 = vunpack.c.l.b16 %v395
      %v789 = vunpack.c.l.b16 %v396
      %v790 = vunpack.c.l.b16 %v397
      %v791 = vunpack.c.l.b16 %v398
      %v792 = vunpack.c.l.b16 %v399
      %v793 = vunpack.c.l.b16 %v400
      %v794 = vunpack.c.l.b16 %v401
      %v795 = vunpack.c.l.b16 %v402
      %v796 = vunpack.c.l.b16 %v403
      %v797 = vunpack.c.l.b16 %v404
      %v798 = vunpack.c.l.b16 %v405
      %v799 = vunpack.c.l.b16 %v406
      %v800 = vunpack.c.l.b16 %v407
      %v801 = vunpack.c.l.b16 %v408
      %v802 = vunpack.c.l.b16 %v409
      %v803 = vunpack.c.l.b16 %v410
      %v804 = vunpack.c.l.b16 %v411
      %v805 = vunpack.c.l.b16 %v412
      %v806 = vunpack.c.l.b16 %v413
      %v807 = vunpack.c.l.b16 %v414
      %v808 = vunpack.c.l.b16 %v415
      %v809 = vunpack.c.l.b16 %v416
      %v810 = vunpack.c.l.b16 %v417
      %v811 = vunpack.c.l.b16 %v418
      %v812 = vunpack.c.l.b16 %v419
      %v813 = vunpack.c.l.b16 %v420
      %v814 = vunpack.c.l.b16 %v421
      %v815 = vunpack.c.l.b16 %v422
      %v816 = vunpack.c.l.b16 %v423
      %v817 = vunpack.c.l.b16 %v424
      %v818 = vunpack.c.l.b16 %v425
      %v819 = vunpack.c.l.b16 %v426
      %v820 = vunpack.c.l.b16 %v427
      %v821 = vunpack.c.l.b16 %v428
      %v822 = vunpack.c.l.b16 %v429
      %v823 = vunpack.c.l.b16 %v430
      %v824 = vunpack.c.l.b16 %v431
      %v825 = vunpack.c.l.b16 %v432
      %v826 = vunpack.c.l.b16 %v433
      %v827 = vunpack.c.l.b16 %v434
      %v828 = vunpack.c.l.b16 %v435
      %v829 = vunpack.c.l.b16 %v436
      %v830 = vunpack.c.l.b16 %v437
      %v831 = vunpack.c.l.b16 %v438
      %v832 = vunpack.c.l.b16 %v439
      %v833 = vunpack.c.l.b16 %v440
      %v834 = vunpack.c.l.b16 %v441
      %v835 = vunpack.c.l.b16 %v442
      %v836 = vunpack.c.l.b16 %v443
      %v837 = vunpack.c.l.b16 %v444
      %v838 = vunpack.c.l.b16 %v445
      %v839 = vunpack.c.l.b16 %v446
      %v840 = vunpack.c.l.b16 %v447
      %v841 = vunpack.c.l.b16 %v448
      %v842 = vunpack.c.l.b16 %v449
      %v843 = vunpack.c.l.b16 %v450
      %v844 = vunpack.c.l.b16 %v451
      %v845 = vunpack.c.l.b16 %v452
      %v846 = vunpack.c.l.b16 %v453
      %v847 = vunpack.c.l.b16 %v454
      %v848 = vunpack.c.l.b16 %v455
      %v849 = vunpack.c.l.b16 %v456
      %v850 = vunpack.c.l.b16 %v457
      %v851 = vunpack.c.l.b16 %v458
      %v852 = vunpack.c.l.b16 %v459
      %v853 = vunpack.c.l.b16 %v460
      %v854 = vunpack.c.l.b16 %v461
      %v855 = vunpack.c.l.b16 %v462
      %v856 = vunpack.c.l.b16 %v463
      %v857 = vunpack.c.l.b16 %v464
      %v858 = vunpack.c.l.b16 %v465
      %v859 = vunpack.c.l.b16 %v466
      %v860 = vunpack.c.l.b16 %v467
      %v861 = vunpack.c.l.b16 %v468
      %v862 = vunpack.c.l.b16 %v469
      %v863 = vunpack.c.l.b16 %v470
      %v864 = vunpack.c.l.b16 %v471
      %v865 = vunpack.c.l.b16 %v472
      %v866 = vunpack.c.l.b16 %v473
      %v867 = vunpack.c.l.b16 %v474
      %v868 = vunpack.c.l.b16 %v475
      %v869 = vunpack.c.l.b16 %v476
      %v870 = vunpack.c.l.b16 %v477
      %v871 = vunpack.c.l.b16 %v478
      %v872 = vunpack.c.l.b16 %v479
      %v873 = vunpack.c.l.b16 %v480
      %v874 = vunpack.c.l.b16 %v481
      %v875 = vunpack.c.l.b16 %v482
      %v876 = vunpack.c.l.b16 %v483
      %v877 = vunpack.c.l.b16 %v484
      %v878 = vunpack.c.l.b16 %v485
      %v879 = vunpack.c.l.b16 %v486
      %v880 = vunpack.c.l.b16 %v487
      %v881 = vunpack.c.l.b16 %v488
      %v882 = vunpack.c.l.b16 %v489
      %v883 = vunpack.c.l.b16 %v490
      %v884 = vunpack.c.l.b16 %v491
      %v885 = vunpack.c.l.b16 %v492
      %v886 = vunpack.c.l.b16 %v493
      %v887 = vunpack.c.l.b16 %v494
      %v888 = vunpack.c.l.b16 %v495
      %v889 = vunpack.c.l.b16 %v496
      %v890 = vunpack.c.l.b16 %v497
      %v891 = vunpack.c.l.b16 %v498
      %v892 = vunpack.c.l.b16 %v499
      %v893 = vunpack.c.l.b16 %v500
      %v894 = vunpack.c.l.b16 %v501
      %v895 = vunpack.c.l.b16 %v502
      %v896 = vunpack.c.l.b16 %v503
      %v897 = vunpack.c.l.b16 %v504
      %v898 = vunpack.c.l.b16 %v505
      %v899 = vunpack.c.l.b16 %v506
      %v900 = vunpack.c.l.b16 %v507
      %v901 = vunpack.c.l.b16 %v508
      %v902 = vunpack.c.l.b16 %v509
      %v903 = vunpack.c.l.b16 %v510
      %v904 = vunpack.c.l.b16 %v511
      %v905 = vunpack.c.l.b16 %v512
      %v906 = vunpack.c.l.b16 %v513
      %v907 = vunpack.c.l.b16 %v514
      %v908 = vunpack.c.l.b16 %v515
      %v909 = vunpack.c.l.b16 %v516
      %v910 = vunpack.c.l.b16 %v517
      %v911 = vunpack.c.l.b16 %v518
      %v912 = vunpack.c.l.b16 %v519
      %v913 = vunpack.c.l.b16 %v520
      %v914 = vunpack.c.l.b16 %v521
      %v915 = vunpack.c.l.b16 %v522
      %v916 = vunpack.c.l.b16 %v523
      %v917 = vunpack.c.l.b16 %v524
      %v918 = vunpack.c.l.b16 %v525
      %v919 = vunpack.c.l.b16 %v526
      %v920 = vunpack.c.l.b16 %v527
      %v921 = vunpack.c.l.b16 %v528
      %v922 = vunpack.c.l.b16 %v529
      %v923 = vunpack.c.l.b16 %v530
      %v924 = vunpack.c.l.b16 %v531
      %v925 = vunpack.c.l.b16 %v532
      %v926 = vunpack.c.l.b16 %v533
      %v927 = vunpack.c.l.b16 %v534
      %v928 = vunpack.c.l.b16 %v535
      %v929 = vpack.c.b16 %v786, %v785
      %v930 = vpack.c.b16 %v788, %v787
      %v931 = vpack.c.b16 %v790, %v789
      %v932 = vpack.c.b16 %v792, %v791
      %v933 = vpack.c.b16 %v794, %v793
      %v934 = vpack.c.b16 %v796, %v795
      %v935 = vpack.c.b16 %v798, %v797
      %v936 = vpack.c.b16 %v800, %v799
      %v937 = vpack.c.b16 %v802, %v801
      %v938 = vpack.c.b16 %v804, %v803
      %v939 = vpack.c.b16 %v806, %v805
      %v940 = vpack.c.b16 %v808, %v807
      %v941 = vpack.c.b16 %v810, %v809
      %v942 = vpack.c.b16 %v812, %v811
      %v943 = vpack.c.b16 %v814, %v813
      %v944 = vpack.c.b16 %v816, %v815
      %v945 = vpack.c.b16 %v818, %v817
      %v946 = vpack.c.b16 %v820, %v819
      %v947 = vpack.c.b16 %v822, %v821
      %v948 = vpack.c.b16 %v824, %v823
      %v949 = vpack.c.b16 %v826, %v825
      %v950 = vpack.c.b16 %v828, %v827
      %v951 = vpack.c.b16 %v830, %v829
      %v952 = vpack.c.b16 %v832, %v831
      %v953 = vpack.c.b16 %v834, %v833
      %v954 = vpack.c.b16 %v836, %v835
      %v955 = vpack.c.b16 %v838, %v837
      %v956 = vpack.c.b16 %v840, %v839
      %v957 = vpack.c.b16 %v842, %v841
      %v958 = vpack.c.b16 %v844, %v843
      %v959 = vpack.c.b16 %v846, %v845
      %v960 = vpack.c.b16 %v848, %v847
      %v961 = vpack.c.b16 %v850, %v849
      %v962 = vpack.c.b16 %v852, %v851
      %v963 = vpack.c.b16 %v854, %v853
      %v964 = vpack.c.b16 %v856, %v855
      %v965 = vpack.c.b16 %v858, %v857
      %v966 = vpack.c.b16 %v860, %v859
      %v967 = vpack.c.b16 %v862, %v861
      %v968 = vpack.c.b16 %v864, %v863
      %v969 = vpack.c.b16 %v866, %v865
      %v970 = vpack.c.b16 %v868, %v867
      %v971 = vpack.c.b16 %v870, %v869
      %v972 = vpack.c.b16 %v872, %v871
      %v973 = vpack.c.b16 %v874, %v873
      %v974 = vpack.c.b16 %v876, %v875
      %v975 = vpack.c.b16 %v878, %v877
      %v976 = vpack.c.b16 %v880, %v879
      %v977 = vpack.c.b16 %v882, %v881
      %v978 = vpack.c.b16 %v884, %v883
      %v979 = vpack.c.b16 %v886, %v885
      %v980 = vpack.c.b16 %v888, %v887
      %v981 = vpack.c.b16 %v890, %v889
      %v982 = vpack.c.b16 %v892, %v891
      %v983 = vpack.c.b16 %v894, %v893
      %v984 = vpack.c.b16 %v896, %v895
      %v985 = vpack.c.b16 %v898, %v897
      %v986 = vpack.c.b16 %v900, %v899
      %v987 = vpack.c.b16 %v902, %v901
      %v988 = vpack.c.b16 %v904, %v903
      %v989 = vpack.c.b16 %v906, %v905
      %v990 = vpack.c.b16 %v908, %v907
      %v991 = vpack.c.b16 %v910, %v909
      %v992 = vpack.c.b16 %v912, %v911
      %v993 = vpack.c.b16 %v914, %v913
      %v994 = vpack.c.b16 %v916, %v915
      %v995 = vpack.c.b16 %v918, %v917
      %v996 = vpack.c.b16 %v920, %v919
      %v997 = vpack.c.b16 %v922, %v921
      %v998 = vpack.c.b16 %v924, %v923
      %v999 = vpack.c.b16 %v926, %v925
      %v1000 = vpack.c.b16 %v928, %v927
      %1073 = vmatprep.subr.bf16.mxu0 0
      %1074 = vmatpush1.bf16.msra.mxu0 %v929
      %1075 = vmatprep.subr.bf16.mxu0 0
      %1076 = vmatpush1.bf16.msra.mxu0 %v930
      %1077 = vmatprep.subr.bf16.mxu0 0
      %1078 = vmatpush1.bf16.msra.mxu0 %v931
      %1079 = vmatprep.subr.bf16.mxu0 0
      %1080 = vmatpush1.bf16.msra.mxu0 %v932
      %1081 = vmatprep.subr.bf16.mxu0 0
      %1082 = vmatpush1.bf16.msra.mxu0 %v933
      %1083 = vmatprep.subr.bf16.mxu0 0
      %1084 = vmatpush1.bf16.msra.mxu0 %v934
      %1085 = vmatprep.subr.bf16.mxu0 0
      %1086 = vmatpush1.bf16.msra.mxu0 %v935
      %1087 = vmatprep.subr.bf16.mxu0 0
      %1088 = vmatpush1.bf16.msra.mxu0 %v936
      %1089 = vmatprep.subr.bf16.mxu0 0
      %1090 = vmatpush1.bf16.msra.mxu0 %v937
      %1091 = vmatprep.subr.bf16.mxu0 0
      %1092 = vmatpush1.bf16.msra.mxu0 %v938
      %1093 = vmatprep.subr.bf16.mxu0 0
      %1094 = vmatpush1.bf16.msra.mxu0 %v939
      %1095 = vmatprep.subr.bf16.mxu0 0
      %1096 = vmatpush1.bf16.msra.mxu0 %v940
      %1097 = vmatprep.subr.bf16.mxu0 0
      %1098 = vmatpush1.bf16.msra.mxu0 %v941
      %1099 = vmatprep.subr.bf16.mxu0 0
      %1100 = vmatpush1.bf16.msra.mxu0 %v942
      %1101 = vmatprep.subr.bf16.mxu0 0
      %1102 = vmatpush1.bf16.msra.mxu0 %v943
      %1103 = vmatprep.subr.bf16.mxu0 0
      %1104 = vmatpush1.bf16.msra.mxu0 %v944
      %1105 = vmatprep.mubr.bf16.mxu0 %v576
      %1106 = vmatmul.mubr.bf16.gmra.mrb[0].mxu0 %v575
      %v1107 = vpop.f32.mrb[0].mxu0
      %v1108 = vadd.f32 %v541, %v1107
      %v1109 = vpop.f32.mrb[0].mxu0
      %v1110 = vpop.f32.mrb[0].mxu0
      %v1111 = vadd.f32 %v541, %v1110
      %v1112 = vpop.f32.mrb[0].mxu0
      %1113 = vdwg.mxu0
      %1114 = vmatprep.subr.bf16.mxu0 0
      %1115 = vmatpush1.bf16.msra.mxu0 %v945
      %1116 = vmatprep.subr.bf16.mxu0 0
      %1117 = vmatpush1.bf16.msra.mxu0 %v946
      %1118 = vmatprep.subr.bf16.mxu0 0
      %1119 = vmatpush1.bf16.msra.mxu0 %v947
      %1120 = vmatprep.subr.bf16.mxu0 0
      %1121 = vmatpush1.bf16.msra.mxu0 %v948
      %1122 = vmatprep.subr.bf16.mxu0 0
      %1123 = vmatpush1.bf16.msra.mxu0 %v949
      %1124 = vmatprep.subr.bf16.mxu0 0
      %1125 = vmatpush1.bf16.msra.mxu0 %v950
      %1126 = vmatprep.subr.bf16.mxu0 0
      %1127 = vmatpush1.bf16.msra.mxu0 %v951
      %1128 = vmatprep.subr.bf16.mxu0 0
      %1129 = vmatpush1.bf16.msra.mxu0 %v952
      %1130 = vmatprep.subr.bf16.mxu0 0
      %1131 = vmatpush1.bf16.msra.mxu0 %v953
      %1132 = vmatprep.subr.bf16.mxu0 0
      %1133 = vmatpush1.bf16.msra.mxu0 %v954
      %1134 = vmatprep.subr.bf16.mxu0 0
      %1135 = vmatpush1.bf16.msra.mxu0 %v955
      %1136 = vmatprep.subr.bf16.mxu0 0
      %1137 = vmatpush1.bf16.msra.mxu0 %v956
      %1138 = vmatprep.subr.bf16.mxu0 0
      %1139 = vmatpush1.bf16.msra.mxu0 %v957
      %1140 = vmatprep.subr.bf16.mxu0 0
      %1141 = vmatpush1.bf16.msra.mxu0 %v958
      %1142 = vmatprep.subr.bf16.mxu0 0
      %1143 = vmatpush1.bf16.msra.mxu0 %v959
      %1144 = vmatprep.subr.bf16.mxu0 0
      %1145 = vmatpush1.bf16.msra.mxu0 %v960
      %1146 = vmatprep.mubr.bf16.mxu0 %v578
      %1147 = vmatmul.mubr.bf16.gmra.mrb[0].mxu0 %v577
      %v1148 = vpop.f32.mrb[0].mxu0
      %v1149 = vadd.f32 %v1108, %v1148
      %v1150 = vpop.f32.mrb[0].mxu0
      %v1151 = vpop.f32.mrb[0].mxu0
      %v1152 = vadd.f32 %v1111, %v1151
      %v1153 = vpop.f32.mrb[0].mxu0
      %1154 = vdwg.mxu0
      %1155 = vmatprep.subr.bf16.mxu0 0
      %1156 = vmatpush1.bf16.msra.mxu0 %v961
      %1157 = vmatprep.subr.bf16.mxu0 0
      %1158 = vmatpush1.bf16.msra.mxu0 %v962
      %1159 = vmatprep.subr.bf16.mxu0 0
      %1160 = vmatpush1.bf16.msra.mxu0 %v963
      %1161 = vmatprep.subr.bf16.mxu0 0
      %1162 = vmatpush1.bf16.msra.mxu0 %v964
      %1163 = vmatprep.subr.bf16.mxu0 0
      %1164 = vmatpush1.bf16.msra.mxu0 %v965
      %1165 = vmatprep.subr.bf16.mxu0 0
      %1166 = vmatpush1.bf16.msra.mxu0 %v966
      %1167 = vmatprep.subr.bf16.mxu0 0
      %1168 = vmatpush1.bf16.msra.mxu0 %v967
      %1169 = vmatprep.subr.bf16.mxu0 0
      %1170 = vmatpush1.bf16.msra.mxu0 %v968
      %1171 = vmatprep.subr.bf16.mxu0 0
      %1172 = vmatpush1.bf16.msra.mxu0 %v969
      %1173 = vmatprep.subr.bf16.mxu0 0
      %1174 = vmatpush1.bf16.msra.mxu0 %v970
      %1175 = vmatprep.subr.bf16.mxu0 0
      %1176 = vmatpush1.bf16.msra.mxu0 %v971
      %1177 = vmatprep.subr.bf16.mxu0 0
      %1178 = vmatpush1.bf16.msra.mxu0 %v972
      %1179 = vmatprep.subr.bf16.mxu0 0
      %1180 = vmatpush1.bf16.msra.mxu0 %v973
      %1181 = vmatprep.subr.bf16.mxu0 0
      %1182 = vmatpush1.bf16.msra.mxu0 %v974
      %1183 = vmatprep.subr.bf16.mxu0 0
      %1184 = vmatpush1.bf16.msra.mxu0 %v975
      %1185 = vmatprep.subr.bf16.mxu0 0
      %1186 = vmatpush1.bf16.msra.mxu0 %v976
      %1187 = vmatprep.mubr.bf16.mxu0 %v612
      %1188 = vmatmul.mubr.bf16.gmra.mrb[0].mxu0 %v611
      %v1189 = vpop.f32.mrb[0].mxu0
      %v1190 = vadd.f32 %v1149, %v1189
      %v1191 = vpop.f32.mrb[0].mxu0
      %v1192 = vpop.f32.mrb[0].mxu0
      %v1193 = vadd.f32 %v1152, %v1192
      %v1194 = vpop.f32.mrb[0].mxu0
      %1195 = vdwg.mxu0
      %1196 = vmatprep.subr.bf16.mxu0 0
      %1197 = vmatpush1.bf16.msra.mxu0 %v977
      %1198 = vmatprep.subr.bf16.mxu0 0
      %1199 = vmatpush1.bf16.msra.mxu0 %v978
      %1200 = vmatprep.subr.bf16.mxu0 0
      %1201 = vmatpush1.bf16.msra.mxu0 %v979
      %1202 = vmatprep.subr.bf16.mxu0 0
      %1203 = vmatpush1.bf16.msra.mxu0 %v980
      %1204 = vmatprep.subr.bf16.mxu0 0
      %1205 = vmatpush1.bf16.msra.mxu0 %v981
      %1206 = vmatprep.subr.bf16.mxu0 0
      %1207 = vmatpush1.bf16.msra.mxu0 %v982
      %1208 = vmatprep.subr.bf16.mxu0 0
      %1209 = vmatpush1.bf16.msra.mxu0 %v983
      %1210 = vmatprep.subr.bf16.mxu0 0
      %1211 = vmatpush1.bf16.msra.mxu0 %v984
      %1212 = vmatprep.subr.bf16.mxu0 0
      %1213 = vmatpush1.bf16.msra.mxu0 %v985
      %1214 = vmatprep.subr.bf16.mxu0 0
      %1215 = vmatpush1.bf16.msra.mxu0 %v986
      %1216 = vmatprep.subr.bf16.mxu0 0
      %1217 = vmatpush1.bf16.msra.mxu0 %v987
      %1218 = vmatprep.subr.bf16.mxu0 0
      %1219 = vmatpush1.bf16.msra.mxu0 %v988
      %1220 = vmatprep.subr.bf16.mxu0 0
      %1221 = vmatpush1.bf16.msra.mxu0 %v989
      %1222 = vmatprep.subr.bf16.mxu0 0
      %1223 = vmatpush1.bf16.msra.mxu0 %v990
      %1224 = vmatprep.subr.bf16.mxu0 0
      %1225 = vmatpush1.bf16.msra.mxu0 %v991
      %1226 = vmatprep.subr.bf16.mxu0 0
      %1227 = vmatpush1.bf16.msra.mxu0 %v992
      %1228 = vmatprep.mubr.bf16.mxu0 %v614
      %1229 = vmatmul.mubr.bf16.gmra.mrb[0].mxu0 %v613
      %v1230 = vpop.f32.mrb[0].mxu0
      %v1231 = vadd.f32 %v1190, %v1230
      %v1232 = vpop.f32.mrb[0].mxu0
      %v1233 = vpop.f32.mrb[0].mxu0
      %v1234 = vadd.f32 %v1193, %v1233
      %v1235 = vpop.f32.mrb[0].mxu0
      %1236 = vdwg.mxu0
      %1237 = vmatprep.subr.bf16.mxu0 0
      %1238 = vmatpush1.bf16.msra.mxu0 %v993
      %1239 = vmatprep.subr.bf16.mxu0 0
      %1240 = vmatpush1.bf16.msra.mxu0 %v994
      %1241 = vmatprep.subr.bf16.mxu0 0
      %1242 = vmatpush1.bf16.msra.mxu0 %v995
      %1243 = vmatprep.subr.bf16.mxu0 0
      %1244 = vmatpush1.bf16.msra.mxu0 %v996
      %1245 = vmatprep.subr.bf16.mxu0 0
      %1246 = vmatpush1.bf16.msra.mxu0 %v997
      %1247 = vmatprep.subr.bf16.mxu0 0
      %1248 = vmatpush1.bf16.msra.mxu0 %v998
      %1249 = vmatprep.subr.bf16.mxu0 0
      %1250 = vmatpush1.bf16.msra.mxu0 %v999
      %1251 = vmatprep.subr.bf16.mxu0 0
      %1252 = vmatpush1.bf16.msra.mxu0 %v1000
      %1253 = vmatprep.subr.bf16.mxu0 0
      %1254 = vmatpush1.bf16.msra.mxu0 0
      %1255 = vmatprep.subr.bf16.mxu0 0
      %1256 = vmatpush1.bf16.msra.mxu0 0
      %1257 = vmatprep.subr.bf16.mxu0 0
      %1258 = vmatpush1.bf16.msra.mxu0 0
      %1259 = vmatprep.subr.bf16.mxu0 0
      %1260 = vmatpush1.bf16.msra.mxu0 0
      %1261 = vmatprep.subr.bf16.mxu0 0
      %1262 = vmatpush1.bf16.msra.mxu0 0
      %1263 = vmatprep.subr.bf16.mxu0 0
      %1264 = vmatpush1.bf16.msra.mxu0 0
      %1265 = vmatprep.subr.bf16.mxu0 0
      %1266 = vmatpush1.bf16.msra.mxu0 0
      %1267 = vmatprep.subr.bf16.mxu0 0
      %1268 = vmatpush1.bf16.msra.mxu0 0
      %1269 = vmatprep.mubr.bf16.mxu0 0
      %1270 = vmatmul.mubr.bf16.gmra.mrb[0].mxu0 %v631
      %v1271 = vpop.f32.mrb[0].mxu0
      %v1272 = vadd.f32 %v1231, %v1271
      %v1273 = vpop.f32.mrb[0].mxu0
      %v1274 = vpop.f32.mrb[0].mxu0
      %v1275 = vadd.f32 %v1234, %v1274
      %v1276 = vpop.f32.mrb[0].mxu0
      %1277 = vdwg.mxu0
      %v1280 = vcombine.high %v1272, %v1272
      %v1281 = vcombine.high %v1275, %v1275
      %1284 = vst [vmem:[%s170] sm:$0xf] %v1272
      %1285 = vst [vmem:[%s170 + $0x4] sm:$0xf] %v1280
      %1286 = vst [vmem:[%s170 + $0x8] sm:$0xf] %v1275
      %1287 = vst [vmem:[%s170 + $0xc] sm:$0xf] %v1281
      %p1288 = scmp.lt.s32.totalorder %s14, 1
      %s1289 = scalar_select %p1288, %s14, 1
      %s1290 = smul.addr %s1289, 4
      %s1291 = smul.addr %s1290, 4
      %s1292 = scalar_lea.vmem %s3, %s1291
      // Predicated region
      $region33: #{scconv_forward.2} parent=31 // pred_check
        %p1293 = pneg %p100
      $region34: #{scconv_forward.2} parent=31 // pred_check_branch
        %1295 = sbr.rel (%p1293) target = $region36
      $region35: #{scconv_forward.2} parent=31 // pred_region
        _
      $region36: #{scconv_forward.2} parent=31 // pred_fallthru
        _
    $region32: #{scconv_forward.2} parent=5 // pred_fallthru
      _
    %p1296 = scmp.le.s32.totalorder 2, %s9
    // Predicated region
    $region37: #{scconv_forward.2} parent=5 // pred_check
      %p1297 = pneg %p1296
    $region38: #{scconv_forward.2} parent=5 // pred_check_branch
      %1299 = sbr.rel (%p1297) target = $region40
    $region39: #{scconv_forward.2} parent=5 // pred_region
      %s1300 = ssub.s32 %s9, 2
      // Predicated region
      $region41: #{scconv_forward.2} parent=39 // pred_check
        %p1301 = pneg %p106
      $region42: #{scconv_forward.2} parent=39 // pred_check_branch
        %1303 = sbr.rel (%p1301) target = $region44
      $region43: #{scconv_forward.2} parent=39 // pred_region
        %p1304 = scmp.lt.s32.totalorder %s15, 1
        %s1305 = scalar_select %p1304, %s15, 1
        %s1306 = smul.addr %s1305, 4
        %s1307 = smul.addr %s1306, 4
        %s1308 = scalar_lea.vmem %s3, %s1307
      $region44: #{scconv_forward.2} parent=39 // pred_fallthru
        _
    $region40: #{scconv_forward.2} parent=5 // pred_fallthru
      _
  $region6: #{scconv_forward.2} parent=0 // loop_footer
    %s13 = sadd.s32 1, %s9
  $region7: #{scconv_forward.2} parent=0 // loop_footer_branch
    %8 = sbr.rel target = $region3
  $region8: #{scconv_forward.2} parent=0 // loop_exit
    _

// kernel: scconv_forward.3
$region0: #{scconv_forward.3}
  #allocation0 [shape = 'u32[]', space=smem, size = 0x4, offset = 0x4, fixed_abs, tag = 'smem constant byte address 0x4 - core index']
  #allocation1 [shape = 'u32[144,128]{1,0:T(1,128)}', space=vmem, size = 0x12000, scoped, tag = 'internal scratch']
  #allocation2 [shape = 'bf16[18,18,128]{2,1,0:T(8,128)(2,1)}', space=vmem, size = 0x1b000, scoped, tag = 'scratch operand']
  %s0 = inlined_call_operand.vmem [shape: bf16[2,18,18,128], index: 0, kind: input, shape index: {}]
  %s1 = inlined_call_operand.vmem [shape: f32[2,4,16,128], index: 1, kind: input, shape index: {}]
  %s2 = inlined_call_operand.vmem [shape: bf16[1152,128], index: 2, kind: input, shape index: {}]
  %s3 = inlined_call_operand.vmem [shape: f32[1,128], index: 3, kind: input, shape index: {}]
  %s4 = inlined_call_operand.vmem [shape: bf16[1152,128], index: 4, kind: input, shape index: {}]
  %s5 = inlined_call_operand.vmem [shape: f32[1,128], index: 5, kind: input, shape index: {}]
  %s6 = inlined_call_operand.vmem [shape: f32[2,16,16,128], index: 6, kind: output, shape index: {}]
  %s7 = sld [smem:[#allocation0]]
  $region57: #{scconv_forward.3} parent=0
    _
  %s9 = ssub.s32 1, %s7
  %s10 = scalar_select 0, %s9, %s7
  loop: start=0, step=1, limit=4
  $region2: #{scconv_forward.3} parent=0 // loop_pre_header
    _
  $region3: #{scconv_forward.3} parent=0 // loop_header
    %s12 = sphi 0, %s16
    %p13 = scmp.ge.s32.totalorder %s12, 4
    %s22 = sphi 0, %s24
    %s25 = sphi 0, %s22
    %s26 = sphi 0, %s25
    %s42 = sphi 0, %s26
    %s48 = sphi 0, %s50
    %s51 = sphi 0, %s48
    %s52 = sphi 0, %s51
    %s68 = sphi 0, %s52
    %s72 = sphi 0, %s72
    %s74 = sphi 0, %s72
    %s75 = sphi 0, %s74
    %s89 = sphi 0, %s75
    %s93 = sphi 0, %s93
    %s95 = sphi 0, %s93
    %s96 = sphi 0, %s95
    %s110 = sphi 0, %s96
    %s114 = sphi 0, %s114
    %s116 = sphi 0, %s114
    %s117 = sphi 0, %s116
    %s131 = sphi 0, %s117
    %s135 = sphi 0, %s135
    %s137 = sphi 0, %s135
    %s138 = sphi 0, %s137
    %s152 = sphi 0, %s138
    %s158 = sphi 0, %s160
    %s161 = sphi 0, %s158
    %s162 = sphi 0, %s161
    %s178 = sphi 0, %s162
  $region4: #{scconv_forward.3} parent=0 // loop_header_branch
    %15 = sbr.rel (%p13) target = $region8
  $region5: #{scconv_forward.3} parent=0 // loop_body
    %s17 = ssub.s32 %s12, 1
    %s18 = ssub.s32 %s12, 2
    %s19 = sadd.s32 %s12, 1
    %s20 = ssub.s32 %s12, %s19
    %p21 = scmp.eq.s32.totalorder %s20, 0
    %s23 = sadd.s32 %s22, 1
    %s24 = scalar_select %p21, %s22, %s23
    %p27 = pneg %p21
    %p28 = scmp.eq.s32.totalorder %s12, 1
    %p29 = por %p27, %p28
    %p30 = scmp.ne.s32.totalorder %s22, %s25
    %p31 = scmp.eq.s32.totalorder %s12, 0
    %p32 = por %p30, %p31
    %p33 = scmp.ne.s32.totalorder %s22, %s25
    %p34 = scmp.eq.s32.totalorder %s17, 1
    %p35 = por %p33, %p34
    %p36 = scmp.ne.s32.totalorder %s25, %s26
    %p37 = scmp.eq.s32.totalorder %s17, 0
    %p38 = por %p36, %p37
    %p39 = scmp.ne.s32.totalorder %s25, %s26
    %p40 = scmp.eq.s32.totalorder %s18, 1
    %p41 = por %p39, %p40
    %p43 = scmp.ne.s32.totalorder %s26, %s42
    %p44 = scmp.eq.s32.totalorder %s18, 0
    %p45 = por %p43, %p44
    %s46 = ssub.s32 %s12, %s19
    %p47 = scmp.eq.s32.totalorder %s46, 0
    %s49 = sadd.s32 %s48, 1
    %s50 = scalar_select %p47, %s48, %s49
    %p53 = pneg %p47
    %p54 = scmp.eq.s32.totalorder %s12, 1
    %p55 = por %p53, %p54
    %p56 = scmp.ne.s32.totalorder %s48, %s51
    %p57 = scmp.eq.s32.totalorder %s12, 0
    %p58 = por %p56, %p57
    %p59 = scmp.ne.s32.totalorder %s48, %s51
    %p60 = scmp.eq.s32.totalorder %s17, 1
    %p61 = por %p59, %p60
    %p62 = scmp.ne.s32.totalorder %s51, %s52
    %p63 = scmp.eq.s32.totalorder %s17, 0
    %p64 = por %p62, %p63
    %p65 = scmp.ne.s32.totalorder %s51, %s52
    %p66 = scmp.eq.s32.totalorder %s18, 1
    %p67 = por %p65, %p66
    %p69 = scmp.ne.s32.totalorder %s52, %s68
    %p70 = scmp.eq.s32.totalorder %s18, 0
    %p71 = por %p69, %p70
    %s73 = sadd.s32 %s72, 1
    %p76 = scmp.eq.s32.totalorder %s12, 1
    %p77 = scmp.ne.s32.totalorder %s72, %s74
    %p78 = scmp.eq.s32.totalorder %s12, 0
    %p79 = por %p77, %p78
    %p80 = scmp.ne.s32.totalorder %s72, %s74
    %p81 = scmp.eq.s32.totalorder %s17, 1
    %p82 = por %p80, %p81
    %p83 = scmp.ne.s32.totalorder %s74, %s75
    %p84 = scmp.eq.s32.totalorder %s17, 0
    %p85 = por %p83, %p84
    %p86 = scmp.ne.s32.totalorder %s74, %s75
    %p87 = scmp.eq.s32.totalorder %s18, 1
    %p88 = por %p86, %p87
    %p90 = scmp.ne.s32.totalorder %s75, %s89
    %p91 = scmp.eq.s32.totalorder %s18, 0
    %p92 = por %p90, %p91
    %s94 = sadd.s32 %s93, 1
    %p97 = scmp.eq.s32.totalorder %s12, 1
    %p98 = scmp.ne.s32.totalorder %s93, %s95
    %p99 = scmp.eq.s32.totalorder %s12, 0
    %p100 = por %p98, %p99
    %p101 = scmp.ne.s32.totalorder %s93, %s95
    %p102 = scmp.eq.s32.totalorder %s17, 1
    %p103 = por %p101, %p102
    %p104 = scmp.ne.s32.totalorder %s95, %s96
    %p105 = scmp.eq.s32.totalorder %s17, 0
    %p106 = por %p104, %p105
    %p107 = scmp.ne.s32.totalorder %s95, %s96
    %p108 = scmp.eq.s32.totalorder %s18, 1
    %p109 = por %p107, %p108
    %p111 = scmp.ne.s32.totalorder %s96, %s110
    %p112 = scmp.eq.s32.totalorder %s18, 0
    %p113 = por %p111, %p112
    %s115 = sadd.s32 %s114, 1
    %p118 = scmp.eq.s32.totalorder %s12, 1
    %p119 = scmp.ne.s32.totalorder %s114, %s116
    %p120 = scmp.eq.s32.totalorder %s12, 0
    %p121 = por %p119, %p120
    %p122 = scmp.ne.s32.totalorder %s114, %s116
    %p123 = scmp.eq.s32.totalorder %s17, 1
    %p124 = por %p122, %p123
    %p125 = scmp.ne.s32.totalorder %s116, %s117
    %p126 = scmp.eq.s32.totalorder %s17, 0
    %p127 = por %p125, %p126
    %p128 = scmp.ne.s32.totalorder %s116, %s117
    %p129 = scmp.eq.s32.totalorder %s18, 1
    %p130 = por %p128, %p129
    %p132 = scmp.ne.s32.totalorder %s117, %s131
    %p133 = scmp.eq.s32.totalorder %s18, 0
    %p134 = por %p132, %p133
    %s136 = sadd.s32 %s135, 1
    %p139 = scmp.eq.s32.totalorder %s12, 1
    %p140 = scmp.ne.s32.totalorder %s135, %s137
    %p141 = scmp.eq.s32.totalorder %s12, 0
    %p142 = por %p140, %p141
    %p143 = scmp.ne.s32.totalorder %s135, %s137
    %p144 = scmp.eq.s32.totalorder %s17, 1
    %p145 = por %p143, %p144
    %p146 = scmp.ne.s32.totalorder %s137, %s138
    %p147 = scmp.eq.s32.totalorder %s17, 0
    %p148 = por %p146, %p147
    %p149 = scmp.ne.s32.totalorder %s137, %s138
    %p150 = scmp.eq.s32.totalorder %s18, 1
    %p151 = por %p149, %p150
    %p153 = scmp.ne.s32.totalorder %s138, %s152
    %p154 = scmp.eq.s32.totalorder %s18, 0
    %p155 = por %p153, %p154
    %s156 = ssub.s32 %s12, %s19
    %p157 = scmp.eq.s32.totalorder %s156, 0
    %s159 = sadd.s32 %s158, 1
    %s160 = scalar_select %p157, %s158, %s159
    %p163 = pneg %p157
    %p164 = scmp.eq.s32.totalorder %s12, 1
    %p165 = por %p163, %p164
    %p166 = scmp.ne.s32.totalorder %s158, %s161
    %p167 = scmp.eq.s32.totalorder %s12, 0
    %p168 = por %p166, %p167
    %p169 = scmp.ne.s32.totalorder %s158, %s161
    %p170 = scmp.eq.s32.totalorder %s17, 1
    %p171 = por %p169, %p170
    %p172 = scmp.ne.s32.totalorder %s161, %s162
    %p173 = scmp.eq.s32.totalorder %s17, 0
    %p174 = por %p172, %p173
    %p175 = scmp.ne.s32.totalorder %s161, %s162
    %p176 = scmp.eq.s32.totalorder %s18, 1
    %p177 = por %p175, %p176
    %p179 = scmp.ne.s32.totalorder %s162, %s178
    %p180 = scmp.eq.s32.totalorder %s18, 0
    %p181 = por %p179, %p180
    %p182 = scmp.le.s32.totalorder 1, %s12
    %p183 = scmp.lt.s32.totalorder %s12, 3
    %p184 = pnand %p182, %p183
    %p185 = pneg %p184
    // Predicated region
    $region9: #{scconv_forward.3} parent=5 // pred_check
      _
    $region10: #{scconv_forward.3} parent=5 // pred_check_branch
      %187 = sbr.rel (%p184) target = $region12
    $region11: #{scconv_forward.3} parent=5 // pred_region
      %s188 = ssub.s32 %s12, 1
      // Predicated region
      $region13: #{scconv_forward.3} parent=11 // pred_check
        %p189 = pneg %p85
      $region14: #{scconv_forward.3} parent=11 // pred_check_branch
        %191 = sbr.rel (%p189) target = $region16
      $region15: #{scconv_forward.3} parent=11 // pred_region
        _
      $region16: #{scconv_forward.3} parent=11 // pred_fallthru
        _
      // Predicated region
      $region17: #{scconv_forward.3} parent=11 // pred_check
        %p192 = pneg %p106
      $region18: #{scconv_forward.3} parent=11 // pred_check_branch
        %194 = sbr.rel (%p192) target = $region20
      $region19: #{scconv_forward.3} parent=11 // pred_region
        _
      $region20: #{scconv_forward.3} parent=11 // pred_fallthru
        _
      // Predicated region
      $region21: #{scconv_forward.3} parent=11 // pred_check
        %p195 = pneg %p127
      $region22: #{scconv_forward.3} parent=11 // pred_check_branch
        %197 = sbr.rel (%p195) target = $region24
      $region23: #{scconv_forward.3} parent=11 // pred_region
        _
      $region24: #{scconv_forward.3} parent=11 // pred_fallthru
        _
      // Predicated region
      $region25: #{scconv_forward.3} parent=11 // pred_check
        %p198 = pneg %p148
      $region26: #{scconv_forward.3} parent=11 // pred_check_branch
        %200 = sbr.rel (%p198) target = $region28
      $region27: #{scconv_forward.3} parent=11 // pred_region
        _
      $region28: #{scconv_forward.3} parent=11 // pred_fallthru
        _
    $region12: #{scconv_forward.3} parent=5 // pred_fallthru
      _
    %p201 = scmp.lt.s32.totalorder %s12, 2
    // Predicated region
    $region29: #{scconv_forward.3} parent=5 // pred_check
      %p202 = pneg %p201
    $region30: #{scconv_forward.3} parent=5 // pred_check_branch
      %204 = sbr.rel (%p202) target = $region32
    $region31: #{scconv_forward.3} parent=5 // pred_region
      // Predicated region
      $region33: #{scconv_forward.3} parent=31 // pred_check
        %p205 = pneg %p32
      $region34: #{scconv_forward.3} parent=31 // pred_check_branch
        %207 = sbr.rel (%p205) target = $region36
      $region35: #{scconv_forward.3} parent=31 // pred_region
        %p208 = scmp.lt.s32.totalorder %s12, 1
        %s209 = scalar_select %p208, %s12, 1
        %s210 = smul.addr %s209, 54
        %s211 = smul.addr %s210, 4
        %s212 = scalar_lea.vmem %s0, %s211
      $region36: #{scconv_forward.3} parent=31 // pred_fallthru
        _
      // Predicated region
      $region37: #{scconv_forward.3} parent=31 // pred_check
        %p213 = pneg %p58
      $region38: #{scconv_forward.3} parent=31 // pred_check_branch
        %215 = sbr.rel (%p213) target = $region40
      $region39: #{scconv_forward.3} parent=31 // pred_region
        %p216 = scmp.lt.s32.totalorder %s12, 1
        %s217 = scalar_select %p216, %s12, 1
        %s218 = smul.addr %s217, 8
        %s219 = smul.addr %s218, 8
        %s220 = scalar_lea.vmem %s1, %s219
      $region40: #{scconv_forward.3} parent=31 // pred_fallthru
        _
    $region32: #{scconv_forward.3} parent=5 // pred_fallthru
      _
    %p221 = scmp.le.s32.totalorder 1, %s12
    %p222 = scmp.lt.s32.totalorder %s12, 3
    %p223 = pnand %p221, %p222
    %p224 = pneg %p223
    // Predicated region
    $region41: #{scconv_forward.3} parent=5 // pred_check
      _
    $region42: #{scconv_forward.3} parent=5 // pred_check_branch
      %226 = sbr.rel (%p223) target = $region44
    $region43: #{scconv_forward.3} parent=5 // pred_region
      %s227 = ssub.s32 %s12, 1
      %p228 = scmp.lt.s32.totalorder %s17, 1
      %s229 = scalar_select %p228, %s17, 1
      %s230 = smul.addr %s229, 54
      %s231 = smul.addr %s230, 4
      %s232 = scalar_lea.vmem %s0, %s231
      %p233 = pneg %p38
      %p234 = pneg %p35
      %p235 = scmp.lt.s32.totalorder %s17, 1
      %s236 = scalar_select %p235, %s17, 1
      %s237 = smul.addr %s236, 8
      %s238 = smul.addr %s237, 8
      %s239 = scalar_lea.vmem %s1, %s238
      %p240 = pneg %p64
      %p241 = pneg %p61
      %p242 = pneg %p85
      %p243 = pneg %p82
      %p244 = pneg %p106
      %p245 = pneg %p103
      %p246 = pneg %p127
      %p247 = pneg %p124
      %p248 = pneg %p148
      %p249 = pneg %p145
      %p250 = pneg %p174
      %p251 = pneg %p171
      %p252 = scmp.lt.s32.totalorder %s17, 1
      %s253 = scalar_select %p252, %s17, 1
      %s254 = smul.addr %s253, 32
      %s255 = smul.addr %s254, 8
      %s256 = scalar_lea.vmem %s6, %s255
      %p257 = scmp.lt.s32.totalorder %s17, 1
      %s258 = scalar_select %p257, %s17, 1
      %s259 = smul.addr %s258, 54
      %s260 = smul.addr %s259, 4
      %s261 = scalar_lea.vmem %s0, %s260
      %p262 = scmp.lt.s32.totalorder %s17, 1
      %s263 = scalar_select %p262, %s17, 1
      %s264 = smul.addr %s263, 8
      %s265 = smul.addr %s264, 8
      %s266 = scalar_lea.vmem %s1, %s265
      %p267 = scmp.lt.s32.totalorder %s17, 1
      %s268 = scalar_select %p267, %s17, 1
      %s269 = smul.addr %s268, 32
      %s270 = smul.addr %s269, 8
      %s271 = scalar_lea.vmem %s6, %s270
      %v273 = vld [vmem:[%s261] sm:$0xf]
      %v274 = vld [vmem:[%s261 + $0x4] sm:$0xf]
      %v275 = vld [vmem:[%s261 + $0x8] sm:$0x1]
      %v276 = vld [vmem:[%s261 + $0xc] sm:$0xf]
      %v277 = vld [vmem:[%s261 + $0x10] sm:$0xf]
      %v278 = vld [vmem:[%s261 + $0x14] sm:$0x1]
      %v279 = vld [vmem:[%s261 + $0x18] sm:$0xf]
      %v280 = vld [vmem:[%s261 + $0x1c] sm:$0xf]
      %v281 = vld [vmem:[%s261 + $0x20] sm:$0x1]
      %v282 = vld [vmem:[%s261 + $0x24] sm:$0xf]
      %v283 = vld [vmem:[%s261 + $0x28] sm:$0xf]
      %v284 = vld [vmem:[%s261 + $0x2c] sm:$0x1]
      %v285 = vld [vmem:[%s261 + $0x30] sm:$0xf]
      %v286 = vld [vmem:[%s261 + $0x34] sm:$0xf]
      %v287 = vld [vmem:[%s261 + $0x38] sm:$0x1]
      %v288 = vld [vmem:[%s261 + $0x3c] sm:$0xf]
      %v289 = vld [vmem:[%s261 + $0x40] sm:$0xf]
      %v290 = vld [vmem:[%s261 + $0x44] sm:$0x1]
      %v291 = vld [vmem:[%s261 + $0x48] sm:$0xf]
      %v292 = vld [vmem:[%s261 + $0x4c] sm:$0xf]
      %v293 = vld [vmem:[%s261 + $0x50] sm:$0x1]
      %v294 = vld [vmem:[%s261 + $0x54] sm:$0xf]
      %v295 = vld [vmem:[%s261 + $0x58] sm:$0xf]
      %v296 = vld [vmem:[%s261 + $0x5c] sm:$0x1]
      %v297 = vld [vmem:[%s261 + $0x60] sm:$0xf]
      %v298 = vld [vmem:[%s261 + $0x64] sm:$0xf]
      %v299 = vld [vmem:[%s261 + $0x68] sm:$0x1]
      %v300 = vld [vmem:[%s261 + $0x6c] sm:$0xf]
      %v301 = vld [vmem:[%s261 + $0x70] sm:$0xf]
      %v302 = vld [vmem:[%s261 + $0x74] sm:$0x1]
      %v303 = vld [vmem:[%s261 + $0x78] sm:$0xf]
      %v304 = vld [vmem:[%s261 + $0x7c] sm:$0xf]
      %v305 = vld [vmem:[%s261 + $0x80] sm:$0x1]
      %v306 = vld [vmem:[%s261 + $0x84] sm:$0xf]
      %v307 = vld [vmem:[%s261 + $0x88] sm:$0xf]
      %v308 = vld [vmem:[%s261 + $0x8c] sm:$0x1]
      %v309 = vld [vmem:[%s261 + $0x90] sm:$0xf]
      %v310 = vld [vmem:[%s261 + $0x94] sm:$0xf]
      %v311 = vld [vmem:[%s261 + $0x98] sm:$0x1]
      %v312 = vld [vmem:[%s261 + $0x9c] sm:$0xf]
      %v313 = vld [vmem:[%s261 + $0xa0] sm:$0xf]
      %v314 = vld [vmem:[%s261 + $0xa4] sm:$0x1]
      %v315 = vld [vmem:[%s261 + $0xa8] sm:$0xf]
      %v316 = vld [vmem:[%s261 + $0xac] sm:$0xf]
      %v317 = vld [vmem:[%s261 + $0xb0] sm:$0x1]
      %v318 = vld [vmem:[%s261 + $0xb4] sm:$0xf]
      %v319 = vld [vmem:[%s261 + $0xb8] sm:$0xf]
      %v320 = vld [vmem:[%s261 + $0xbc] sm:$0x1]
      %v321 = vld [vmem:[%s261 + $0xc0] sm:$0xf]
      %v322 = vld [vmem:[%s261 + $0xc4] sm:$0xf]
      %v323 = vld [vmem:[%s261 + $0xc8] sm:$0x1]
      %v324 = vld [vmem:[%s261 + $0xcc] sm:$0xf]
      %v325 = vld [vmem:[%s261 + $0xd0] sm:$0xf]
      %v326 = vld [vmem:[%s261 + $0xd4] sm:$0x1]
      %v359 = vunpack.c.l.b16 %v273
      %v360 = vunpack.c.l.b16 %v274
      %v361 = vunpack.c.l.b16 %v276
      %v362 = vunpack.c.l.b16 %v277
      %v363 = vunpack.c.l.b16 %v279
      %v364 = vunpack.c.l.b16 %v280
      %v365 = vunpack.c.l.b16 %v282
      %v366 = vunpack.c.l.b16 %v283
      %v367 = vunpack.c.l.b16 %v285
      %v368 = vunpack.c.l.b16 %v286
      %v369 = vunpack.c.l.b16 %v288
      %v370 = vunpack.c.l.b16 %v289
      %v371 = vunpack.c.l.b16 %v291
      %v372 = vunpack.c.l.b16 %v292
      %v373 = vunpack.c.l.b16 %v294
      %v374 = vunpack.c.l.b16 %v295
      %v375 = vunpack.c.l.b16 %v297
      %v376 = vunpack.c.l.b16 %v298
      %v377 = vunpack.c.l.b16 %v300
      %v378 = vunpack.c.l.b16 %v301
      %v379 = vunpack.c.l.b16 %v303
      %v380 = vunpack.c.l.b16 %v304
      %v381 = vunpack.c.l.b16 %v306
      %v382 = vunpack.c.l.b16 %v307
      %v383 = vunpack.c.l.b16 %v309
      %v384 = vunpack.c.l.b16 %v310
      %v385 = vunpack.c.l.b16 %v312
      %v386 = vunpack.c.l.b16 %v313
      %v387 = vunpack.c.l.b16 %v315
      %v388 = vunpack.c.l.b16 %v316
      %v389 = vunpack.c.l.b16 %v318
      %v390 = vunpack.c.l.b16 %v319
      %v391 = vpack.c.b16 %v360, %v359
      %v392 = vpack.c.b16 %v362, %v361
      %v393 = vpack.c.b16 %v364, %v363
      %v394 = vpack.c.b16 %v366, %v365
      %v395 = vpack.c.b16 %v368, %v367
      %v396 = vpack.c.b16 %v370, %v369
      %v397 = vpack.c.b16 %v372, %v371
      %v398 = vpack.c.b16 %v374, %v373
      %v399 = vpack.c.b16 %v376, %v375
      %v400 = vpack.c.b16 %v378, %v377
      %v401 = vpack.c.b16 %v380, %v379
      %v402 = vpack.c.b16 %v382, %v381
      %v403 = vpack.c.b16 %v384, %v383
      %v404 = vpack.c.b16 %v386, %v385
      %v405 = vpack.c.b16 %v388, %v387
      %v406 = vpack.c.b16 %v390, %v389
      %v439 = vunpack.c.l.b16 %v275
      %v440 = vunpack.c.l.b16 %v278
      %v441 = vunpack.c.l.b16 %v281
      %v442 = vunpack.c.l.b16 %v284
      %v443 = vunpack.c.l.b16 %v287
      %v444 = vunpack.c.l.b16 %v290
      %v445 = vunpack.c.l.b16 %v293
      %v446 = vunpack.c.l.b16 %v296
      %v447 = vunpack.c.l.b16 %v299
      %v448 = vunpack.c.l.b16 %v302
      %v449 = vunpack.c.l.b16 %v305
      %v450 = vunpack.c.l.b16 %v308
      %v451 = vunpack.c.l.b16 %v311
      %v452 = vunpack.c.l.b16 %v314
      %v453 = vunpack.c.l.b16 %v317
      %v454 = vunpack.c.l.b16 %v320
      %v455 = vpack.c.b16 %v439, %v439
      %v456 = vpack.c.b16 %v440, %v440
      %v457 = vpack.c.b16 %v441, %v441
      %v458 = vpack.c.b16 %v442, %v442
      %v459 = vpack.c.b16 %v443, %v443
      %v460 = vpack.c.b16 %v444, %v444
      %v461 = vpack.c.b16 %v445, %v445
      %v462 = vpack.c.b16 %v446, %v446
      %v463 = vpack.c.b16 %v447, %v447
      %v464 = vpack.c.b16 %v448, %v448
      %v465 = vpack.c.b16 %v449, %v449
      %v466 = vpack.c.b16 %v450, %v450
      %v467 = vpack.c.b16 %v451, %v451
      %v468 = vpack.c.b16 %v452, %v452
      %v469 = vpack.c.b16 %v453, %v453
      %v470 = vpack.c.b16 %v454, %v454
      %vm471 = vsmask.f32 7424
      %v473 = vshrl.u32 %v391, 16
      %v475 = vshll.u32 %v391, 16
      %v477 = vrot.slane %v475, 1
      %v478 = vor.u32 %v473, %v477
      %v480 = vshll.u32 %v455, 16
      %v482 = vrot.slane %v480, 1
      %v483 = vsel %vm471, %v478, %v482
      %v485 = vshrl.u32 %v392, 16
      %v487 = vshll.u32 %v392, 16
      %v489 = vrot.slane %v487, 1
      %v490 = vor.u32 %v485, %v489
      %v492 = vshll.u32 %v456, 16
      %v494 = vrot.slane %v492, 1
      %v495 = vsel %vm471, %v490, %v494
      %v497 = vshrl.u32 %v393, 16
      %v499 = vshll.u32 %v393, 16
      %v501 = vrot.slane %v499, 1
      %v502 = vor.u32 %v497, %v501
      %v504 = vshll.u32 %v457, 16
      %v506 = vrot.slane %v504, 1
      %v507 = vsel %vm471, %v502, %v506
      %v509 = vshrl.u32 %v394, 16
      %v511 = vshll.u32 %v394, 16
      %v513 = vrot.slane %v511, 1
      %v514 = vor.u32 %v509, %v513
      %v516 = vshll.u32 %v458, 16
      %v518 = vrot.slane %v516, 1
      %v519 = vsel %vm471, %v514, %v518
      %v521 = vshrl.u32 %v395, 16
      %v523 = vshll.u32 %v395, 16
      %v525 = vrot.slane %v523, 1
      %v526 = vor.u32 %v521, %v525
      %v528 = vshll.u32 %v459, 16
      %v530 = vrot.slane %v528, 1
      %v531 = vsel %vm471, %v526, %v530
      %v533 = vshrl.u32 %v396, 16
      %v535 = vshll.u32 %v396, 16
      %v537 = vrot.slane %v535, 1
      %v538 = vor.u32 %v533, %v537
      %v540 = vshll.u32 %v460, 16
      %v542 = vrot.slane %v540, 1
      %v543 = vsel %vm471, %v538, %v542
      %v545 = vshrl.u32 %v397, 16
      %v547 = vshll.u32 %v397, 16
      %v549 = vrot.slane %v547, 1
      %v550 = vor.u32 %v545, %v549
      %v552 = vshll.u32 %v461, 16
      %v554 = vrot.slane %v552, 1
      %v555 = vsel %vm471, %v550, %v554
      %v557 = vshrl.u32 %v398, 16
      %v559 = vshll.u32 %v398, 16
      %v561 = vrot.slane %v559, 1
      %v562 = vor.u32 %v557, %v561
      %v564 = vshll.u32 %v462, 16
      %v566 = vrot.slane %v564, 1
      %v567 = vsel %vm471, %v562, %v566
      %v569 = vshrl.u32 %v399, 16
      %v571 = vshll.u32 %v399, 16
      %v573 = vrot.slane %v571, 1
      %v574 = vor.u32 %v569, %v573
      %v576 = vshll.u32 %v463, 16
      %v578 = vrot.slane %v576, 1
      %v579 = vsel %vm471, %v574, %v578
      %v581 = vshrl.u32 %v400, 16
      %v583 = vshll.u32 %v400, 16
      %v585 = vrot.slane %v583, 1
      %v586 = vor.u32 %v581, %v585
      %v588 = vshll.u32 %v464, 16
      %v590 = vrot.slane %v588, 1
      %v591 = vsel %vm471, %v586, %v590
      %v593 = vshrl.u32 %v401, 16
      %v595 = vshll.u32 %v401, 16
      %v597 = vrot.slane %v595, 1
      %v598 = vor.u32 %v593, %v597
      %v600 = vshll.u32 %v465, 16
      %v602 = vrot.slane %v600, 1
      %v603 = vsel %vm471, %v598, %v602
      %v605 = vshrl.u32 %v402, 16
      %v607 = vshll.u32 %v402, 16
      %v609 = vrot.slane %v607, 1
      %v610 = vor.u32 %v605, %v609
      %v612 = vshll.u32 %v466, 16
      %v614 = vrot.slane %v612, 1
      %v615 = vsel %vm471, %v610, %v614
      %v617 = vshrl.u32 %v403, 16
      %v619 = vshll.u32 %v403, 16
      %v621 = vrot.slane %v619, 1
      %v622 = vor.u32 %v617, %v621
      %v624 = vshll.u32 %v467, 16
      %v626 = vrot.slane %v624, 1
      %v627 = vsel %vm471, %v622, %v626
      %v629 = vshrl.u32 %v404, 16
      %v631 = vshll.u32 %v404, 16
      %v633 = vrot.slane %v631, 1
      %v634 = vor.u32 %v629, %v633
      %v636 = vshll.u32 %v468, 16
      %v638 = vrot.slane %v636, 1
      %v639 = vsel %vm471, %v634, %v638
      %v641 = vshrl.u32 %v405, 16
      %v643 = vshll.u32 %v405, 16
      %v645 = vrot.slane %v643, 1
      %v646 = vor.u32 %v641, %v645
      %v648 = vshll.u32 %v469, 16
      %v650 = vrot.slane %v648, 1
      %v651 = vsel %vm471, %v646, %v650
      %v653 = vshrl.u32 %v406, 16
      %v655 = vshll.u32 %v406, 16
      %v657 = vrot.slane %v655, 1
      %v658 = vor.u32 %v653, %v657
      %v660 = vshll.u32 %v470, 16
      %v662 = vrot.slane %v660, 1
      %v663 = vsel %vm471, %v658, %v662
      %vm680 = vcmask 1046528
      %v681 = vrot.slane %v391, 1
      %v682 = vrot.slane %v455, 1
      %v683 = vsel %vm680, %v681, %v682
      %v684 = vrot.slane %v392, 1
      %v685 = vrot.slane %v456, 1
      %v686 = vsel %vm680, %v684, %v685
      %v687 = vrot.slane %v393, 1
      %v688 = vrot.slane %v457, 1
      %v689 = vsel %vm680, %v687, %v688
      %v690 = vrot.slane %v394, 1
      %v691 = vrot.slane %v458, 1
      %v692 = vsel %vm680, %v690, %v691
      %v693 = vrot.slane %v395, 1
      %v694 = vrot.slane %v459, 1
      %v695 = vsel %vm680, %v693, %v694
      %v696 = vrot.slane %v396, 1
      %v697 = vrot.slane %v460, 1
      %v698 = vsel %vm680, %v696, %v697
      %v699 = vrot.slane %v397, 1
      %v700 = vrot.slane %v461, 1
      %v701 = vsel %vm680, %v699, %v700
      %v702 = vrot.slane %v398, 1
      %v703 = vrot.slane %v462, 1
      %v704 = vsel %vm680, %v702, %v703
      %v705 = vrot.slane %v399, 1
      %v706 = vrot.slane %v463, 1
      %v707 = vsel %vm680, %v705, %v706
      %v708 = vrot.slane %v400, 1
      %v709 = vrot.slane %v464, 1
      %v710 = vsel %vm680, %v708, %v709
      %v711 = vrot.slane %v401, 1
      %v712 = vrot.slane %v465, 1
      %v713 = vsel %vm680, %v711, %v712
      %v714 = vrot.slane %v402, 1
      %v715 = vrot.slane %v466, 1
      %v716 = vsel %vm680, %v714, %v715
      %v717 = vrot.slane %v403, 1
      %v718 = vrot.slane %v467, 1
      %v719 = vsel %vm680, %v717, %v718
      %v720 = vrot.slane %v404, 1
      %v721 = vrot.slane %v468, 1
      %v722 = vsel %vm680, %v720, %v721
      %v723 = vrot.slane %v405, 1
      %v724 = vrot.slane %v469, 1
      %v725 = vsel %vm680, %v723, %v724
      %v726 = vrot.slane %v406, 1
      %v727 = vrot.slane %v470, 1
      %v728 = vsel %vm680, %v726, %v727
      %v747 = vunpack.c.l.b16 %v321
      %v748 = vunpack.c.l.b16 %v322
      %v749 = vpack.c.b16 %v748, %v747
      %v752 = vunpack.c.l.b16 %v323
      %v753 = vpack.c.b16 %v752, %v752
      %v755 = vshrl.u32 %v749, 16
      %v757 = vshll.u32 %v749, 16
      %v759 = vrot.slane %v757, 1
      %v760 = vor.u32 %v755, %v759
      %v762 = vshll.u32 %v753, 16
      %v764 = vrot.slane %v762, 1
      %v765 = vsel %vm471, %v760, %v764
      %v767 = vrot.slane %v749, 1
      %v768 = vrot.slane %v753, 1
      %v769 = vsel %vm680, %v767, %v768
      %v773 = vunpack.c.l.b16 %v324
      %v774 = vunpack.c.l.b16 %v325
      %v775 = vpack.c.b16 %v774, %v773
      %v778 = vunpack.c.l.b16 %v326
      %v779 = vpack.c.b16 %v778, %v778
      %v781 = vshrl.u32 %v775, 16
      %v783 = vshll.u32 %v775, 16
      %v785 = vrot.slane %v783, 1
      %v786 = vor.u32 %v781, %v785
      %v788 = vshll.u32 %v779, 16
      %v790 = vrot.slane %v788, 1
      %v791 = vsel %vm471, %v786, %v790
      %v793 = vrot.slane %v775, 1
      %v794 = vrot.slane %v779, 1
      %v795 = vsel %vm680, %v793, %v794
      %v797 = vld [vmem:[%s2] sm:$0xf]
      %v798 = vld [vmem:[%s2 + $0x4] sm:$0xf]
      %v799 = vld [vmem:[%s2 + $0x8] sm:$0xf]
      %v800 = vld [vmem:[%s2 + $0xc] sm:$0xf]
      %v801 = vld [vmem:[%s2 + $0x10] sm:$0xf]
      %v802 = vld [vmem:[%s2 + $0x14] sm:$0xf]
      %v803 = vld [vmem:[%s2 + $0x18] sm:$0xf]
      %v804 = vld [vmem:[%s2 + $0x1c] sm:$0xf]
      %v805 = vld [vmem:[%s2 + $0x20] sm:$0xf]
      %v806 = vld [vmem:[%s2 + $0x24] sm:$0xf]
      %v807 = vld [vmem:[%s2 + $0x28] sm:$0xf]
      %v808 = vld [vmem:[%s2 + $0x2c] sm:$0xf]
      %v809 = vld [vmem:[%s2 + $0x30] sm:$0xf]
      %v810 = vld [vmem:[%s2 + $0x34] sm:$0xf]
      %v811 = vld [vmem:[%s2 + $0x38] sm:$0xf]
      %v812 = vld [vmem:[%s2 + $0x3c] sm:$0xf]
      %v813 = vld [vmem:[%s2 + $0x40] sm:$0xf]
      %v814 = vld [vmem:[%s2 + $0x44] sm:$0xf]
      %v815 = vld [vmem:[%s2 + $0x48] sm:$0xf]
      %v816 = vld [vmem:[%s2 + $0x4c] sm:$0xf]
      %v817 = vld [vmem:[%s2 + $0x50] sm:$0xf]
      %v818 = vld [vmem:[%s2 + $0x54] sm:$0xf]
      %v819 = vld [vmem:[%s2 + $0x58] sm:$0xf]
      %v820 = vld [vmem:[%s2 + $0x5c] sm:$0xf]
      %v821 = vld [vmem:[%s2 + $0x60] sm:$0xf]
      %v822 = vld [vmem:[%s2 + $0x64] sm:$0xf]
      %v823 = vld [vmem:[%s2 + $0x68] sm:$0xf]
      %v824 = vld [vmem:[%s2 + $0x6c] sm:$0xf]
      %v825 = vld [vmem:[%s2 + $0x70] sm:$0xf]
      %v826 = vld [vmem:[%s2 + $0x74] sm:$0xf]
      %v827 = vld [vmem:[%s2 + $0x78] sm:$0xf]
      %v828 = vld [vmem:[%s2 + $0x7c] sm:$0xf]
      %v829 = vld [vmem:[%s2 + $0x80] sm:$0xf]
      %v830 = vld [vmem:[%s2 + $0x84] sm:$0xf]
      %v831 = vld [vmem:[%s2 + $0x88] sm:$0xf]
      %v832 = vld [vmem:[%s2 + $0x8c] sm:$0xf]
      %v833 = vld [vmem:[%s2 + $0x90] sm:$0xf]
      %v834 = vld [vmem:[%s2 + $0x94] sm:$0xf]
      %v835 = vld [vmem:[%s2 + $0x98] sm:$0xf]
      %v836 = vld [vmem:[%s2 + $0x9c] sm:$0xf]
      %v837 = vld [vmem:[%s2 + $0xa0] sm:$0xf]
      %v838 = vld [vmem:[%s2 + $0xa4] sm:$0xf]
      %v839 = vld [vmem:[%s2 + $0xa8] sm:$0xf]
      %v840 = vld [vmem:[%s2 + $0xac] sm:$0xf]
      %v841 = vld [vmem:[%s2 + $0xb0] sm:$0xf]
      %v842 = vld [vmem:[%s2 + $0xb4] sm:$0xf]
      %v843 = vld [vmem:[%s2 + $0xb8] sm:$0xf]
      %v844 = vld [vmem:[%s2 + $0xbc] sm:$0xf]
      %v845 = vld [vmem:[%s2 + $0xc0] sm:$0xf]
      %v846 = vld [vmem:[%s2 + $0xc4] sm:$0xf]
      %v847 = vld [vmem:[%s2 + $0xc8] sm:$0xf]
      %v848 = vld [vmem:[%s2 + $0xcc] sm:$0xf]
      %v849 = vld [vmem:[%s2 + $0xd0] sm:$0xf]
      %v850 = vld [vmem:[%s2 + $0xd4] sm:$0xf]
      %v851 = vld [vmem:[%s2 + $0xd8] sm:$0xf]
      %v852 = vld [vmem:[%s2 + $0xdc] sm:$0xf]
      %v853 = vld [vmem:[%s2 + $0xe0] sm:$0xf]
      %v854 = vld [vmem:[%s2 + $0xe4] sm:$0xf]
      %v855 = vld [vmem:[%s2 + $0xe8] sm:$0xf]
      %v856 = vld [vmem:[%s2 + $0xec] sm:$0xf]
      %v857 = vld [vmem:[%s2 + $0xf0] sm:$0xf]
      %v858 = vld [vmem:[%s2 + $0xf4] sm:$0xf]
      %v859 = vld [vmem:[%s2 + $0xf8] sm:$0xf]
      %v860 = vld [vmem:[%s2 + $0xfc] sm:$0xf]
      %v861 = vld [vmem:[%s2 + $0x100] sm:$0xf]
      %v862 = vld [vmem:[%s2 + $0x104] sm:$0xf]
      %v863 = vld [vmem:[%s2 + $0x108] sm:$0xf]
      %v864 = vld [vmem:[%s2 + $0x10c] sm:$0xf]
      %v865 = vld [vmem:[%s2 + $0x110] sm:$0xf]
      %v866 = vld [vmem:[%s2 + $0x114] sm:$0xf]
      %v867 = vld [vmem:[%s2 + $0x118] sm:$0xf]
      %v868 = vld [vmem:[%s2 + $0x11c] sm:$0xf]
      %v869 = vld [vmem:[%s2 + $0x120] sm:$0xf]
      %v870 = vld [vmem:[%s2 + $0x124] sm:$0xf]
      %v871 = vld [vmem:[%s2 + $0x128] sm:$0xf]
      %v872 = vld [vmem:[%s2 + $0x12c] sm:$0xf]
      %v873 = vld [vmem:[%s2 + $0x130] sm:$0xf]
      %v874 = vld [vmem:[%s2 + $0x134] sm:$0xf]
      %v875 = vld [vmem:[%s2 + $0x138] sm:$0xf]
      %v876 = vld [vmem:[%s2 + $0x13c] sm:$0xf]
      %v877 = vld [vmem:[%s2 + $0x140] sm:$0xf]
      %v878 = vld [vmem:[%s2 + $0x144] sm:$0xf]
      %v879 = vld [vmem:[%s2 + $0x148] sm:$0xf]
      %v880 = vld [vmem:[%s2 + $0x14c] sm:$0xf]
      %v881 = vld [vmem:[%s2 + $0x150] sm:$0xf]
      %v882 = vld [vmem:[%s2 + $0x154] sm:$0xf]
      %v883 = vld [vmem:[%s2 + $0x158] sm:$0xf]
      %v884 = vld [vmem:[%s2 + $0x15c] sm:$0xf]
      %v885 = vld [vmem:[%s2 + $0x160] sm:$0xf]
      %v886 = vld [vmem:[%s2 + $0x164] sm:$0xf]
      %v887 = vld [vmem:[%s2 + $0x168] sm:$0xf]
      %v888 = vld [vmem:[%s2 + $0x16c] sm:$0xf]
      %v889 = vld [vmem:[%s2 + $0x170] sm:$0xf]
      %v890 = vld [vmem:[%s2 + $0x174] sm:$0xf]
      %v891 = vld [vmem:[%s2 + $0x178] sm:$0xf]
      %v892 = vld [vmem:[%s2 + $0x17c] sm:$0xf]
      %v893 = vld [vmem:[%s2 + $0x180] sm:$0xf]
      %v894 = vld [vmem:[%s2 + $0x184] sm:$0xf]
      %v895 = vld [vmem:[%s2 + $0x188] sm:$0xf]
      %v896 = vld [vmem:[%s2 + $0x18c] sm:$0xf]
      %v897 = vld [vmem:[%s2 + $0x190] sm:$0xf]
      %v898 = vld [vmem:[%s2 + $0x194] sm:$0xf]
      %v899 = vld [vmem:[%s2 + $0x198] sm:$0xf]
      %v900 = vld [vmem:[%s2 + $0x19c] sm:$0xf]
      %v901 = vld [vmem:[%s2 + $0x1a0] sm:$0xf]
      %v902 = vld [vmem:[%s2 + $0x1a4] sm:$0xf]
      %v903 = vld [vmem:[%s2 + $0x1a8] sm:$0xf]
      %v904 = vld [vmem:[%s2 + $0x1ac] sm:$0xf]
      %v905 = vld [vmem:[%s2 + $0x1b0] sm:$0xf]
      %v906 = vld [vmem:[%s2 + $0x1b4] sm:$0xf]
      %v907 = vld [vmem:[%s2 + $0x1b8] sm:$0xf]
      %v908 = vld [vmem:[%s2 + $0x1bc] sm:$0xf]
      %v909 = vld [vmem:[%s2 + $0x1c0] sm:$0xf]
      %v910 = vld [vmem:[%s2 + $0x1c4] sm:$0xf]
      %v911 = vld [vmem:[%s2 + $0x1c8] sm:$0xf]
      %v912 = vld [vmem:[%s2 + $0x1cc] sm:$0xf]
      %v913 = vld [vmem:[%s2 + $0x1d0] sm:$0xf]
      %v914 = vld [vmem:[%s2 + $0x1d4] sm:$0xf]
      %v915 = vld [vmem:[%s2 + $0x1d8] sm:$0xf]
      %v916 = vld [vmem:[%s2 + $0x1dc] sm:$0xf]
      %v917 = vld [vmem:[%s2 + $0x1e0] sm:$0xf]
      %v918 = vld [vmem:[%s2 + $0x1e4] sm:$0xf]
      %v919 = vld [vmem:[%s2 + $0x1e8] sm:$0xf]
      %v920 = vld [vmem:[%s2 + $0x1ec] sm:$0xf]
      %v921 = vld [vmem:[%s2 + $0x1f0] sm:$0xf]
      %v922 = vld [vmem:[%s2 + $0x1f4] sm:$0xf]
      %v923 = vld [vmem:[%s2 + $0x1f8] sm:$0xf]
      %v924 = vld [vmem:[%s2 + $0x1fc] sm:$0xf]
      %v925 = vld [vmem:[%s2 + $0x200] sm:$0xf]
      %v926 = vld [vmem:[%s2 + $0x204] sm:$0xf]
      %v927 = vld [vmem:[%s2 + $0x208] sm:$0xf]
      %v928 = vld [vmem:[%s2 + $0x20c] sm:$0xf]
      %v929 = vld [vmem:[%s2 + $0x210] sm:$0xf]
      %v930 = vld [vmem:[%s2 + $0x214] sm:$0xf]
      %v931 = vld [vmem:[%s2 + $0x218] sm:$0xf]
      %v932 = vld [vmem:[%s2 + $0x21c] sm:$0xf]
      %v933 = vld [vmem:[%s2 + $0x220] sm:$0xf]
      %v934 = vld [vmem:[%s2 + $0x224] sm:$0xf]
      %v935 = vld [vmem:[%s2 + $0x228] sm:$0xf]
      %v936 = vld [vmem:[%s2 + $0x22c] sm:$0xf]
      %v937 = vld [vmem:[%s2 + $0x230] sm:$0xf]
      %v938 = vld [vmem:[%s2 + $0x234] sm:$0xf]
      %v939 = vld [vmem:[%s2 + $0x238] sm:$0xf]
      %v940 = vld [vmem:[%s2 + $0x23c] sm:$0xf]
      %v941 = vld [vmem:[%s3] sm:$0x1]
      %v943 = vlaneseq
      %v944 = vshrl.u32 %v943, 7
      %v945 = vsub.s32 0, %v944
      %v946 = vrot.slane %v941, %v945
      %v1092 = vunpack.c.l.b16 %v797
      %v1093 = vunpack.c.l.b16 %v798
      %v1094 = vunpack.c.l.b16 %v799
      %v1095 = vunpack.c.l.b16 %v800
      %v1096 = vunpack.c.l.b16 %v801
      %v1097 = vunpack.c.l.b16 %v802
      %v1098 = vunpack.c.l.b16 %v803
      %v1099 = vunpack.c.l.b16 %v804
      %v1100 = vunpack.c.l.b16 %v805
      %v1101 = vunpack.c.l.b16 %v806
      %v1102 = vunpack.c.l.b16 %v807
      %v1103 = vunpack.c.l.b16 %v808
      %v1104 = vunpack.c.l.b16 %v809
      %v1105 = vunpack.c.l.b16 %v810
      %v1106 = vunpack.c.l.b16 %v811
      %v1107 = vunpack.c.l.b16 %v812
      %v1108 = vunpack.c.l.b16 %v813
      %v1109 = vunpack.c.l.b16 %v814
      %v1110 = vunpack.c.l.b16 %v815
      %v1111 = vunpack.c.l.b16 %v816
      %v1112 = vunpack.c.l.b16 %v817
      %v1113 = vunpack.c.l.b16 %v818
      %v1114 = vunpack.c.l.b16 %v819
      %v1115 = vunpack.c.l.b16 %v820
      %v1116 = vunpack.c.l.b16 %v821
      %v1117 = vunpack.c.l.b16 %v822
      %v1118 = vunpack.c.l.b16 %v823
      %v1119 = vunpack.c.l.b16 %v824
      %v1120 = vunpack.c.l.b16 %v825
      %v1121 = vunpack.c.l.b16 %v826
      %v1122 = vunpack.c.l.b16 %v827
      %v1123 = vunpack.c.l.b16 %v828
      %v1124 = vunpack.c.l.b16 %v829
      %v1125 = vunpack.c.l.b16 %v830
      %v1126 = vunpack.c.l.b16 %v831
      %v1127 = vunpack.c.l.b16 %v832
      %v1128 = vunpack.c.l.b16 %v833
      %v1129 = vunpack.c.l.b16 %v834
      %v1130 = vunpack.c.l.b16 %v835
      %v1131 = vunpack.c.l.b16 %v836
      %v1132 = vunpack.c.l.b16 %v837
      %v1133 = vunpack.c.l.b16 %v838
      %v1134 = vunpack.c.l.b16 %v839
      %v1135 = vunpack.c.l.b16 %v840
      %v1136 = vunpack.c.l.b16 %v841
      %v1137 = vunpack.c.l.b16 %v842
      %v1138 = vunpack.c.l.b16 %v843
      %v1139 = vunpack.c.l.b16 %v844
      %v1140 = vunpack.c.l.b16 %v845
      %v1141 = vunpack.c.l.b16 %v846
      %v1142 = vunpack.c.l.b16 %v847
      %v1143 = vunpack.c.l.b16 %v848
      %v1144 = vunpack.c.l.b16 %v849
      %v1145 = vunpack.c.l.b16 %v850
      %v1146 = vunpack.c.l.b16 %v851
      %v1147 = vunpack.c.l.b16 %v852
      %v1148 = vunpack.c.l.b16 %v853
      %v1149 = vunpack.c.l.b16 %v854
      %v1150 = vunpack.c.l.b16 %v855
      %v1151 = vunpack.c.l.b16 %v856
      %v1152 = vunpack.c.l.b16 %v857
      %v1153 = vunpack.c.l.b16 %v858
      %v1154 = vunpack.c.l.b16 %v859
      %v1155 = vunpack.c.l.b16 %v860
      %v1156 = vunpack.c.l.b16 %v861
      %v1157 = vunpack.c.l.b16 %v862
      %v1158 = vunpack.c.l.b16 %v863
      %v1159 = vunpack.c.l.b16 %v864
      %v1160 = vunpack.c.l.b16 %v865
      %v1161 = vunpack.c.l.b16 %v866
      %v1162 = vunpack.c.l.b16 %v867
      %v1163 = vunpack.c.l.b16 %v868
      %v1164 = vunpack.c.l.b16 %v869
      %v1165 = vunpack.c.l.b16 %v870
      %v1166 = vunpack.c.l.b16 %v871
      %v1167 = vunpack.c.l.b16 %v872
      %v1168 = vunpack.c.l.b16 %v873
      %v1169 = vunpack.c.l.b16 %v874
      %v1170 = vunpack.c.l.b16 %v875
      %v1171 = vunpack.c.l.b16 %v876
      %v1172 = vunpack.c.l.b16 %v877
      %v1173 = vunpack.c.l.b16 %v878
      %v1174 = vunpack.c.l.b16 %v879
      %v1175 = vunpack.c.l.b16 %v880
      %v1176 = vunpack.c.l.b16 %v881
      %v1177 = vunpack.c.l.b16 %v882
      %v1178 = vunpack.c.l.b16 %v883
      %v1179 = vunpack.c.l.b16 %v884
      %v1180 = vunpack.c.l.b16 %v885
      %v1181 = vunpack.c.l.b16 %v886
      %v1182 = vunpack.c.l.b16 %v887
      %v1183 = vunpack.c.l.b16 %v888
      %v1184 = vunpack.c.l.b16 %v889
      %v1185 = vunpack.c.l.b16 %v890
      %v1186 = vunpack.c.l.b16 %v891
      %v1187 = vunpack.c.l.b16 %v892
      %v1188 = vunpack.c.l.b16 %v893
      %v1189 = vunpack.c.l.b16 %v894
      %v1190 = vunpack.c.l.b16 %v895
      %v1191 = vunpack.c.l.b16 %v896
      %v1192 = vunpack.c.l.b16 %v897
      %v1193 = vunpack.c.l.b16 %v898
      %v1194 = vunpack.c.l.b16 %v899
      %v1195 = vunpack.c.l.b16 %v900
      %v1196 = vunpack.c.l.b16 %v901
      %v1197 = vunpack.c.l.b16 %v902
      %v1198 = vunpack.c.l.b16 %v903
      %v1199 = vunpack.c.l.b16 %v904
      %v1200 = vunpack.c.l.b16 %v905
      %v1201 = vunpack.c.l.b16 %v906
      %v1202 = vunpack.c.l.b16 %v907
      %v1203 = vunpack.c.l.b16 %v908
      %v1204 = vunpack.c.l.b16 %v909
      %v1205 = vunpack.c.l.b16 %v910
      %v1206 = vunpack.c.l.b16 %v911
      %v1207 = vunpack.c.l.b16 %v912
      %v1208 = vunpack.c.l.b16 %v913
      %v1209 = vunpack.c.l.b16 %v914
      %v1210 = vunpack.c.l.b16 %v915
      %v1211 = vunpack.c.l.b16 %v916
      %v1212 = vunpack.c.l.b16 %v917
      %v1213 = vunpack.c.l.b16 %v918
      %v1214 = vunpack.c.l.b16 %v919
      %v1215 = vunpack.c.l.b16 %v920
      %v1216 = vunpack.c.l.b16 %v921
      %v1217 = vunpack.c.l.b16 %v922
      %v1218 = vunpack.c.l.b16 %v923
      %v1219 = vunpack.c.l.b16 %v924
      %v1220 = vunpack.c.l.b16 %v925
      %v1221 = vunpack.c.l.b16 %v926
      %v1222 = vunpack.c.l.b16 %v927
      %v1223 = vunpack.c.l.b16 %v928
      %v1224 = vunpack.c.l.b16 %v929
      %v1225 = vunpack.c.l.b16 %v930
      %v1226 = vunpack.c.l.b16 %v931
      %v1227 = vunpack.c.l.b16 %v932
      %v1228 = vunpack.c.l.b16 %v933
      %v1229 = vunpack.c.l.b16 %v934
      %v1230 = vunpack.c.l.b16 %v935
      %v1231 = vunpack.c.l.b16 %v936
      %v1232 = vunpack.c.l.b16 %v937
      %v1233 = vunpack.c.l.b16 %v938
      %v1234 = vunpack.c.l.b16 %v939
      %v1235 = vunpack.c.l.b16 %v940
      %v1236 = vpack.c.b16 %v1093, %v1092
      %v1237 = vpack.c.b16 %v1095, %v1094
      %v1238 = vpack.c.b16 %v1097, %v1096
      %v1239 = vpack.c.b16 %v1099, %v1098
      %v1240 = vpack.c.b16 %v1101, %v1100
      %v1241 = vpack.c.b16 %v1103, %v1102
      %v1242 = vpack.c.b16 %v1105, %v1104
      %v1243 = vpack.c.b16 %v1107, %v1106
      %v1244 = vpack.c.b16 %v1109, %v1108
      %v1245 = vpack.c.b16 %v1111, %v1110
      %v1246 = vpack.c.b16 %v1113, %v1112
      %v1247 = vpack.c.b16 %v1115, %v1114
      %v1248 = vpack.c.b16 %v1117, %v1116
      %v1249 = vpack.c.b16 %v1119, %v1118
      %v1250 = vpack.c.b16 %v1121, %v1120
      %v1251 = vpack.c.b16 %v1123, %v1122
      %v1252 = vpack.c.b16 %v1125, %v1124
      %v1253 = vpack.c.b16 %v1127, %v1126
      %v1254 = vpack.c.b16 %v1129, %v1128
      %v1255 = vpack.c.b16 %v1131, %v1130
      %v1256 = vpack.c.b16 %v1133, %v1132
      %v1257 = vpack.c.b16 %v1135, %v1134
      %v1258 = vpack.c.b16 %v1137, %v1136
      %v1259 = vpack.c.b16 %v1139, %v1138
      %v1260 = vpack.c.b16 %v1141, %v1140
      %v1261 = vpack.c.b16 %v1143, %v1142
      %v1262 = vpack.c.b16 %v1145, %v1144
      %v1263 = vpack.c.b16 %v1147, %v1146
      %v1264 = vpack.c.b16 %v1149, %v1148
      %v1265 = vpack.c.b16 %v1151, %v1150
      %v1266 = vpack.c.b16 %v1153, %v1152
      %v1267 = vpack.c.b16 %v1155, %v1154
      %v1268 = vpack.c.b16 %v1157, %v1156
      %v1269 = vpack.c.b16 %v1159, %v1158
      %v1270 = vpack.c.b16 %v1161, %v1160
      %v1271 = vpack.c.b16 %v1163, %v1162
      %v1272 = vpack.c.b16 %v1165, %v1164
      %v1273 = vpack.c.b16 %v1167, %v1166
      %v1274 = vpack.c.b16 %v1169, %v1168
      %v1275 = vpack.c.b16 %v1171, %v1170
      %v1276 = vpack.c.b16 %v1173, %v1172
      %v1277 = vpack.c.b16 %v1175, %v1174
      %v1278 = vpack.c.b16 %v1177, %v1176
      %v1279 = vpack.c.b16 %v1179, %v1178
      %v1280 = vpack.c.b16 %v1181, %v1180
      %v1281 = vpack.c.b16 %v1183, %v1182
      %v1282 = vpack.c.b16 %v1185, %v1184
      %v1283 = vpack.c.b16 %v1187, %v1186
      %v1284 = vpack.c.b16 %v1189, %v1188
      %v1285 = vpack.c.b16 %v1191, %v1190
      %v1286 = vpack.c.b16 %v1193, %v1192
      %v1287 = vpack.c.b16 %v1195, %v1194
      %v1288 = vpack.c.b16 %v1197, %v1196
      %v1289 = vpack.c.b16 %v1199, %v1198
      %v1290 = vpack.c.b16 %v1201, %v1200
      %v1291 = vpack.c.b16 %v1203, %v1202
      %v1292 = vpack.c.b16 %v1205, %v1204
      %v1293 = vpack.c.b16 %v1207, %v1206
      %v1294 = vpack.c.b16 %v1209, %v1208
      %v1295 = vpack.c.b16 %v1211, %v1210
      %v1296 = vpack.c.b16 %v1213, %v1212
      %v1297 = vpack.c.b16 %v1215, %v1214
      %v1298 = vpack.c.b16 %v1217, %v1216
      %v1299 = vpack.c.b16 %v1219, %v1218
      %v1300 = vpack.c.b16 %v1221, %v1220
      %v1301 = vpack.c.b16 %v1223, %v1222
      %v1302 = vpack.c.b16 %v1225, %v1224
      %v1303 = vpack.c.b16 %v1227, %v1226
      %v1304 = vpack.c.b16 %v1229, %v1228
      %v1305 = vpack.c.b16 %v1231, %v1230
      %v1306 = vpack.c.b16 %v1233, %v1232
      %v1307 = vpack.c.b16 %v1235, %v1234
      %1380 = vmatprep.subr.bf16.mxu0 0
      %1381 = vmatpush1.bf16.msra.mxu0 %v1236
      %1382 = vmatprep.subr.bf16.mxu0 0
      %1383 = vmatpush1.bf16.msra.mxu0 %v1237
      %1384 = vmatprep.subr.bf16.mxu0 0
      %1385 = vmatpush1.bf16.msra.mxu0 %v1238
      %1386 = vmatprep.subr.bf16.mxu0 0
      %1387 = vmatpush1.bf16.msra.mxu0 %v1239
      %1388 = vmatprep.subr.bf16.mxu0 0
      %1389 = vmatpush1.bf16.msra.mxu0 %v1240
      %1390 = vmatprep.subr.bf16.mxu0 0
      %1391 = vmatpush1.bf16.msra.mxu0 %v1241
      %1392 = vmatprep.subr.bf16.mxu0 0
      %1393 = vmatpush1.bf16.msra.mxu0 %v1242
      %1394 = vmatprep.subr.bf16.mxu0 0
      %1395 = vmatpush1.bf16.msra.mxu0 %v1243
      %1396 = vmatprep.subr.bf16.mxu0 0
      %1397 = vmatpush1.bf16.msra.mxu0 %v1244
      %1398 = vmatprep.subr.bf16.mxu0 0
      %1399 = vmatpush1.bf16.msra.mxu0 %v1245
      %1400 = vmatprep.subr.bf16.mxu0 0
      %1401 = vmatpush1.bf16.msra.mxu0 %v1246
      %1402 = vmatprep.subr.bf16.mxu0 0
      %1403 = vmatpush1.bf16.msra.mxu0 %v1247
      %1404 = vmatprep.subr.bf16.mxu0 0
      %1405 = vmatpush1.bf16.msra.mxu0 %v1248
      %1406 = vmatprep.subr.bf16.mxu0 0
      %1407 = vmatpush1.bf16.msra.mxu0 %v1249
      %1408 = vmatprep.subr.bf16.mxu0 0
      %1409 = vmatpush1.bf16.msra.mxu0 %v1250
      %1410 = vmatprep.subr.bf16.mxu0 0
      %1411 = vmatpush1.bf16.msra.mxu0 %v1251
      %1412 = vmatprep.mubr.bf16.mxu0 %v483
      %1413 = vmatmul.mubr.bf16.gmra.mrb[0].mxu0 %v391
      %v1414 = vpop.f32.mrb[0].mxu0
      %v1415 = vadd.f32 %v946, %v1414
      %v1416 = vpop.f32.mrb[0].mxu0
      %v1417 = vpop.f32.mrb[0].mxu0
      %v1418 = vadd.f32 %v946, %v1417
      %v1419 = vpop.f32.mrb[0].mxu0
      %1420 = vmatprep.mubr.bf16.mxu0 %v495
      %1421 = vmatmul.mubr.bf16.gmra.mrb[0].mxu0 %v392
      %v1422 = vpop.f32.mrb[0].mxu0
      %v1423 = vadd.f32 %v946, %v1422
      %v1424 = vpop.f32.mrb[0].mxu0
      %v1425 = vpop.f32.mrb[0].mxu0
      %v1426 = vadd.f32 %v946, %v1425
      %v1427 = vpop.f32.mrb[0].mxu0
      %1428 = vmatprep.mubr.bf16.mxu0 %v507
      %1429 = vmatmul.mubr.bf16.gmra.mrb[0].mxu0 %v393
      %v1430 = vpop.f32.mrb[0].mxu0
      %v1431 = vadd.f32 %v946, %v1430
      %v1432 = vpop.f32.mrb[0].mxu0
      %v1433 = vpop.f32.mrb[0].mxu0
      %v1434 = vadd.f32 %v946, %v1433
      %v1435 = vpop.f32.mrb[0].mxu0
      %1436 = vmatprep.mubr.bf16.mxu0 %v519
      %1437 = vmatmul.mubr.bf16.gmra.mrb[0].mxu0 %v394
      %v1438 = vpop.f32.mrb[0].mxu0
      %v1439 = vadd.f32 %v946, %v1438
      %v1440 = vpop.f32.mrb[0].mxu0
      %v1441 = vpop.f32.mrb[0].mxu0
      %v1442 = vadd.f32 %v946, %v1441
      %v1443 = vpop.f32.mrb[0].mxu0
      %1444 = vmatprep.mubr.bf16.mxu0 %v531
      %1445 = vmatmul.mubr.bf16.gmra.mrb[0].mxu0 %v395
      %v1446 = vpop.f32.mrb[0].mxu0
      %v1447 = vadd.f32 %v946, %v1446
      %v1448 = vpop.f32.mrb[0].mxu0
      %v1449 = vpop.f32.mrb[0].mxu0
      %v1450 = vadd.f32 %v946, %v1449
      %v1451 = vpop.f32.mrb[0].mxu0
      %1452 = vmatprep.mubr.bf16.mxu0 %v543
      %1453 = vmatmul.mubr.bf16.gmra.mrb[0].mxu0 %v396
      %v1454 = vpop.f32.mrb[0].mxu0
      %v1455 = vadd.f32 %v946, %v1454
      %v1456 = vpop.f32.mrb[0].mxu0
      %v1457 = vpop.f32.mrb[0].mxu0
      %v1458 = vadd.f32 %v946, %v1457
      %v1459 = vpop.f32.mrb[0].mxu0
      %1460 = vmatprep.mubr.bf16.mxu0 %v555
      %1461 = vmatmul.mubr.bf16.gmra.mrb[0].mxu0 %v397
      %v1462 = vpop.f32.mrb[0].mxu0
      %v1463 = vadd.f32 %v946, %v1462
      %v1464 = vpop.f32.mrb[0].mxu0
      %v1465 = vpop.f32.mrb[0].mxu0
      %v1466 = vadd.f32 %v946, %v1465
      %v1467 = vpop.f32.mrb[0].mxu0
      %1468 = vmatprep.mubr.bf16.mxu0 %v567
      %1469 = vmatmul.mubr.bf16.gmra.mrb[0].mxu0 %v398
      %v1470 = vpop.f32.mrb[0].mxu0
      %v1471 = vadd.f32 %v946, %v1470
      %v1472 = vpop.f32.mrb[0].mxu0
      %v1473 = vpop.f32.mrb[0].mxu0
      %v1474 = vadd.f32 %v946, %v1473
      %v1475 = vpop.f32.mrb[0].mxu0
      %1476 = vmatprep.mubr.bf16.mxu0 %v579
      %1477 = vmatmul.mubr.bf16.gmra.mrb[0].mxu0 %v399
      %v1478 = vpop.f32.mrb[0].mxu0
      %v1479 = vadd.f32 %v946, %v1478
      %v1480 = vpop.f32.mrb[0].mxu0
      %v1481 = vpop.f32.mrb[0].mxu0
      %v1482 = vadd.f32 %v946, %v1481
      %v1483 = vpop.f32.mrb[0].mxu0
      %1484 = vmatprep.mubr.bf16.mxu0 %v591
      %1485 = vmatmul.mubr.bf16.gmra.mrb[0].mxu0 %v400
      %v1486 = vpop.f32.mrb[0].mxu0
      %v1487 = vadd.f32 %v946, %v1486
      %v1488 = vpop.f32.mrb[0].mxu0
      %v1489 = vpop.f32.mrb[0].mxu0
      %v1490 = vadd.f32 %v946, %v1489
      %v1491 = vpop.f32.mrb[0].mxu0
      %1492 = vmatprep.mubr.bf16.mxu0 %v603
      %1493 = vmatmul.mubr.bf16.gmra.mrb[0].mxu0 %v401
      %v1494 = vpop.f32.mrb[0].mxu0
      %v1495 = vadd.f32 %v946, %v1494
      %v1496 = vpop.f32.mrb[0].mxu0
      %v1497 = vpop.f32.mrb[0].mxu0
      %v1498 = vadd.f32 %v946, %v1497
      %v1499 = vpop.f32.mrb[0].mxu0
      %1500 = vmatprep.mubr.bf16.mxu0 %v615
      %1501 = vmatmul.mubr.bf16.gmra.mrb[0].mxu0 %v402
      %v1502 = vpop.f32.mrb[0].mxu0
      %v1503 = vadd.f32 %v946, %v1502
      %v1504 = vpop.f32.mrb[0].mxu0
      %v1505 = vpop.f32.mrb[0].mxu0
      %v1506 = vadd.f32 %v946, %v1505
      %v1507 = vpop.f32.mrb[0].mxu0
      %1508 = vmatprep.mubr.bf16.mxu0 %v627
      %1509 = vmatmul.mubr.bf16.gmra.mrb[0].mxu0 %v403
      %v1510 = vpop.f32.mrb[0].mxu0
      %v1511 = vadd.f32 %v946, %v1510
      %v1512 = vpop.f32.mrb[0].mxu0
      %v1513 = vpop.f32.mrb[0].mxu0
      %v1514 = vadd.f32 %v946, %v1513
      %v1515 = vpop.f32.mrb[0].mxu0
      %1516 = vmatprep.mubr.bf16.mxu0 %v639
      %1517 = vmatmul.mubr.bf16.gmra.mrb[0].mxu0 %v404
      %v1518 = vpop.f32.mrb[0].mxu0
      %v1519 = vadd.f32 %v946, %v1518
      %v1520 = vpop.f32.mrb[0].mxu0
      %v1521 = vpop.f32.mrb[0].mxu0
      %v1522 = vadd.f32 %v946, %v1521
      %v1523 = vpop.f32.mrb[0].mxu0
      %1524 = vmatprep.mubr.bf16.mxu0 %v651
      %1525 = vmatmul.mubr.bf16.gmra.mrb[0].mxu0 %v405
      %v1526 = vpop.f32.mrb[0].mxu0
      %v1527 = vadd.f32 %v946, %v1526
      %v1528 = vpop.f32.mrb[0].mxu0
      %v1529 = vpop.f32.mrb[0].mxu0
      %v1530 = vadd.f32 %v946, %v1529
      %v1531 = vpop.f32.mrb[0].mxu0
      %1532 = vmatprep.mubr.bf16.mxu0 %v663
      %1533 = vmatmul.mubr.bf16.gmra.mrb[0].mxu0 %v406
      %v1534 = vpop.f32.mrb[0].mxu0
      %v1535 = vadd.f32 %v946, %v1534
      %v1536 = vpop.f32.mrb[0].mxu0
      %v1537 = vpop.f32.mrb[0].mxu0
      %v1538 = vadd.f32 %v946, %v1537
      %v1539 = vpop.f32.mrb[0].mxu0
      %1540 = vdwg.mxu0
      %1541 = vmatprep.subr.bf16.mxu0 0
      %1542 = vmatpush1.bf16.msra.mxu0 %v1252
      %1543 = vmatprep.subr.bf16.mxu0 0
      %1544 = vmatpush1.bf16.msra.mxu0 %v1253
      %1545 = vmatprep.subr.bf16.mxu0 0
      %1546 = vmatpush1.bf16.msra.mxu0 %v1254
      %1547 = vmatprep.subr.bf16.mxu0 0
      %1548 = vmatpush1.bf16.msra.mxu0 %v1255
      %1549 = vmatprep.subr.bf16.mxu0 0
      %1550 = vmatpush1.bf16.msra.mxu0 %v1256
      %1551 = vmatprep.subr.bf16.mxu0 0
      %1552 = vmatpush1.bf16.msra.mxu0 %v1257
      %1553 = vmatprep.subr.bf16.mxu0 0
      %1554 = vmatpush1.bf16.msra.mxu0 %v1258
      %1555 = vmatprep.subr.bf16.mxu0 0
      %1556 = vmatpush1.bf16.msra.mxu0 %v1259
      %1557 = vmatprep.subr.bf16.mxu0 0
      %1558 = vmatpush1.bf16.msra.mxu0 %v1260
      %1559 = vmatprep.subr.bf16.mxu0 0
      %1560 = vmatpush1.bf16.msra.mxu0 %v1261
      %1561 = vmatprep.subr.bf16.mxu0 0
      %1562 = vmatpush1.bf16.msra.mxu0 %v1262
      %1563 = vmatprep.subr.bf16.mxu0 0
      %1564 = vmatpush1.bf16.msra.mxu0 %v1263
      %1565 = vmatprep.subr.bf16.mxu0 0
      %1566 = vmatpush1.bf16.msra.mxu0 %v1264
      %1567 = vmatprep.subr.bf16.mxu0 0
      %1568 = vmatpush1.bf16.msra.mxu0 %v1265
      %1569 = vmatprep.subr.bf16.mxu0 0
      %1570 = vmatpush1.bf16.msra.mxu0 %v1266
      %1571 = vmatprep.subr.bf16.mxu0 0
      %1572 = vmatpush1.bf16.msra.mxu0 %v1267
      %1573 = vmatprep.mubr.bf16.mxu0 %v392
      %1574 = vmatmul.mubr.bf16.gmra.mrb[0].mxu0 %v683
      %v1575 = vpop.f32.mrb[0].mxu0
      %v1576 = vadd.f32 %v1415, %v1575
      %v1577 = vpop.f32.mrb[0].mxu0
      %v1578 = vpop.f32.mrb[0].mxu0
      %v1579 = vadd.f32 %v1418, %v1578
      %v1580 = vpop.f32.mrb[0].mxu0
      %1581 = vmatprep.mubr.bf16.mxu0 %v393
      %1582 = vmatmul.mubr.bf16.gmra.mrb[0].mxu0 %v686
      %v1583 = vpop.f32.mrb[0].mxu0
      %v1584 = vadd.f32 %v1423, %v1583
      %v1585 = vpop.f32.mrb[0].mxu0
      %v1586 = vpop.f32.mrb[0].mxu0
      %v1587 = vadd.f32 %v1426, %v1586
      %v1588 = vpop.f32.mrb[0].mxu0
      %1589 = vmatprep.mubr.bf16.mxu0 %v394
      %1590 = vmatmul.mubr.bf16.gmra.mrb[0].mxu0 %v689
      %v1591 = vpop.f32.mrb[0].mxu0
      %v1592 = vadd.f32 %v1431, %v1591
      %v1593 = vpop.f32.mrb[0].mxu0
      %v1594 = vpop.f32.mrb[0].mxu0
      %v1595 = vadd.f32 %v1434, %v1594
      %v1596 = vpop.f32.mrb[0].mxu0
      %1597 = vmatprep.mubr.bf16.mxu0 %v395
      %1598 = vmatmul.mubr.bf16.gmra.mrb[0].mxu0 %v692
      %v1599 = vpop.f32.mrb[0].mxu0
      %v1600 = vadd.f32 %v1439, %v1599
      %v1601 = vpop.f32.mrb[0].mxu0
      %v1602 = vpop.f32.mrb[0].mxu0
      %v1603 = vadd.f32 %v1442, %v1602
      %v1604 = vpop.f32.mrb[0].mxu0
      %1605 = vmatprep.mubr.bf16.mxu0 %v396
      %1606 = vmatmul.mubr.bf16.gmra.mrb[0].mxu0 %v695
      %v1607 = vpop.f32.mrb[0].mxu0
      %v1608 = vadd.f32 %v1447, %v1607
      %v1609 = vpop.f32.mrb[0].mxu0
      %v1610 = vpop.f32.mrb[0].mxu0
      %v1611 = vadd.f32 %v1450, %v1610
      %v1612 = vpop.f32.mrb[0].mxu0
      %1613 = vmatprep.mubr.bf16.mxu0 %v397
      %1614 = vmatmul.mubr.bf16.gmra.mrb[0].mxu0 %v698
      %v1615 = vpop.f32.mrb[0].mxu0
      %v1616 = vadd.f32 %v1455, %v1615
      %v1617 = vpop.f32.mrb[0].mxu0
      %v1618 = vpop.f32.mrb[0].mxu0
      %v1619 = vadd.f32 %v1458, %v1618
      %v1620 = vpop.f32.mrb[0].mxu0
      %1621 = vmatprep.mubr.bf16.mxu0 %v398
      %1622 = vmatmul.mubr.bf16.gmra.mrb[0].mxu0 %v701
      %v1623 = vpop.f32.mrb[0].mxu0
      %v1624 = vadd.f32 %v1463, %v1623
      %v1625 = vpop.f32.mrb[0].mxu0
      %v1626 = vpop.f32.mrb[0].mxu0
      %v1627 = vadd.f32 %v1466, %v1626
      %v1628 = vpop.f32.mrb[0].mxu0
      %1629 = vmatprep.mubr.bf16.mxu0 %v399
      %1630 = vmatmul.mubr.bf16.gmra.mrb[0].mxu0 %v704
      %v1631 = vpop.f32.mrb[0].mxu0
      %v1632 = vadd.f32 %v1471, %v1631
      %v1633 = vpop.f32.mrb[0].mxu0
      %v1634 = vpop.f32.mrb[0].mxu0
      %v1635 = vadd.f32 %v1474, %v1634
      %v1636 = vpop.f32.mrb[0].mxu0
      %1637 = vmatprep.mubr.bf16.mxu0 %v400
      %1638 = vmatmul.mubr.bf16.gmra.mrb[0].mxu0 %v707
      %v1639 = vpop.f32.mrb[0].mxu0
      %v1640 = vadd.f32 %v1479, %v1639
      %v1641 = vpop.f32.mrb[0].mxu0
      %v1642 = vpop.f32.mrb[0].mxu0
      %v1643 = vadd.f32 %v1482, %v1642
      %v1644 = vpop.f32.mrb[0].mxu0
      %1645 = vmatprep.mubr.bf16.mxu0 %v401
      %1646 = vmatmul.mubr.bf16.gmra.mrb[0].mxu0 %v710
      %v1647 = vpop.f32.mrb[0].mxu0
      %v1648 = vadd.f32 %v1487, %v1647
      %v1649 = vpop.f32.mrb[0].mxu0
      %v1650 = vpop.f32.mrb[0].mxu0
      %v1651 = vadd.f32 %v1490, %v1650
      %v1652 = vpop.f32.mrb[0].mxu0
      %1653 = vmatprep.mubr.bf16.mxu0 %v402
      %1654 = vmatmul.mubr.bf16.gmra.mrb[0].mxu0 %v713
      %v1655 = vpop.f32.mrb[0].mxu0
      %v1656 = vadd.f32 %v1495, %v1655
      %v1657 = vpop.f32.mrb[0].mxu0
      %v1658 = vpop.f32.mrb[0].mxu0
      %v1659 = vadd.f32 %v1498, %v1658
      %v1660 = vpop.f32.mrb[0].mxu0
      %1661 = vmatprep.mubr.bf16.mxu0 %v403
      %1662 = vmatmul.mubr.bf16.gmra.mrb[0].mxu0 %v716
      %v1663 = vpop.f32.mrb[0].mxu0
      %v1664 = vadd.f32 %v1503, %v1663
      %v1665 = vpop.f32.mrb[0].mxu0
      %v1666 = vpop.f32.mrb[0].mxu0
      %v1667 = vadd.f32 %v1506, %v1666
      %v1668 = vpop.f32.mrb[0].mxu0
      %1669 = vmatprep.mubr.bf16.mxu0 %v404
      %1670 = vmatmul.mubr.bf16.gmra.mrb[0].mxu0 %v719
      %v1671 = vpop.f32.mrb[0].mxu0
      %v1672 = vadd.f32 %v1511, %v1671
      %v1673 = vpop.f32.mrb[0].mxu0
      %v1674 = vpop.f32.mrb[0].mxu0
      %v1675 = vadd.f32 %v1514, %v1674
      %v1676 = vpop.f32.mrb[0].mxu0
      %1677 = vmatprep.mubr.bf16.mxu0 %v405
      %1678 = vmatmul.mubr.bf16.gmra.mrb[0].mxu0 %v722
      %v1679 = vpop.f32.mrb[0].mxu0
      %v1680 = vadd.f32 %v1519, %v1679
      %v1681 = vpop.f32.mrb[0].mxu0
      %v1682 = vpop.f32.mrb[0].mxu0
      %v1683 = vadd.f32 %v1522, %v1682
      %v1684 = vpop.f32.mrb[0].mxu0
      %1685 = vmatprep.mubr.bf16.mxu0 %v406
      %1686 = vmatmul.mubr.bf16.gmra.mrb[0].mxu0 %v725
      %v1687 = vpop.f32.mrb[0].mxu0
      %v1688 = vadd.f32 %v1527, %v1687
      %v1689 = vpop.f32.mrb[0].mxu0
      %v1690 = vpop.f32.mrb[0].mxu0
      %v1691 = vadd.f32 %v1530, %v1690
      %v1692 = vpop.f32.mrb[0].mxu0
      %1693 = vmatprep.mubr.bf16.mxu0 %v749
      %1694 = vmatmul.mubr.bf16.gmra.mrb[0].mxu0 %v728
      %v1695 = vpop.f32.mrb[0].mxu0
      %v1696 = vadd.f32 %v1535, %v1695
      %v1697 = vpop.f32.mrb[0].mxu0
      %v1698 = vpop.f32.mrb[0].mxu0
      %v1699 = vadd.f32 %v1538, %v1698
      %v1700 = vpop.f32.mrb[0].mxu0
      %1701 = vdwg.mxu0
      %1702 = vmatprep.subr.bf16.mxu0 0
      %1703 = vmatpush1.bf16.msra.mxu0 %v1268
      %1704 = vmatprep.subr.bf16.mxu0 0
      %1705 = vmatpush1.bf16.msra.mxu0 %v1269
      %1706 = vmatprep.subr.bf16.mxu0 0
      %1707 = vmatpush1.bf16.msra.mxu0 %v1270
      %1708 = vmatprep.subr.bf16.mxu0 0
      %1709 = vmatpush1.bf16.msra.mxu0 %v1271
      %1710 = vmatprep.subr.bf16.mxu0 0
      %1711 = vmatpush1.bf16.msra.mxu0 %v1272
      %1712 = vmatprep.subr.bf16.mxu0 0
      %1713 = vmatpush1.bf16.msra.mxu0 %v1273
      %1714 = vmatprep.subr.bf16.mxu0 0
      %1715 = vmatpush1.bf16.msra.mxu0 %v1274
      %1716 = vmatprep.subr.bf16.mxu0 0
      %1717 = vmatpush1.bf16.msra.mxu0 %v1275
      %1718 = vmatprep.subr.bf16.mxu0 0
      %1719 = vmatpush1.bf16.msra.mxu0 %v1276
      %1720 = vmatprep.subr.bf16.mxu0 0
      %1721 = vmatpush1.bf16.msra.mxu0 %v1277
      %1722 = vmatprep.subr.bf16.mxu0 0
      %1723 = vmatpush1.bf16.msra.mxu0 %v1278
      %1724 = vmatprep.subr.bf16.mxu0 0
      %1725 = vmatpush1.bf16.msra.mxu0 %v1279
      %1726 = vmatprep.subr.bf16.mxu0 0
      %1727 = vmatpush1.bf16.msra.mxu0 %v1280
      %1728 = vmatprep.subr.bf16.mxu0 0
      %1729 = vmatpush1.bf16.msra.mxu0 %v1281
      %1730 = vmatprep.subr.bf16.mxu0 0
      %1731 = vmatpush1.bf16.msra.mxu0 %v1282
      %1732 = vmatprep.subr.bf16.mxu0 0
      %1733 = vmatpush1.bf16.msra.mxu0 %v1283
      %1734 = vmatprep.mubr.bf16.mxu0 %v686
      %1735 = vmatmul.mubr.bf16.gmra.mrb[0].mxu0 %v495
      %v1736 = vpop.f32.mrb[0].mxu0
      %v1737 = vadd.f32 %v1576, %v1736
      %v1738 = vpop.f32.mrb[0].mxu0
      %v1739 = vpop.f32.mrb[0].mxu0
      %v1740 = vadd.f32 %v1579, %v1739
      %v1741 = vpop.f32.mrb[0].mxu0
      %1742 = vmatprep.mubr.bf16.mxu0 %v689
      %1743 = vmatmul.mubr.bf16.gmra.mrb[0].mxu0 %v507
      %v1744 = vpop.f32.mrb[0].mxu0
      %v1745 = vadd.f32 %v1584, %v1744
      %v1746 = vpop.f32.mrb[0].mxu0
      %v1747 = vpop.f32.mrb[0].mxu0
      %v1748 = vadd.f32 %v1587, %v1747
      %v1749 = vpop.f32.mrb[0].mxu0
      %1750 = vmatprep.mubr.bf16.mxu0 %v692
      %1751 = vmatmul.mubr.bf16.gmra.mrb[0].mxu0 %v519
      %v1752 = vpop.f32.mrb[0].mxu0
      %v1753 = vadd.f32 %v1592, %v1752
      %v1754 = vpop.f32.mrb[0].mxu0
      %v1755 = vpop.f32.mrb[0].mxu0
      %v1756 = vadd.f32 %v1595, %v1755
      %v1757 = vpop.f32.mrb[0].mxu0
      %1758 = vmatprep.mubr.bf16.mxu0 %v695
      %1759 = vmatmul.mubr.bf16.gmra.mrb[0].mxu0 %v531
      %v1760 = vpop.f32.mrb[0].mxu0
      %v1761 = vadd.f32 %v1600, %v1760
      %v1762 = vpop.f32.mrb[0].mxu0
      %v1763 = vpop.f32.mrb[0].mxu0
      %v1764 = vadd.f32 %v1603, %v1763
      %v1765 = vpop.f32.mrb[0].mxu0
      %1766 = vmatprep.mubr.bf16.mxu0 %v698
      %1767 = vmatmul.mubr.bf16.gmra.mrb[0].mxu0 %v543
      %v1768 = vpop.f32.mrb[0].mxu0
      %v1769 = vadd.f32 %v1608, %v1768
      %v1770 = vpop.f32.mrb[0].mxu0
      %v1771 = vpop.f32.mrb[0].mxu0
      %v1772 = vadd.f32 %v1611, %v1771
      %v1773 = vpop.f32.mrb[0].mxu0
      %1774 = vmatprep.mubr.bf16.mxu0 %v701
      %1775 = vmatmul.mubr.bf16.gmra.mrb[0].mxu0 %v555
      %v1776 = vpop.f32.mrb[0].mxu0
      %v1777 = vadd.f32 %v1616, %v1776
      %v1778 = vpop.f32.mrb[0].mxu0
      %v1779 = vpop.f32.mrb[0].mxu0
      %v1780 = vadd.f32 %v1619, %v1779
      %v1781 = vpop.f32.mrb[0].mxu0
      %1782 = vmatprep.mubr.bf16.mxu0 %v704
      %1783 = vmatmul.mubr.bf16.gmra.mrb[0].mxu0 %v567
      %v1784 = vpop.f32.mrb[0].mxu0
      %v1785 = vadd.f32 %v1624, %v1784
      %v1786 = vpop.f32.mrb[0].mxu0
      %v1787 = vpop.f32.mrb[0].mxu0
      %v1788 = vadd.f32 %v1627, %v1787
      %v1789 = vpop.f32.mrb[0].mxu0
      %1790 = vmatprep.mubr.bf16.mxu0 %v707
      %1791 = vmatmul.mubr.bf16.gmra.mrb[0].mxu0 %v579
      %v1792 = vpop.f32.mrb[0].mxu0
      %v1793 = vadd.f32 %v1632, %v1792
      %v1794 = vpop.f32.mrb[0].mxu0
      %v1795 = vpop.f32.mrb[0].mxu0
      %v1796 = vadd.f32 %v1635, %v1795
      %v1797 = vpop.f32.mrb[0].mxu0
      %1798 = vmatprep.mubr.bf16.mxu0 %v710
      %1799 = vmatmul.mubr.bf16.gmra.mrb[0].mxu0 %v591
      %v1800 = vpop.f32.mrb[0].mxu0
      %v1801 = vadd.f32 %v1640, %v1800
      %v1802 = vpop.f32.mrb[0].mxu0
      %v1803 = vpop.f32.mrb[0].mxu0
      %v1804 = vadd.f32 %v1643, %v1803
      %v1805 = vpop.f32.mrb[0].mxu0
      %1806 = vmatprep.mubr.bf16.mxu0 %v713
      %1807 = vmatmul.mubr.bf16.gmra.mrb[0].mxu0 %v603
      %v1808 = vpop.f32.mrb[0].mxu0
      %v1809 = vadd.f32 %v1648, %v1808
      %v1810 = vpop.f32.mrb[0].mxu0
      %v1811 = vpop.f32.mrb[0].mxu0
      %v1812 = vadd.f32 %v1651, %v1811
      %v1813 = vpop.f32.mrb[0].mxu0
      %1814 = vmatprep.mubr.bf16.mxu0 %v716
      %1815 = vmatmul.mubr.bf16.gmra.mrb[0].mxu0 %v615
      %v1816 = vpop.f32.mrb[0].mxu0
      %v1817 = vadd.f32 %v1656, %v1816
      %v1818 = vpop.f32.mrb[0].mxu0
      %v1819 = vpop.f32.mrb[0].mxu0
      %v1820 = vadd.f32 %v1659, %v1819
      %v1821 = vpop.f32.mrb[0].mxu0
      %1822 = vmatprep.mubr.bf16.mxu0 %v719
      %1823 = vmatmul.mubr.bf16.gmra.mrb[0].mxu0 %v627
      %v1824 = vpop.f32.mrb[0].mxu0
      %v1825 = vadd.f32 %v1664, %v1824
      %v1826 = vpop.f32.mrb[0].mxu0
      %v1827 = vpop.f32.mrb[0].mxu0
      %v1828 = vadd.f32 %v1667, %v1827
      %v1829 = vpop.f32.mrb[0].mxu0
      %1830 = vmatprep.mubr.bf16.mxu0 %v722
      %1831 = vmatmul.mubr.bf16.gmra.mrb[0].mxu0 %v639
      %v1832 = vpop.f32.mrb[0].mxu0
      %v1833 = vadd.f32 %v1672, %v1832
      %v1834 = vpop.f32.mrb[0].mxu0
      %v1835 = vpop.f32.mrb[0].mxu0
      %v1836 = vadd.f32 %v1675, %v1835
      %v1837 = vpop.f32.mrb[0].mxu0
      %1838 = vmatprep.mubr.bf16.mxu0 %v725
      %1839 = vmatmul.mubr.bf16.gmra.mrb[0].mxu0 %v651
      %v1840 = vpop.f32.mrb[0].mxu0
      %v1841 = vadd.f32 %v1680, %v1840
      %v1842 = vpop.f32.mrb[0].mxu0
      %v1843 = vpop.f32.mrb[0].mxu0
      %v1844 = vadd.f32 %v1683, %v1843
      %v1845 = vpop.f32.mrb[0].mxu0
      %1846 = vmatprep.mubr.bf16.mxu0 %v728
      %1847 = vmatmul.mubr.bf16.gmra.mrb[0].mxu0 %v663
      %v1848 = vpop.f32.mrb[0].mxu0
      %v1849 = vadd.f32 %v1688, %v1848
      %v1850 = vpop.f32.mrb[0].mxu0
      %v1851 = vpop.f32.mrb[0].mxu0
      %v1852 = vadd.f32 %v1691, %v1851
      %v1853 = vpop.f32.mrb[0].mxu0
      %1854 = vmatprep.mubr.bf16.mxu0 %v769
      %1855 = vmatmul.mubr.bf16.gmra.mrb[0].mxu0 %v765
      %v1856 = vpop.f32.mrb[0].mxu0
      %v1857 = vadd.f32 %v1696, %v1856
      %v1858 = vpop.f32.mrb[0].mxu0
      %v1859 = vpop.f32.mrb[0].mxu0
      %v1860 = vadd.f32 %v1699, %v1859
      %v1861 = vpop.f32.mrb[0].mxu0
      %1862 = vdwg.mxu0
      %1863 = vmatprep.subr.bf16.mxu0 0
      %1864 = vmatpush1.bf16.msra.mxu0 %v1284
      %1865 = vmatprep.subr.bf16.mxu0 0
      %1866 = vmatpush1.bf16.msra.mxu0 %v1285
      %1867 = vmatprep.subr.bf16.mxu0 0
      %1868 = vmatpush1.bf16.msra.mxu0 %v1286
      %1869 = vmatprep.subr.bf16.mxu0 0
      %1870 = vmatpush1.bf16.msra.mxu0 %v1287
      %1871 = vmatprep.subr.bf16.mxu0 0
      %1872 = vmatpush1.bf16.msra.mxu0 %v1288
      %1873 = vmatprep.subr.bf16.mxu0 0
      %1874 = vmatpush1.bf16.msra.mxu0 %v1289
      %1875 = vmatprep.subr.bf16.mxu0 0
      %1876 = vmatpush1.bf16.msra.mxu0 %v1290
      %1877 = vmatprep.subr.bf16.mxu0 0
      %1878 = vmatpush1.bf16.msra.mxu0 %v1291
      %1879 = vmatprep.subr.bf16.mxu0 0
      %1880 = vmatpush1.bf16.msra.mxu0 %v1292
      %1881 = vmatprep.subr.bf16.mxu0 0
      %1882 = vmatpush1.bf16.msra.mxu0 %v1293
      %1883 = vmatprep.subr.bf16.mxu0 0
      %1884 = vmatpush1.bf16.msra.mxu0 %v1294
      %1885 = vmatprep.subr.bf16.mxu0 0
      %1886 = vmatpush1.bf16.msra.mxu0 %v1295
      %1887 = vmatprep.subr.bf16.mxu0 0
      %1888 = vmatpush1.bf16.msra.mxu0 %v1296
      %1889 = vmatprep.subr.bf16.mxu0 0
      %1890 = vmatpush1.bf16.msra.mxu0 %v1297
      %1891 = vmatprep.subr.bf16.mxu0 0
      %1892 = vmatpush1.bf16.msra.mxu0 %v1298
      %1893 = vmatprep.subr.bf16.mxu0 0
      %1894 = vmatpush1.bf16.msra.mxu0 %v1299
      %1895 = vmatprep.mubr.bf16.mxu0 %v507
      %1896 = vmatmul.mubr.bf16.gmra.mrb[0].mxu0 %v393
      %v1897 = vpop.f32.mrb[0].mxu0
      %v1898 = vadd.f32 %v1737, %v1897
      %v1899 = vpop.f32.mrb[0].mxu0
      %v1900 = vpop.f32.mrb[0].mxu0
      %v1901 = vadd.f32 %v1740, %v1900
      %v1902 = vpop.f32.mrb[0].mxu0
      %1903 = vmatprep.mubr.bf16.mxu0 %v519
      %1904 = vmatmul.mubr.bf16.gmra.mrb[0].mxu0 %v394
      %v1905 = vpop.f32.mrb[0].mxu0
      %v1906 = vadd.f32 %v1745, %v1905
      %v1907 = vpop.f32.mrb[0].mxu0
      %v1908 = vpop.f32.mrb[0].mxu0
      %v1909 = vadd.f32 %v1748, %v1908
      %v1910 = vpop.f32.mrb[0].mxu0
      %1911 = vmatprep.mubr.bf16.mxu0 %v531
      %1912 = vmatmul.mubr.bf16.gmra.mrb[0].mxu0 %v395
      %v1913 = vpop.f32.mrb[0].mxu0
      %v1914 = vadd.f32 %v1753, %v1913
      %v1915 = vpop.f32.mrb[0].mxu0
      %v1916 = vpop.f32.mrb[0].mxu0
      %v1917 = vadd.f32 %v1756, %v1916
      %v1918 = vpop.f32.mrb[0].mxu0
      %1919 = vmatprep.mubr.bf16.mxu0 %v543
      %1920 = vmatmul.mubr.bf16.gmra.mrb[0].mxu0 %v396
      %v1921 = vpop.f32.mrb[0].mxu0
      %v1922 = vadd.f32 %v1761, %v1921
      %v1923 = vpop.f32.mrb[0].mxu0
      %v1924 = vpop.f32.mrb[0].mxu0
      %v1925 = vadd.f32 %v1764, %v1924
      %v1926 = vpop.f32.mrb[0].mxu0
      %1927 = vmatprep.mubr.bf16.mxu0 %v555
      %1928 = vmatmul.mubr.bf16.gmra.mrb[0].mxu0 %v397
      %v1929 = vpop.f32.mrb[0].mxu0
      %v1930 = vadd.f32 %v1769, %v1929
      %v1931 = vpop.f32.mrb[0].mxu0
      %v1932 = vpop.f32.mrb[0].mxu0
      %v1933 = vadd.f32 %v1772, %v1932
      %v1934 = vpop.f32.mrb[0].mxu0
      %1935 = vmatprep.mubr.bf16.mxu0 %v567
      %1936 = vmatmul.mubr.bf16.gmra.mrb[0].mxu0 %v398
      %v1937 = vpop.f32.mrb[0].mxu0
      %v1938 = vadd.f32 %v1777, %v1937
      %v1939 = vpop.f32.mrb[0].mxu0
      %v1940 = vpop.f32.mrb[0].mxu0
      %v1941 = vadd.f32 %v1780, %v1940
      %v1942 = vpop.f32.mrb[0].mxu0
      %1943 = vmatprep.mubr.bf16.mxu0 %v579
      %1944 = vmatmul.mubr.bf16.gmra.mrb[0].mxu0 %v399
      %v1945 = vpop.f32.mrb[0].mxu0
      %v1946 = vadd.f32 %v1785, %v1945
      %v1947 = vpop.f32.mrb[0].mxu0
      %v1948 = vpop.f32.mrb[0].mxu0
      %v1949 = vadd.f32 %v1788, %v1948
      %v1950 = vpop.f32.mrb[0].mxu0
      %1951 = vmatprep.mubr.bf16.mxu0 %v591
      %1952 = vmatmul.mubr.bf16.gmra.mrb[0].mxu0 %v400
      %v1953 = vpop.f32.mrb[0].mxu0
      %v1954 = vadd.f32 %v1793, %v1953
      %v1955 = vpop.f32.mrb[0].mxu0
      %v1956 = vpop.f32.mrb[0].mxu0
      %v1957 = vadd.f32 %v1796, %v1956
      %v1958 = vpop.f32.mrb[0].mxu0
      %1959 = vmatprep.mubr.bf16.mxu0 %v603
      %1960 = vmatmul.mubr.bf16.gmra.mrb[0].mxu0 %v401
      %v1961 = vpop.f32.mrb[0].mxu0
      %v1962 = vadd.f32 %v1801, %v1961
      %v1963 = vpop.f32.mrb[0].mxu0
      %v1964 = vpop.f32.mrb[0].mxu0
      %v1965 = vadd.f32 %v1804, %v1964
      %v1966 = vpop.f32.mrb[0].mxu0
      %1967 = vmatprep.mubr.bf16.mxu0 %v615
      %1968 = vmatmul.mubr.bf16.gmra.mrb[0].mxu0 %v402
      %v1969 = vpop.f32.mrb[0].mxu0
      %v1970 = vadd.f32 %v1809, %v1969
      %v1971 = vpop.f32.mrb[0].mxu0
      %v1972 = vpop.f32.mrb[0].mxu0
      %v1973 = vadd.f32 %v1812, %v1972
      %v1974 = vpop.f32.mrb[0].mxu0
      %1975 = vmatprep.mubr.bf16.mxu0 %v627
      %1976 = vmatmul.mubr.bf16.gmra.mrb[0].mxu0 %v403
      %v1977 = vpop.f32.mrb[0].mxu0
      %v1978 = vadd.f32 %v1817, %v1977
      %v1979 = vpop.f32.mrb[0].mxu0
      %v1980 = vpop.f32.mrb[0].mxu0
      %v1981 = vadd.f32 %v1820, %v1980
      %v1982 = vpop.f32.mrb[0].mxu0
      %1983 = vmatprep.mubr.bf16.mxu0 %v639
      %1984 = vmatmul.mubr.bf16.gmra.mrb[0].mxu0 %v404
      %v1985 = vpop.f32.mrb[0].mxu0
      %v1986 = vadd.f32 %v1825, %v1985
      %v1987 = vpop.f32.mrb[0].mxu0
      %v1988 = vpop.f32.mrb[0].mxu0
      %v1989 = vadd.f32 %v1828, %v1988
      %v1990 = vpop.f32.mrb[0].mxu0
      %1991 = vmatprep.mubr.bf16.mxu0 %v651
      %1992 = vmatmul.mubr.bf16.gmra.mrb[0].mxu0 %v405
      %v1993 = vpop.f32.mrb[0].mxu0
      %v1994 = vadd.f32 %v1833, %v1993
      %v1995 = vpop.f32.mrb[0].mxu0
      %v1996 = vpop.f32.mrb[0].mxu0
      %v1997 = vadd.f32 %v1836, %v1996
      %v1998 = vpop.f32.mrb[0].mxu0
      %1999 = vmatprep.mubr.bf16.mxu0 %v663
      %2000 = vmatmul.mubr.bf16.gmra.mrb[0].mxu0 %v406
      %v2001 = vpop.f32.mrb[0].mxu0
      %v2002 = vadd.f32 %v1841, %v2001
      %v2003 = vpop.f32.mrb[0].mxu0
      %v2004 = vpop.f32.mrb[0].mxu0
      %v2005 = vadd.f32 %v1844, %v2004
      %v2006 = vpop.f32.mrb[0].mxu0
      %2007 = vmatprep.mubr.bf16.mxu0 %v765
      %2008 = vmatmul.mubr.bf16.gmra.mrb[0].mxu0 %v749
      %v2009 = vpop.f32.mrb[0].mxu0
      %v2010 = vadd.f32 %v1849, %v2009
      %v2011 = vpop.f32.mrb[0].mxu0
      %v2012 = vpop.f32.mrb[0].mxu0
      %v2013 = vadd.f32 %v1852, %v2012
      %v2014 = vpop.f32.mrb[0].mxu0
      %2015 = vmatprep.mubr.bf16.mxu0 %v791
      %2016 = vmatmul.mubr.bf16.gmra.mrb[0].mxu0 %v775
      %v2017 = vpop.f32.mrb[0].mxu0
      %v2018 = vadd.f32 %v1857, %v2017
      %v2019 = vpop.f32.mrb[0].mxu0
      %v2020 = vpop.f32.mrb[0].mxu0
      %v2021 = vadd.f32 %v1860, %v2020
      %v2022 = vpop.f32.mrb[0].mxu0
      %2023 = vdwg.mxu0
      %2024 = vmatprep.subr.bf16.mxu0 0
      %2025 = vmatpush1.bf16.msra.mxu0 %v1300
      %2026 = vmatprep.subr.bf16.mxu0 0
      %2027 = vmatpush1.bf16.msra.mxu0 %v1301
      %2028 = vmatprep.subr.bf16.mxu0 0
      %2029 = vmatpush1.bf16.msra.mxu0 %v1302
      %2030 = vmatprep.subr.bf16.mxu0 0
      %2031 = vmatpush1.bf16.msra.mxu0 %v1303
      %2032 = vmatprep.subr.bf16.mxu0 0
      %2033 = vmatpush1.bf16.msra.mxu0 %v1304
      %2034 = vmatprep.subr.bf16.mxu0 0
      %2035 = vmatpush1.bf16.msra.mxu0 %v1305
      %2036 = vmatprep.subr.bf16.mxu0 0
      %2037 = vmatpush1.bf16.msra.mxu0 %v1306
      %2038 = vmatprep.subr.bf16.mxu0 0
      %2039 = vmatpush1.bf16.msra.mxu0 %v1307
      %2040 = vmatprep.subr.bf16.mxu0 0
      %2041 = vmatpush1.bf16.msra.mxu0 0
      %2042 = vmatprep.subr.bf16.mxu0 0
      %2043 = vmatpush1.bf16.msra.mxu0 0
      %2044 = vmatprep.subr.bf16.mxu0 0
      %2045 = vmatpush1.bf16.msra.mxu0 0
      %2046 = vmatprep.subr.bf16.mxu0 0
      %2047 = vmatpush1.bf16.msra.mxu0 0
      %2048 = vmatprep.subr.bf16.mxu0 0
      %2049 = vmatpush1.bf16.msra.mxu0 0
      %2050 = vmatprep.subr.bf16.mxu0 0
      %2051 = vmatpush1.bf16.msra.mxu0 0
      %2052 = vmatprep.subr.bf16.mxu0 0
      %2053 = vmatpush1.bf16.msra.mxu0 0
      %2054 = vmatprep.subr.bf16.mxu0 0
      %2055 = vmatpush1.bf16.msra.mxu0 0
      %2056 = vmatprep.mubr.bf16.mxu0 0
      %2057 = vmatmul.mubr.bf16.gmra.mrb[0].mxu0 %v689
      %v2058 = vpop.f32.mrb[0].mxu0
      %v2059 = vadd.f32 %v1898, %v2058
      %v2060 = vpop.f32.mrb[0].mxu0
      %v2061 = vpop.f32.mrb[0].mxu0
      %v2062 = vadd.f32 %v1901, %v2061
      %v2063 = vpop.f32.mrb[0].mxu0
      %2064 = vmatprep.mubr.bf16.mxu0 0
      %2065 = vmatmul.mubr.bf16.gmra.mrb[0].mxu0 %v692
      %v2066 = vpop.f32.mrb[0].mxu0
      %v2067 = vadd.f32 %v1906, %v2066
      %v2068 = vpop.f32.mrb[0].mxu0
      %v2069 = vpop.f32.mrb[0].mxu0
      %v2070 = vadd.f32 %v1909, %v2069
      %v2071 = vpop.f32.mrb[0].mxu0
      %2072 = vmatprep.mubr.bf16.mxu0 0
      %2073 = vmatmul.mubr.bf16.gmra.mrb[0].mxu0 %v695
      %v2074 = vpop.f32.mrb[0].mxu0
      %v2075 = vadd.f32 %v1914, %v2074
      %v2076 = vpop.f32.mrb[0].mxu0
      %v2077 = vpop.f32.mrb[0].mxu0
      %v2078 = vadd.f32 %v1917, %v2077
      %v2079 = vpop.f32.mrb[0].mxu0
      %2080 = vmatprep.mubr.bf16.mxu0 0
      %2081 = vmatmul.mubr.bf16.gmra.mrb[0].mxu0 %v698
      %v2082 = vpop.f32.mrb[0].mxu0
      %v2083 = vadd.f32 %v1922, %v2082
      %v2084 = vpop.f32.mrb[0].mxu0
      %v2085 = vpop.f32.mrb[0].mxu0
      %v2086 = vadd.f32 %v1925, %v2085
      %v2087 = vpop.f32.mrb[0].mxu0
      %2088 = vmatprep.mubr.bf16.mxu0 0
      %2089 = vmatmul.mubr.bf16.gmra.mrb[0].mxu0 %v701
      %v2090 = vpop.f32.mrb[0].mxu0
      %v2091 = vadd.f32 %v1930, %v2090
      %v2092 = vpop.f32.mrb[0].mxu0
      %v2093 = vpop.f32.mrb[0].mxu0
      %v2094 = vadd.f32 %v1933, %v2093
      %v2095 = vpop.f32.mrb[0].mxu0
      %2096 = vmatprep.mubr.bf16.mxu0 0
      %2097 = vmatmul.mubr.bf16.gmra.mrb[0].mxu0 %v704
      %v2098 = vpop.f32.mrb[0].mxu0
      %v2099 = vadd.f32 %v1938, %v2098
      %v2100 = vpop.f32.mrb[0].mxu0
      %v2101 = vpop.f32.mrb[0].mxu0
      %v2102 = vadd.f32 %v1941, %v2101
      %v2103 = vpop.f32.mrb[0].mxu0
      %2104 = vmatprep.mubr.bf16.mxu0 0
      %2105 = vmatmul.mubr.bf16.gmra.mrb[0].mxu0 %v707
      %v2106 = vpop.f32.mrb[0].mxu0
      %v2107 = vadd.f32 %v1946, %v2106
      %v2108 = vpop.f32.mrb[0].mxu0
      %v2109 = vpop.f32.mrb[0].mxu0
      %v2110 = vadd.f32 %v1949, %v2109
      %v2111 = vpop.f32.mrb[0].mxu0
      %2112 = vmatprep.mubr.bf16.mxu0 0
      %2113 = vmatmul.mubr.bf16.gmra.mrb[0].mxu0 %v710
      %v2114 = vpop.f32.mrb[0].mxu0
      %v2115 = vadd.f32 %v1954, %v2114
      %v2116 = vpop.f32.mrb[0].mxu0
      %v2117 = vpop.f32.mrb[0].mxu0
      %v2118 = vadd.f32 %v1957, %v2117
      %v2119 = vpop.f32.mrb[0].mxu0
      %2120 = vmatprep.mubr.bf16.mxu0 0
      %2121 = vmatmul.mubr.bf16.gmra.mrb[0].mxu0 %v713
      %v2122 = vpop.f32.mrb[0].mxu0
      %v2123 = vadd.f32 %v1962, %v2122
      %v2124 = vpop.f32.mrb[0].mxu0
      %v2125 = vpop.f32.mrb[0].mxu0
      %v2126 = vadd.f32 %v1965, %v2125
      %v2127 = vpop.f32.mrb[0].mxu0
      %2128 = vmatprep.mubr.bf16.mxu0 0
      %2129 = vmatmul.mubr.bf16.gmra.mrb[0].mxu0 %v716
      %v2130 = vpop.f32.mrb[0].mxu0
      %v2131 = vadd.f32 %v1970, %v2130
      %v2132 = vpop.f32.mrb[0].mxu0
      %v2133 = vpop.f32.mrb[0].mxu0
      %v2134 = vadd.f32 %v1973, %v2133
      %v2135 = vpop.f32.mrb[0].mxu0
      %2136 = vmatprep.mubr.bf16.mxu0 0
      %2137 = vmatmul.mubr.bf16.gmra.mrb[0].mxu0 %v719
      %v2138 = vpop.f32.mrb[0].mxu0
      %v2139 = vadd.f32 %v1978, %v2138
      %v2140 = vpop.f32.mrb[0].mxu0
      %v2141 = vpop.f32.mrb[0].mxu0
      %v2142 = vadd.f32 %v1981, %v2141
      %v2143 = vpop.f32.mrb[0].mxu0
      %2144 = vmatprep.mubr.bf16.mxu0 0
      %2145 = vmatmul.mubr.bf16.gmra.mrb[0].mxu0 %v722
      %v2146 = vpop.f32.mrb[0].mxu0
      %v2147 = vadd.f32 %v1986, %v2146
      %v2148 = vpop.f32.mrb[0].mxu0
      %v2149 = vpop.f32.mrb[0].mxu0
      %v2150 = vadd.f32 %v1989, %v2149
      %v2151 = vpop.f32.mrb[0].mxu0
      %2152 = vmatprep.mubr.bf16.mxu0 0
      %2153 = vmatmul.mubr.bf16.gmra.mrb[0].mxu0 %v725
      %v2154 = vpop.f32.mrb[0].mxu0
      %v2155 = vadd.f32 %v1994, %v2154
      %v2156 = vpop.f32.mrb[0].mxu0
      %v2157 = vpop.f32.mrb[0].mxu0
      %v2158 = vadd.f32 %v1997, %v2157
      %v2159 = vpop.f32.mrb[0].mxu0
      %2160 = vmatprep.mubr.bf16.mxu0 0
      %2161 = vmatmul.mubr.bf16.gmra.mrb[0].mxu0 %v728
      %v2162 = vpop.f32.mrb[0].mxu0
      %v2163 = vadd.f32 %v2002, %v2162
      %v2164 = vpop.f32.mrb[0].mxu0
      %v2165 = vpop.f32.mrb[0].mxu0
      %v2166 = vadd.f32 %v2005, %v2165
      %v2167 = vpop.f32.mrb[0].mxu0
      %2168 = vmatprep.mubr.bf16.mxu0 0
      %2169 = vmatmul.mubr.bf16.gmra.mrb[0].mxu0 %v769
      %v2170 = vpop.f32.mrb[0].mxu0
      %v2171 = vadd.f32 %v2010, %v2170
      %v2172 = vpop.f32.mrb[0].mxu0
      %v2173 = vpop.f32.mrb[0].mxu0
      %v2174 = vadd.f32 %v2013, %v2173
      %v2175 = vpop.f32.mrb[0].mxu0
      %2176 = vmatprep.mubr.bf16.mxu0 0
      %2177 = vmatmul.mubr.bf16.gmra.mrb[0].mxu0 %v795
      %v2178 = vpop.f32.mrb[0].mxu0
      %v2179 = vadd.f32 %v2018, %v2178
      %v2180 = vpop.f32.mrb[0].mxu0
      %v2181 = vpop.f32.mrb[0].mxu0
      %v2182 = vadd.f32 %v2021, %v2181
      %v2183 = vpop.f32.mrb[0].mxu0
      %2184 = vdwg.mxu0
      %v2185 = vunpack.c.l.bf16 %v276
      %v2186 = vunpack.c.l.bf16 %v277
      %v2187 = vunpack.c.l.bf16 %v278
      %v2188 = vunpack.c.l.bf16 %v279
      %v2189 = vunpack.c.l.bf16 %v280
      %v2190 = vunpack.c.l.bf16 %v281
      %v2191 = vunpack.c.l.bf16 %v282
      %v2192 = vunpack.c.l.bf16 %v283
      %v2193 = vunpack.c.l.bf16 %v284
      %v2194 = vunpack.c.l.bf16 %v285
      %v2195 = vunpack.c.l.bf16 %v286
      %v2196 = vunpack.c.l.bf16 %v287
      %v2197 = vunpack.c.l.bf16 %v288
      %v2198 = vunpack.c.l.bf16 %v289
      %v2199 = vunpack.c.l.bf16 %v290
      %v2200 = vunpack.c.l.bf16 %v291
      %v2201 = vunpack.c.l.bf16 %v292
      %v2202 = vunpack.c.l.bf16 %v293
      %v2203 = vunpack.c.l.bf16 %v294
      %v2204 = vunpack.c.l.bf16 %v295
      %v2205 = vunpack.c.l.bf16 %v296
      %v2206 = vunpack.c.l.bf16 %v297
      %v2207 = vunpack.c.l.bf16 %v298
      %v2208 = vunpack.c.l.bf16 %v299
      %v2209 = vunpack.c.l.bf16 %v300
      %v2210 = vunpack.c.l.bf16 %v301
      %v2211 = vunpack.c.l.bf16 %v302
      %v2212 = vunpack.c.l.bf16 %v303
      %v2213 = vunpack.c.l.bf16 %v304
      %v2214 = vunpack.c.l.bf16 %v305
      %v2215 = vunpack.c.l.bf16 %v306
      %v2216 = vunpack.c.l.bf16 %v307
      %v2217 = vunpack.c.l.bf16 %v308
      %v2218 = vunpack.c.l.bf16 %v309
      %v2219 = vunpack.c.l.bf16 %v310
      %v2220 = vunpack.c.l.bf16 %v311
      %v2221 = vunpack.c.l.bf16 %v312
      %v2222 = vunpack.c.l.bf16 %v313
      %v2223 = vunpack.c.l.bf16 %v314
      %v2224 = vunpack.c.l.bf16 %v315
      %v2225 = vunpack.c.l.bf16 %v316
      %v2226 = vunpack.c.l.bf16 %v317
      %v2227 = vunpack.c.l.bf16 %v318
      %v2228 = vunpack.c.l.bf16 %v319
      %v2229 = vunpack.c.l.bf16 %v320
      %v2230 = vunpack.c.l.bf16 %v321
      %v2231 = vunpack.c.l.bf16 %v322
      %v2232 = vunpack.c.l.bf16 %v323
      %v2233 = vld [vmem:[%s266] sm:$0xff]
      %v2234 = vld [vmem:[%s266 + $0x8] sm:$0xff]
      %v2235 = vld [vmem:[%s266 + $0x10] sm:$0xff]
      %v2236 = vld [vmem:[%s266 + $0x18] sm:$0xff]
      %v2237 = vld [vmem:[%s266 + $0x20] sm:$0xff]
      %v2238 = vld [vmem:[%s266 + $0x28] sm:$0xff]
      %v2239 = vld [vmem:[%s266 + $0x30] sm:$0xff]
      %v2240 = vld [vmem:[%s266 + $0x38] sm:$0xff]
      %vm2249 = vcmask 1040384
      %v2250 = vrot.slane %v2233, 7
      %v2251 = vrot.slane %v2234, 7
      %v2252 = vsel %vm2249, %v2250, %v2251
      %v2253 = vrot.slane %v2235, 7
      %v2254 = vrot.slane %v2236, 7
      %v2255 = vsel %vm2249, %v2253, %v2254
      %v2256 = vrot.slane %v2237, 7
      %v2257 = vrot.slane %v2238, 7
      %v2258 = vsel %vm2249, %v2256, %v2257
      %v2259 = vrot.slane %v2239, 7
      %v2260 = vrot.slane %v2240, 7
      %v2261 = vsel %vm2249, %v2259, %v2260
      %v2274 = vadd.f32 %v2185, %v2250
      %v2275 = vadd.f32 %v2186, %v2252
      %v2276 = vadd.f32 %v2187, %v2251
      %v2277 = vadd.f32 %v2188, %v2250
      %v2278 = vadd.f32 %v2189, %v2252
      %v2279 = vadd.f32 %v2190, %v2251
      %v2280 = vadd.f32 %v2191, %v2250
      %v2281 = vadd.f32 %v2192, %v2252
      %v2282 = vadd.f32 %v2193, %v2251
      %v2283 = vadd.f32 %v2194, %v2250
      %v2284 = vadd.f32 %v2195, %v2252
      %v2285 = vadd.f32 %v2196, %v2251
      %v2286 = vadd.f32 %v2197, %v2253
      %v2287 = vadd.f32 %v2198, %v2255
      %v2288 = vadd.f32 %v2199, %v2254
      %v2289 = vadd.f32 %v2200, %v2253
      %v2290 = vadd.f32 %v2201, %v2255
      %v2291 = vadd.f32 %v2202, %v2254
      %v2292 = vadd.f32 %v2203, %v2253
      %v2293 = vadd.f32 %v2204, %v2255
      %v2294 = vadd.f32 %v2205, %v2254
      %v2295 = vadd.f32 %v2206, %v2253
      %v2296 = vadd.f32 %v2207, %v2255
      %v2297 = vadd.f32 %v2208, %v2254
      %v2298 = vadd.f32 %v2209, %v2256
      %v2299 = vadd.f32 %v2210, %v2258
      %v2300 = vadd.f32 %v2211, %v2257
      %v2301 = vadd.f32 %v2212, %v2256
      %v2302 = vadd.f32 %v2213, %v2258
      %v2303 = vadd.f32 %v2214, %v2257
      %v2304 = vadd.f32 %v2215, %v2256
      %v2305 = vadd.f32 %v2216, %v2258
      %v2306 = vadd.f32 %v2217, %v2257
      %v2307 = vadd.f32 %v2218, %v2256
      %v2308 = vadd.f32 %v2219, %v2258
      %v2309 = vadd.f32 %v2220, %v2257
      %v2310 = vadd.f32 %v2221, %v2259
      %v2311 = vadd.f32 %v2222, %v2261
      %v2312 = vadd.f32 %v2223, %v2260
      %v2313 = vadd.f32 %v2224, %v2259
      %v2314 = vadd.f32 %v2225, %v2261
      %v2315 = vadd.f32 %v2226, %v2260
      %v2316 = vadd.f32 %v2227, %v2259
      %v2317 = vadd.f32 %v2228, %v2261
      %v2318 = vadd.f32 %v2229, %v2260
      %v2319 = vadd.f32 %v2230, %v2259
      %v2320 = vadd.f32 %v2231, %v2261
      %v2321 = vadd.f32 %v2232, %v2260
      %v2322 = vxor.u32 %v2274, 2147483648
      %v2323 = vxor.u32 %v2275, 2147483648
      %v2324 = vxor.u32 %v2276, 2147483648
      %v2325 = vxor.u32 %v2277, 2147483648
      %v2326 = vxor.u32 %v2278, 2147483648
      %v2327 = vxor.u32 %v2279, 2147483648
      %v2328 = vxor.u32 %v2280, 2147483648
      %v2329 = vxor.u32 %v2281, 2147483648
      %v2330 = vxor.u32 %v2282, 2147483648
      %v2331 = vxor.u32 %v2283, 2147483648
      %v2332 = vxor.u32 %v2284, 2147483648
      %v2333 = vxor.u32 %v2285, 2147483648
      %v2334 = vxor.u32 %v2286, 2147483648
      %v2335 = vxor.u32 %v2287, 2147483648
      %v2336 = vxor.u32 %v2288, 2147483648
      %v2337 = vxor.u32 %v2289, 2147483648
      %v2338 = vxor.u32 %v2290, 2147483648
      %v2339 = vxor.u32 %v2291, 2147483648
      %v2340 = vxor.u32 %v2292, 2147483648
      %v2341 = vxor.u32 %v2293, 2147483648
      %v2342 = vxor.u32 %v2294, 2147483648
      %v2343 = vxor.u32 %v2295, 2147483648
      %v2344 = vxor.u32 %v2296, 2147483648
      %v2345 = vxor.u32 %v2297, 2147483648
      %v2346 = vxor.u32 %v2298, 2147483648
      %v2347 = vxor.u32 %v2299, 2147483648
      %v2348 = vxor.u32 %v2300, 2147483648
      %v2349 = vxor.u32 %v2301, 2147483648
      %v2350 = vxor.u32 %v2302, 2147483648
      %v2351 = vxor.u32 %v2303, 2147483648
      %v2352 = vxor.u32 %v2304, 2147483648
      %v2353 = vxor.u32 %v2305, 2147483648
      %v2354 = vxor.u32 %v2306, 2147483648
      %v2355 = vxor.u32 %v2307, 2147483648
      %v2356 = vxor.u32 %v2308, 2147483648
      %v2357 = vxor.u32 %v2309, 2147483648
      %v2358 = vxor.u32 %v2310, 2147483648
      %v2359 = vxor.u32 %v2311, 2147483648
      %v2360 = vxor.u32 %v2312, 2147483648
      %v2361 = vxor.u32 %v2313, 2147483648
      %v2362 = vxor.u32 %v2314, 2147483648
      %v2363 = vxor.u32 %v2315, 2147483648
      %v2364 = vxor.u32 %v2316, 2147483648
      %v2365 = vxor.u32 %v2317, 2147483648
      %v2366 = vxor.u32 %v2318, 2147483648
      %v2367 = vxor.u32 %v2319, 2147483648
      %v2368 = vxor.u32 %v2320, 2147483648
      %v2369 = vxor.u32 %v2321, 2147483648
      %v2370 = vmul.f32 %v2322, 1.442695
      %v2371 = vpow.pop %v2370
      %v2372 = vmul.f32 %v2323, 1.442695
      %v2373 = vpow.pop %v2372
      %v2374 = vmul.f32 %v2324, 1.442695
      %v2375 = vpow.pop %v2374
      %v2376 = vmul.f32 %v2325, 1.442695
      %v2377 = vpow.pop %v2376
      %v2378 = vmul.f32 %v2326, 1.442695
      %v2379 = vpow.pop %v2378
      %v2380 = vmul.f32 %v2327, 1.442695
      %v2381 = vpow.pop %v2380
      %v2382 = vmul.f32 %v2328, 1.442695
      %v2383 = vpow.pop %v2382
      %v2384 = vmul.f32 %v2329, 1.442695
      %v2385 = vpow.pop %v2384
      %v2386 = vmul.f32 %v2330, 1.442695
      %v2387 = vpow.pop %v2386
      %v2388 = vmul.f32 %v2331, 1.442695
      %v2389 = vpow.pop %v2388
      %v2390 = vmul.f32 %v2332, 1.442695
      %v2391 = vpow.pop %v2390
      %v2392 = vmul.f32 %v2333, 1.442695
      %v2393 = vpow.pop %v2392
      %v2394 = vmul.f32 %v2334, 1.442695
      %v2395 = vpow.pop %v2394
      %v2396 = vmul.f32 %v2335, 1.442695
      %v2397 = vpow.pop %v2396
      %v2398 = vmul.f32 %v2336, 1.442695
      %v2399 = vpow.pop %v2398
      %v2400 = vmul.f32 %v2337, 1.442695
      %v2401 = vpow.pop %v2400
      %v2402 = vmul.f32 %v2338, 1.442695
      %v2403 = vpow.pop %v2402
      %v2404 = vmul.f32 %v2339, 1.442695
      %v2405 = vpow.pop %v2404
      %v2406 = vmul.f32 %v2340, 1.442695
      %v2407 = vpow.pop %v2406
      %v2408 = vmul.f32 %v2341, 1.442695
      %v2409 = vpow.pop %v2408
      %v2410 = vmul.f32 %v2342, 1.442695
      %v2411 = vpow.pop %v2410
      %v2412 = vmul.f32 %v2343, 1.442695
      %v2413 = vpow.pop %v2412
      %v2414 = vmul.f32 %v2344, 1.442695
      %v2415 = vpow.pop %v2414
      %v2416 = vmul.f32 %v2345, 1.442695
      %v2417 = vpow.pop %v2416
      %v2418 = vmul.f32 %v2346, 1.442695
      %v2419 = vpow.pop %v2418
      %v2420 = vmul.f32 %v2347, 1.442695
      %v2421 = vpow.pop %v2420
      %v2422 = vmul.f32 %v2348, 1.442695
      %v2423 = vpow.pop %v2422
      %v2424 = vmul.f32 %v2349, 1.442695
      %v2425 = vpow.pop %v2424
      %v2426 = vmul.f32 %v2350, 1.442695
      %v2427 = vpow.pop %v2426
      %v2428 = vmul.f32 %v2351, 1.442695
      %v2429 = vpow.pop %v2428
      %v2430 = vmul.f32 %v2352, 1.442695
      %v2431 = vpow.pop %v2430
      %v2432 = vmul.f32 %v2353, 1.442695
      %v2433 = vpow.pop %v2432
      %v2434 = vmul.f32 %v2354, 1.442695
      %v2435 = vpow.pop %v2434
      %v2436 = vmul.f32 %v2355, 1.442695
      %v2437 = vpow.pop %v2436
      %v2438 = vmul.f32 %v2356, 1.442695
      %v2439 = vpow.pop %v2438
      %v2440 = vmul.f32 %v2357, 1.442695
      %v2441 = vpow.pop %v2440
      %v2442 = vmul.f32 %v2358, 1.442695
      %v2443 = vpow.pop %v2442
      %v2444 = vmul.f32 %v2359, 1.442695
      %v2445 = vpow.pop %v2444
      %v2446 = vmul.f32 %v2360, 1.442695
      %v2447 = vpow.pop %v2446
      %v2448 = vmul.f32 %v2361, 1.442695
      %v2449 = vpow.pop %v2448
      %v2450 = vmul.f32 %v2362, 1.442695
      %v2451 = vpow.pop %v2450
      %v2452 = vmul.f32 %v2363, 1.442695
      %v2453 = vpow.pop %v2452
      %v2454 = vmul.f32 %v2364, 1.442695
      %v2455 = vpow.pop %v2454
      %v2456 = vmul.f32 %v2365, 1.442695
      %v2457 = vpow.pop %v2456
      %v2458 = vmul.f32 %v2366, 1.442695
      %v2459 = vpow.pop %v2458
      %v2460 = vmul.f32 %v2367, 1.442695
      %v2461 = vpow.pop %v2460
      %v2462 = vmul.f32 %v2368, 1.442695
      %v2463 = vpow.pop %v2462
      %v2464 = vmul.f32 %v2369, 1.442695
      %v2465 = vpow.pop %v2464
      %v2466 = vadd.f32 %v2371, 1.0
      %v2467 = vadd.f32 %v2373, 1.0
      %v2468 = vadd.f32 %v2375, 1.0
      %v2469 = vadd.f32 %v2377, 1.0
      %v2470 = vadd.f32 %v2379, 1.0
      %v2471 = vadd.f32 %v2381, 1.0
      %v2472 = vadd.f32 %v2383, 1.0
      %v2473 = vadd.f32 %v2385, 1.0
      %v2474 = vadd.f32 %v2387, 1.0
      %v2475 = vadd.f32 %v2389, 1.0
      %v2476 = vadd.f32 %v2391, 1.0
      %v2477 = vadd.f32 %v2393, 1.0
      %v2478 = vadd.f32 %v2395, 1.0
      %v2479 = vadd.f32 %v2397, 1.0
      %v2480 = vadd.f32 %v2399, 1.0
      %v2481 = vadd.f32 %v2401, 1.0
      %v2482 = vadd.f32 %v2403, 1.0
      %v2483 = vadd.f32 %v2405, 1.0
      %v2484 = vadd.f32 %v2407, 1.0
      %v2485 = vadd.f32 %v2409, 1.0
      %v2486 = vadd.f32 %v2411, 1.0
      %v2487 = vadd.f32 %v2413, 1.0
      %v2488 = vadd.f32 %v2415, 1.0
      %v2489 = vadd.f32 %v2417, 1.0
      %v2490 = vadd.f32 %v2419, 1.0
      %v2491 = vadd.f32 %v2421, 1.0
      %v2492 = vadd.f32 %v2423, 1.0
      %v2493 = vadd.f32 %v2425, 1.0
      %v2494 = vadd.f32 %v2427, 1.0
      %v2495 = vadd.f32 %v2429, 1.0
      %v2496 = vadd.f32 %v2431, 1.0
      %v2497 = vadd.f32 %v2433, 1.0
      %v2498 = vadd.f32 %v2435, 1.0
      %v2499 = vadd.f32 %v2437, 1.0
      %v2500 = vadd.f32 %v2439, 1.0
      %v2501 = vadd.f32 %v2441, 1.0
      %v2502 = vadd.f32 %v2443, 1.0
      %v2503 = vadd.f32 %v2445, 1.0
      %v2504 = vadd.f32 %v2447, 1.0
      %v2505 = vadd.f32 %v2449, 1.0
      %v2506 = vadd.f32 %v2451, 1.0
      %v2507 = vadd.f32 %v2453, 1.0
      %v2508 = vadd.f32 %v2455, 1.0
      %v2509 = vadd.f32 %v2457, 1.0
      %v2510 = vadd.f32 %v2459, 1.0
      %v2511 = vadd.f32 %v2461, 1.0
      %v2512 = vadd.f32 %v2463, 1.0
      %v2513 = vadd.f32 %v2465, 1.0
      %v2514 = vrcp.pop %v2466
      %v2515 = vmul.f32 1.0, %v2514
      %v2516 = vrcp.pop %v2467
      %v2517 = vmul.f32 1.0, %v2516
      %v2518 = vrcp.pop %v2468
      %v2519 = vmul.f32 1.0, %v2518
      %v2520 = vrcp.pop %v2469
      %v2521 = vmul.f32 1.0, %v2520
      %v2522 = vrcp.pop %v2470
      %v2523 = vmul.f32 1.0, %v2522
      %v2524 = vrcp.pop %v2471
      %v2525 = vmul.f32 1.0, %v2524
      %v2526 = vrcp.pop %v2472
      %v2527 = vmul.f32 1.0, %v2526
      %v2528 = vrcp.pop %v2473
      %v2529 = vmul.f32 1.0, %v2528
      %v2530 = vrcp.pop %v2474
      %v2531 = vmul.f32 1.0, %v2530
      %v2532 = vrcp.pop %v2475
      %v2533 = vmul.f32 1.0, %v2532
      %v2534 = vrcp.pop %v2476
      %v2535 = vmul.f32 1.0, %v2534
      %v2536 = vrcp.pop %v2477
      %v2537 = vmul.f32 1.0, %v2536
      %v2538 = vrcp.pop %v2478
      %v2539 = vmul.f32 1.0, %v2538
      %v2540 = vrcp.pop %v2479
      %v2541 = vmul.f32 1.0, %v2540
      %v2542 = vrcp.pop %v2480
      %v2543 = vmul.f32 1.0, %v2542
      %v2544 = vrcp.pop %v2481
      %v2545 = vmul.f32 1.0, %v2544
      %v2546 = vrcp.pop %v2482
      %v2547 = vmul.f32 1.0, %v2546
      %v2548 = vrcp.pop %v2483
      %v2549 = vmul.f32 1.0, %v2548
      %v2550 = vrcp.pop %v2484
      %v2551 = vmul.f32 1.0, %v2550
      %v2552 = vrcp.pop %v2485
      %v2553 = vmul.f32 1.0, %v2552
      %v2554 = vrcp.pop %v2486
      %v2555 = vmul.f32 1.0, %v2554
      %v2556 = vrcp.pop %v2487
      %v2557 = vmul.f32 1.0, %v2556
      %v2558 = vrcp.pop %v2488
      %v2559 = vmul.f32 1.0, %v2558
      %v2560 = vrcp.pop %v2489
      %v2561 = vmul.f32 1.0, %v2560
      %v2562 = vrcp.pop %v2490
      %v2563 = vmul.f32 1.0, %v2562
      %v2564 = vrcp.pop %v2491
      %v2565 = vmul.f32 1.0, %v2564
      %v2566 = vrcp.pop %v2492
      %v2567 = vmul.f32 1.0, %v2566
      %v2568 = vrcp.pop %v2493
      %v2569 = vmul.f32 1.0, %v2568
      %v2570 = vrcp.pop %v2494
      %v2571 = vmul.f32 1.0, %v2570
      %v2572 = vrcp.pop %v2495
      %v2573 = vmul.f32 1.0, %v2572
      %v2574 = vrcp.pop %v2496
      %v2575 = vmul.f32 1.0, %v2574
      %v2576 = vrcp.pop %v2497
      %v2577 = vmul.f32 1.0, %v2576
      %v2578 = vrcp.pop %v2498
      %v2579 = vmul.f32 1.0, %v2578
      %v2580 = vrcp.pop %v2499
      %v2581 = vmul.f32 1.0, %v2580
      %v2582 = vrcp.pop %v2500
      %v2583 = vmul.f32 1.0, %v2582
      %v2584 = vrcp.pop %v2501
      %v2585 = vmul.f32 1.0, %v2584
      %v2586 = vrcp.pop %v2502
      %v2587 = vmul.f32 1.0, %v2586
      %v2588 = vrcp.pop %v2503
      %v2589 = vmul.f32 1.0, %v2588
      %v2590 = vrcp.pop %v2504
      %v2591 = vmul.f32 1.0, %v2590
      %v2592 = vrcp.pop %v2505
      %v2593 = vmul.f32 1.0, %v2592
      %v2594 = vrcp.pop %v2506
      %v2595 = vmul.f32 1.0, %v2594
      %v2596 = vrcp.pop %v2507
      %v2597 = vmul.f32 1.0, %v2596
      %v2598 = vrcp.pop %v2508
      %v2599 = vmul.f32 1.0, %v2598
      %v2600 = vrcp.pop %v2509
      %v2601 = vmul.f32 1.0, %v2600
      %v2602 = vrcp.pop %v2510
      %v2603 = vmul.f32 1.0, %v2602
      %v2604 = vrcp.pop %v2511
      %v2605 = vmul.f32 1.0, %v2604
      %v2606 = vrcp.pop %v2512
      %v2607 = vmul.f32 1.0, %v2606
      %v2608 = vrcp.pop %v2513
      %v2609 = vmul.f32 1.0, %v2608
      %vm2658 = vcmask 1046528
      %v2659 = vrot.slane %v2515, 1
      %v2660 = vrot.slane %v2517, 1
      %v2661 = vsel %vm2658, %v2659, %v2660
      %v2662 = vrot.slane %v2519, 1
      %v2663 = vsel %vm2658, %v2660, %v2662
      %v2664 = vrot.slane %v2521, 1
      %v2665 = vrot.slane %v2523, 1
      %v2666 = vsel %vm2658, %v2664, %v2665
      %v2667 = vrot.slane %v2525, 1
      %v2668 = vsel %vm2658, %v2665, %v2667
      %v2669 = vrot.slane %v2527, 1
      %v2670 = vrot.slane %v2529, 1
      %v2671 = vsel %vm2658, %v2669, %v2670
      %v2672 = vrot.slane %v2531, 1
      %v2673 = vsel %vm2658, %v2670, %v2672
      %v2674 = vrot.slane %v2533, 1
      %v2675 = vrot.slane %v2535, 1
      %v2676 = vsel %vm2658, %v2674, %v2675
      %v2677 = vrot.slane %v2537, 1
      %v2678 = vsel %vm2658, %v2675, %v2677
      %v2679 = vrot.slane %v2539, 1
      %v2680 = vrot.slane %v2541, 1
      %v2681 = vsel %vm2658, %v2679, %v2680
      %v2682 = vrot.slane %v2543, 1
      %v2683 = vsel %vm2658, %v2680, %v2682
      %v2684 = vrot.slane %v2545, 1
      %v2685 = vrot.slane %v2547, 1
      %v2686 = vsel %vm2658, %v2684, %v2685
      %v2687 = vrot.slane %v2549, 1
      %v2688 = vsel %vm2658, %v2685, %v2687
      %v2689 = vrot.slane %v2551, 1
      %v2690 = vrot.slane %v2553, 1
      %v2691 = vsel %vm2658, %v2689, %v2690
      %v2692 = vrot.slane %v2555, 1
      %v2693 = vsel %vm2658, %v2690, %v2692
      %v2694 = vrot.slane %v2557, 1
      %v2695 = vrot.slane %v2559, 1
      %v2696 = vsel %vm2658, %v2694, %v2695
      %v2697 = vrot.slane %v2561, 1
      %v2698 = vsel %vm2658, %v2695, %v2697
      %v2699 = vrot.slane %v2563, 1
      %v2700 = vrot.slane %v2565, 1
      %v2701 = vsel %vm2658, %v2699, %v2700
      %v2702 = vrot.slane %v2567, 1
      %v2703 = vsel %vm2658, %v2700, %v2702
      %v2704 = vrot.slane %v2569, 1
      %v2705 = vrot.slane %v2571, 1
      %v2706 = vsel %vm2658, %v2704, %v2705
      %v2707 = vrot.slane %v2573, 1
      %v2708 = vsel %vm2658, %v2705, %v2707
      %v2709 = vrot.slane %v2575, 1
      %v2710 = vrot.slane %v2577, 1
      %v2711 = vsel %vm2658, %v2709, %v2710
      %v2712 = vrot.slane %v2579, 1
      %v2713 = vsel %vm2658, %v2710, %v2712
      %v2714 = vrot.slane %v2581, 1
      %v2715 = vrot.slane %v2583, 1
      %v2716 = vsel %vm2658, %v2714, %v2715
      %v2717 = vrot.slane %v2585, 1
      %v2718 = vsel %vm2658, %v2715, %v2717
      %v2719 = vrot.slane %v2587, 1
      %v2720 = vrot.slane %v2589, 1
      %v2721 = vsel %vm2658, %v2719, %v2720
      %v2722 = vrot.slane %v2591, 1
      %v2723 = vsel %vm2658, %v2720, %v2722
      %v2724 = vrot.slane %v2593, 1
      %v2725 = vrot.slane %v2595, 1
      %v2726 = vsel %vm2658, %v2724, %v2725
      %v2727 = vrot.slane %v2597, 1
      %v2728 = vsel %vm2658, %v2725, %v2727
      %v2729 = vrot.slane %v2599, 1
      %v2730 = vrot.slane %v2601, 1
      %v2731 = vsel %vm2658, %v2729, %v2730
      %v2732 = vrot.slane %v2603, 1
      %v2733 = vsel %vm2658, %v2730, %v2732
      %v2734 = vrot.slane %v2605, 1
      %v2735 = vrot.slane %v2607, 1
      %v2736 = vsel %vm2658, %v2734, %v2735
      %v2737 = vrot.slane %v2609, 1
      %v2738 = vsel %vm2658, %v2735, %v2737
      %v2771 = vmul.f32 %v2059, %v2661
      %v2772 = vmul.f32 %v2062, %v2663
      %v2773 = vmul.f32 %v2067, %v2666
      %v2774 = vmul.f32 %v2070, %v2668
      %v2775 = vmul.f32 %v2075, %v2671
      %v2776 = vmul.f32 %v2078, %v2673
      %v2777 = vmul.f32 %v2083, %v2676
      %v2778 = vmul.f32 %v2086, %v2678
      %v2779 = vmul.f32 %v2091, %v2681
      %v2780 = vmul.f32 %v2094, %v2683
      %v2781 = vmul.f32 %v2099, %v2686
      %v2782 = vmul.f32 %v2102, %v2688
      %v2783 = vmul.f32 %v2107, %v2691
      %v2784 = vmul.f32 %v2110, %v2693
      %v2785 = vmul.f32 %v2115, %v2696
      %v2786 = vmul.f32 %v2118, %v2698
      %v2787 = vmul.f32 %v2123, %v2701
      %v2788 = vmul.f32 %v2126, %v2703
      %v2789 = vmul.f32 %v2131, %v2706
      %v2790 = vmul.f32 %v2134, %v2708
      %v2791 = vmul.f32 %v2139, %v2711
      %v2792 = vmul.f32 %v2142, %v2713
      %v2793 = vmul.f32 %v2147, %v2716
      %v2794 = vmul.f32 %v2150, %v2718
      %v2795 = vmul.f32 %v2155, %v2721
      %v2796 = vmul.f32 %v2158, %v2723
      %v2797 = vmul.f32 %v2163, %v2726
      %v2798 = vmul.f32 %v2166, %v2728
      %v2799 = vmul.f32 %v2171, %v2731
      %v2800 = vmul.f32 %v2174, %v2733
      %v2801 = vmul.f32 %v2179, %v2736
      %v2802 = vmul.f32 %v2182, %v2738
      %2803 = vst [vmem:[#allocation2] sm:$0xf] 0
      %2804 = vst [vmem:[#allocation2 + $0x4] sm:$0xf] 0
      %2805 = vst [vmem:[#allocation2 + $0x8] sm:$0x1] 0
      %2806 = vst [vmem:[#allocation2 + $0xc] sm:$0xf] 0
      %2807 = vst [vmem:[#allocation2 + $0x10] sm:$0xf] 0
      %2808 = vst [vmem:[#allocation2 + $0x14] sm:$0x1] 0
      %2809 = vst [vmem:[#allocation2 + $0x18] sm:$0xf] 0
      %2810 = vst [vmem:[#allocation2 + $0x1c] sm:$0xf] 0
      %2811 = vst [vmem:[#allocation2 + $0x20] sm:$0x1] 0
      %2812 = vst [vmem:[#allocation2 + $0x24] sm:$0xf] 0
      %2813 = vst [vmem:[#allocation2 + $0x28] sm:$0xf] 0
      %2814 = vst [vmem:[#allocation2 + $0x2c] sm:$0x1] 0
      %2815 = vst [vmem:[#allocation2 + $0x30] sm:$0xf] 0
      %2816 = vst [vmem:[#allocation2 + $0x34] sm:$0xf] 0
      %2817 = vst [vmem:[#allocation2 + $0x38] sm:$0x1] 0
      %2818 = vst [vmem:[#allocation2 + $0x3c] sm:$0xf] 0
      %2819 = vst [vmem:[#allocation2 + $0x40] sm:$0xf] 0
      %2820 = vst [vmem:[#allocation2 + $0x44] sm:$0x1] 0
      %2821 = vst [vmem:[#allocation2 + $0x48] sm:$0xf] 0
      %2822 = vst [vmem:[#allocation2 + $0x4c] sm:$0xf] 0
      %2823 = vst [vmem:[#allocation2 + $0x50] sm:$0x1] 0
      %2824 = vst [vmem:[#allocation2 + $0x54] sm:$0xf] 0
      %2825 = vst [vmem:[#allocation2 + $0x58] sm:$0xf] 0
      %2826 = vst [vmem:[#allocation2 + $0x5c] sm:$0x1] 0
      %2827 = vst [vmem:[#allocation2 + $0x60] sm:$0xf] 0
      %2828 = vst [vmem:[#allocation2 + $0x64] sm:$0xf] 0
      %2829 = vst [vmem:[#allocation2 + $0x68] sm:$0x1] 0
      %2830 = vst [vmem:[#allocation2 + $0x6c] sm:$0xf] 0
      %2831 = vst [vmem:[#allocation2 + $0x70] sm:$0xf] 0
      %2832 = vst [vmem:[#allocation2 + $0x74] sm:$0x1] 0
      %2833 = vst [vmem:[#allocation2 + $0x78] sm:$0xf] 0
      %2834 = vst [vmem:[#allocation2 + $0x7c] sm:$0xf] 0
      %2835 = vst [vmem:[#allocation2 + $0x80] sm:$0x1] 0
      %2836 = vst [vmem:[#allocation2 + $0x84] sm:$0xf] 0
      %2837 = vst [vmem:[#allocation2 + $0x88] sm:$0xf] 0
      %2838 = vst [vmem:[#allocation2 + $0x8c] sm:$0x1] 0
      %2839 = vst [vmem:[#allocation2 + $0x90] sm:$0xf] 0
      %2840 = vst [vmem:[#allocation2 + $0x94] sm:$0xf] 0
      %2841 = vst [vmem:[#allocation2 + $0x98] sm:$0x1] 0
      %2842 = vst [vmem:[#allocation2 + $0x9c] sm:$0xf] 0
      %2843 = vst [vmem:[#allocation2 + $0xa0] sm:$0xf] 0
      %2844 = vst [vmem:[#allocation2 + $0xa4] sm:$0x1] 0
      %2845 = vst [vmem:[#allocation2 + $0xa8] sm:$0xf] 0
      %2846 = vst [vmem:[#allocation2 + $0xac] sm:$0xf] 0
      %2847 = vst [vmem:[#allocation2 + $0xb0] sm:$0x1] 0
      %2848 = vst [vmem:[#allocation2 + $0xb4] sm:$0xf] 0
      %2849 = vst [vmem:[#allocation2 + $0xb8] sm:$0xf] 0
      %2850 = vst [vmem:[#allocation2 + $0xbc] sm:$0x1] 0
      %2851 = vst [vmem:[#allocation2 + $0xc0] sm:$0xf] 0
      %2852 = vst [vmem:[#allocation2 + $0xc4] sm:$0xf] 0
      %2853 = vst [vmem:[#allocation2 + $0xc8] sm:$0x1] 0
      %2854 = vst [vmem:[#allocation2 + $0xcc] sm:$0xf] 0
      %2855 = vst [vmem:[#allocation2 + $0xd0] sm:$0xf] 0
      %2856 = vst [vmem:[#allocation2 + $0xd4] sm:$0x1] 0
      %v2857 = vpack.c.bf16 %v2772, %v2771
      %v2858 = vpack.c.bf16 %v2774, %v2773
      %v2859 = vpack.c.bf16 %v2776, %v2775
      %v2860 = vpack.c.bf16 %v2778, %v2777
      %v2861 = vpack.c.bf16 %v2780, %v2779
      %v2862 = vpack.c.bf16 %v2782, %v2781
      %v2863 = vpack.c.bf16 %v2784, %v2783
      %v2864 = vpack.c.bf16 %v2786, %v2785
      %v2865 = vpack.c.bf16 %v2788, %v2787
      %v2866 = vpack.c.bf16 %v2790, %v2789
      %v2867 = vpack.c.bf16 %v2792, %v2791
      %v2868 = vpack.c.bf16 %v2794, %v2793
      %v2869 = vpack.c.bf16 %v2796, %v2795
      %v2870 = vpack.c.bf16 %v2798, %v2797
      %v2871 = vpack.c.bf16 %v2800, %v2799
      %v2872 = vpack.c.bf16 %v2802, %v2801
      %v2889 = vunpack.c.l.b16 %v2857
      %v2890 = vunpack.c.h.b16 %v2857
      %v2891 = vunpack.c.l.b16 %v2858
      %v2892 = vunpack.c.h.b16 %v2858
      %v2893 = vunpack.c.l.b16 %v2859
      %v2894 = vunpack.c.h.b16 %v2859
      %v2895 = vunpack.c.l.b16 %v2860
      %v2896 = vunpack.c.h.b16 %v2860
      %v2897 = vunpack.c.l.b16 %v2861
      %v2898 = vunpack.c.h.b16 %v2861
      %v2899 = vunpack.c.l.b16 %v2862
      %v2900 = vunpack.c.h.b16 %v2862
      %v2901 = vunpack.c.l.b16 %v2863
      %v2902 = vunpack.c.h.b16 %v2863
      %v2903 = vunpack.c.l.b16 %v2864
      %v2904 = vunpack.c.h.b16 %v2864
      %v2905 = vunpack.c.l.b16 %v2865
      %v2906 = vunpack.c.h.b16 %v2865
      %v2907 = vunpack.c.l.b16 %v2866
      %v2908 = vunpack.c.h.b16 %v2866
      %v2909 = vunpack.c.l.b16 %v2867
      %v2910 = vunpack.c.h.b16 %v2867
      %v2911 = vunpack.c.l.b16 %v2868
      %v2912 = vunpack.c.h.b16 %v2868
      %v2913 = vunpack.c.l.b16 %v2869
      %v2914 = vunpack.c.h.b16 %v2869
      %v2915 = vunpack.c.l.b16 %v2870
      %v2916 = vunpack.c.h.b16 %v2870
      %v2917 = vunpack.c.l.b16 %v2871
      %v2918 = vunpack.c.h.b16 %v2871
      %v2919 = vunpack.c.l.b16 %v2872
      %v2920 = vunpack.c.h.b16 %v2872
      %v2921 = vpack.c.b16 %v2889, %v2889
      %v2922 = vpack.c.b16 %v2890, %v2890
      %v2923 = vpack.c.b16 %v2891, %v2891
      %v2924 = vpack.c.b16 %v2892, %v2892
      %v2925 = vpack.c.b16 %v2893, %v2893
      %v2926 = vpack.c.b16 %v2894, %v2894
      %v2927 = vpack.c.b16 %v2895, %v2895
      %v2928 = vpack.c.b16 %v2896, %v2896
      %v2929 = vpack.c.b16 %v2897, %v2897
      %v2930 = vpack.c.b16 %v2898, %v2898
      %v2931 = vpack.c.b16 %v2899, %v2899
      %v2932 = vpack.c.b16 %v2900, %v2900
      %v2933 = vpack.c.b16 %v2901, %v2901
      %v2934 = vpack.c.b16 %v2902, %v2902
      %v2935 = vpack.c.b16 %v2903, %v2903
      %v2936 = vpack.c.b16 %v2904, %v2904
      %v2937 = vpack.c.b16 %v2905, %v2905
      %v2938 = vpack.c.b16 %v2906, %v2906
      %v2939 = vpack.c.b16 %v2907, %v2907
      %v2940 = vpack.c.b16 %v2908, %v2908
      %v2941 = vpack.c.b16 %v2909, %v2909
      %v2942 = vpack.c.b16 %v2910, %v2910
      %v2943 = vpack.c.b16 %v2911, %v2911
      %v2944 = vpack.c.b16 %v2912, %v2912
      %v2945 = vpack.c.b16 %v2913, %v2913
      %v2946 = vpack.c.b16 %v2914, %v2914
      %v2947 = vpack.c.b16 %v2915, %v2915
      %v2948 = vpack.c.b16 %v2916, %v2916
      %v2949 = vpack.c.b16 %v2917, %v2917
      %v2950 = vpack.c.b16 %v2918, %v2918
      %v2951 = vpack.c.b16 %v2919, %v2919
      %v2952 = vpack.c.b16 %v2920, %v2920
      %vm2953 = vsmask.f32 256
      %vm2954 = vsmask.f32 4368
      %vm2955 = vmor %vm2953, %vm2954
      %v2957 = vshrl.u32 %v2921, 16
      %v2959 = vrot.slane %v2957, 7
      %v2960 = vshll.u32 %v2921, 16
      %v2962 = vor.u32 %v2959, %v2960
      %v2963 = vrot.slane %v2959, 4
      %v2965 = vshrl.u32 %v2922, 16
      %v2967 = vrot.slane %v2965, 7
      %v2968 = vshll.u32 %v2922, 16
      %v2970 = vor.u32 %v2967, %v2968
      %v2971 = vsel %vm2955, %v2963, %v2970
      %v2972 = vrot.slane %v2967, 4
      %v2974 = vshrl.u32 %v2923, 16
      %v2976 = vrot.slane %v2974, 7
      %v2977 = vshll.u32 %v2923, 16
      %v2979 = vor.u32 %v2976, %v2977
      %v2980 = vrot.slane %v2976, 4
      %v2982 = vshrl.u32 %v2924, 16
      %v2984 = vrot.slane %v2982, 7
      %v2985 = vshll.u32 %v2924, 16
      %v2987 = vor.u32 %v2984, %v2985
      %v2988 = vsel %vm2955, %v2980, %v2987
      %v2989 = vrot.slane %v2984, 4
      %v2991 = vshrl.u32 %v2925, 16
      %v2993 = vrot.slane %v2991, 7
      %v2994 = vshll.u32 %v2925, 16
      %v2996 = vor.u32 %v2993, %v2994
      %v2997 = vrot.slane %v2993, 4
      %v2999 = vshrl.u32 %v2926, 16
      %v3001 = vrot.slane %v2999, 7
      %v3002 = vshll.u32 %v2926, 16
      %v3004 = vor.u32 %v3001, %v3002
      %v3005 = vsel %vm2955, %v2997, %v3004
      %v3006 = vrot.slane %v3001, 4
      %v3008 = vshrl.u32 %v2927, 16
      %v3010 = vrot.slane %v3008, 7
      %v3011 = vshll.u32 %v2927, 16
      %v3013 = vor.u32 %v3010, %v3011
      %v3014 = vrot.slane %v3010, 4
      %v3016 = vshrl.u32 %v2928, 16
      %v3018 = vrot.slane %v3016, 7
      %v3019 = vshll.u32 %v2928, 16
      %v3021 = vor.u32 %v3018, %v3019
      %v3022 = vsel %vm2955, %v3014, %v3021
      %v3023 = vrot.slane %v3018, 4
      %v3025 = vshrl.u32 %v2929, 16
      %v3027 = vrot.slane %v3025, 7
      %v3028 = vshll.u32 %v2929, 16
      %v3030 = vor.u32 %v3027, %v3028
      %v3031 = vrot.slane %v3027, 4
      %v3033 = vshrl.u32 %v2930, 16
      %v3035 = vrot.slane %v3033, 7
      %v3036 = vshll.u32 %v2930, 16
      %v3038 = vor.u32 %v3035, %v3036
      %v3039 = vsel %vm2955, %v3031, %v3038
      %v3040 = vrot.slane %v3035, 4
      %v3042 = vshrl.u32 %v2931, 16
      %v3044 = vrot.slane %v3042, 7
      %v3045 = vshll.u32 %v2931, 16
      %v3047 = vor.u32 %v3044, %v3045
      %v3048 = vrot.slane %v3044, 4
      %v3050 = vshrl.u32 %v2932, 16
      %v3052 = vrot.slane %v3050, 7
      %v3053 = vshll.u32 %v2932, 16
      %v3055 = vor.u32 %v3052, %v3053
      %v3056 = vsel %vm2955, %v3048, %v3055
      %v3057 = vrot.slane %v3052, 4
      %v3059 = vshrl.u32 %v2933, 16
      %v3061 = vrot.slane %v3059, 7
      %v3062 = vshll.u32 %v2933, 16
      %v3064 = vor.u32 %v3061, %v3062
      %v3065 = vrot.slane %v3061, 4
      %v3067 = vshrl.u32 %v2934, 16
      %v3069 = vrot.slane %v3067, 7
      %v3070 = vshll.u32 %v2934, 16
      %v3072 = vor.u32 %v3069, %v3070
      %v3073 = vsel %vm2955, %v3065, %v3072
      %v3074 = vrot.slane %v3069, 4
      %v3076 = vshrl.u32 %v2935, 16
      %v3078 = vrot.slane %v3076, 7
      %v3079 = vshll.u32 %v2935, 16
      %v3081 = vor.u32 %v3078, %v3079
      %v3082 = vrot.slane %v3078, 4
      %v3084 = vshrl.u32 %v2936, 16
      %v3086 = vrot.slane %v3084, 7
      %v3087 = vshll.u32 %v2936, 16
      %v3089 = vor.u32 %v3086, %v3087
      %v3090 = vsel %vm2955, %v3082, %v3089
      %v3091 = vrot.slane %v3086, 4
      %v3093 = vshrl.u32 %v2937, 16
      %v3095 = vrot.slane %v3093, 7
      %v3096 = vshll.u32 %v2937, 16
      %v3098 = vor.u32 %v3095, %v3096
      %v3099 = vrot.slane %v3095, 4
      %v3101 = vshrl.u32 %v2938, 16
      %v3103 = vrot.slane %v3101, 7
      %v3104 = vshll.u32 %v2938, 16
      %v3106 = vor.u32 %v3103, %v3104
      %v3107 = vsel %vm2955, %v3099, %v3106
      %v3108 = vrot.slane %v3103, 4
      %v3110 = vshrl.u32 %v2939, 16
      %v3112 = vrot.slane %v3110, 7
      %v3113 = vshll.u32 %v2939, 16
      %v3115 = vor.u32 %v3112, %v3113
      %v3116 = vrot.slane %v3112, 4
      %v3118 = vshrl.u32 %v2940, 16
      %v3120 = vrot.slane %v3118, 7
      %v3121 = vshll.u32 %v2940, 16
      %v3123 = vor.u32 %v3120, %v3121
      %v3124 = vsel %vm2955, %v3116, %v3123
      %v3125 = vrot.slane %v3120, 4
      %v3127 = vshrl.u32 %v2941, 16
      %v3129 = vrot.slane %v3127, 7
      %v3130 = vshll.u32 %v2941, 16
      %v3132 = vor.u32 %v3129, %v3130
      %v3133 = vrot.slane %v3129, 4
      %v3135 = vshrl.u32 %v2942, 16
      %v3137 = vrot.slane %v3135, 7
      %v3138 = vshll.u32 %v2942, 16
      %v3140 = vor.u32 %v3137, %v3138
      %v3141 = vsel %vm2955, %v3133, %v3140
      %v3142 = vrot.slane %v3137, 4
      %v3144 = vshrl.u32 %v2943, 16
      %v3146 = vrot.slane %v3144, 7
      %v3147 = vshll.u32 %v2943, 16
      %v3149 = vor.u32 %v3146, %v3147
      %v3150 = vrot.slane %v3146, 4
      %v3152 = vshrl.u32 %v2944, 16
      %v3154 = vrot.slane %v3152, 7
      %v3155 = vshll.u32 %v2944, 16
      %v3157 = vor.u32 %v3154, %v3155
      %v3158 = vsel %vm2955, %v3150, %v3157
      %v3159 = vrot.slane %v3154, 4
      %v3161 = vshrl.u32 %v2945, 16
      %v3163 = vrot.slane %v3161, 7
      %v3164 = vshll.u32 %v2945, 16
      %v3166 = vor.u32 %v3163, %v3164
      %v3167 = vrot.slane %v3163, 4
      %v3169 = vshrl.u32 %v2946, 16
      %v3171 = vrot.slane %v3169, 7
      %v3172 = vshll.u32 %v2946, 16
      %v3174 = vor.u32 %v3171, %v3172
      %v3175 = vsel %vm2955, %v3167, %v3174
      %v3176 = vrot.slane %v3171, 4
      %v3178 = vshrl.u32 %v2947, 16
      %v3180 = vrot.slane %v3178, 7
      %v3181 = vshll.u32 %v2947, 16
      %v3183 = vor.u32 %v3180, %v3181
      %v3184 = vrot.slane %v3180, 4
      %v3186 = vshrl.u32 %v2948, 16
      %v3188 = vrot.slane %v3186, 7
      %v3189 = vshll.u32 %v2948, 16
      %v3191 = vor.u32 %v3188, %v3189
      %v3192 = vsel %vm2955, %v3184, %v3191
      %v3193 = vrot.slane %v3188, 4
      %v3195 = vshrl.u32 %v2949, 16
      %v3197 = vrot.slane %v3195, 7
      %v3198 = vshll.u32 %v2949, 16
      %v3200 = vor.u32 %v3197, %v3198
      %v3201 = vrot.slane %v3197, 4
      %v3203 = vshrl.u32 %v2950, 16
      %v3205 = vrot.slane %v3203, 7
      %v3206 = vshll.u32 %v2950, 16
      %v3208 = vor.u32 %v3205, %v3206
      %v3209 = vsel %vm2955, %v3201, %v3208
      %v3210 = vrot.slane %v3205, 4
      %v3212 = vshrl.u32 %v2951, 16
      %v3214 = vrot.slane %v3212, 7
      %v3215 = vshll.u32 %v2951, 16
      %v3217 = vor.u32 %v3214, %v3215
      %v3218 = vrot.slane %v3214, 4
      %v3220 = vshrl.u32 %v2952, 16
      %v3222 = vrot.slane %v3220, 7
      %v3223 = vshll.u32 %v2952, 16
      %v3225 = vor.u32 %v3222, %v3223
      %v3226 = vsel %vm2955, %v3218, %v3225
      %v3227 = vrot.slane %v3222, 4
      %s3276 = scalar_lea.vmem [#allocation2], 12
      %vm3277 = vcmask 1043456
      %vm3278 = vsmask.f32 7938
      %vm3279 = vmand %vm3277, %vm3278
      %v3280 = vld [vmem:[%s3276] sm:$0xf]
      %v3281 = vsel %vm3279, %v2962, %v3280
      %3282 = vst [vmem:[%s3276] sm:$0xf] %v3281
      %3283 = vst [vmem:[%s3276 + $0x4] sm:$0xf] %v2971
      %vm3284 = vcmask 1040384
      %vm3285 = vmand %vm3284, %vm2953
      %v3286 = vld [vmem:[%s3276 + $0x8] sm:$0x1]
      %v3287 = vsel %vm3285, %v2972, %v3286
      %3288 = vst [vmem:[%s3276 + $0x8] sm:$0x1] %v3287
      %v3289 = vld [vmem:[%s3276 + $0xc] sm:$0xf]
      %v3290 = vsel %vm3279, %v2979, %v3289
      %3291 = vst [vmem:[%s3276 + $0xc] sm:$0xf] %v3290
      %3292 = vst [vmem:[%s3276 + $0x10] sm:$0xf] %v2988
      %v3293 = vld [vmem:[%s3276 + $0x14] sm:$0x1]
      %v3294 = vsel %vm3285, %v2989, %v3293
      %3295 = vst [vmem:[%s3276 + $0x14] sm:$0x1] %v3294
      %v3296 = vld [vmem:[%s3276 + $0x18] sm:$0xf]
      %v3297 = vsel %vm3279, %v2996, %v3296
      %3298 = vst [vmem:[%s3276 + $0x18] sm:$0xf] %v3297
      %3299 = vst [vmem:[%s3276 + $0x1c] sm:$0xf] %v3005
      %v3300 = vld [vmem:[%s3276 + $0x20] sm:$0x1]
      %v3301 = vsel %vm3285, %v3006, %v3300
      %3302 = vst [vmem:[%s3276 + $0x20] sm:$0x1] %v3301
      %v3303 = vld [vmem:[%s3276 + $0x24] sm:$0xf]
      %v3304 = vsel %vm3279, %v3013, %v3303
      %3305 = vst [vmem:[%s3276 + $0x24] sm:$0xf] %v3304
      %3306 = vst [vmem:[%s3276 + $0x28] sm:$0xf] %v3022
      %v3307 = vld [vmem:[%s3276 + $0x2c] sm:$0x1]
      %v3308 = vsel %vm3285, %v3023, %v3307
      %3309 = vst [vmem:[%s3276 + $0x2c] sm:$0x1] %v3308
      %v3310 = vld [vmem:[%s3276 + $0x30] sm:$0xf]
      %v3311 = vsel %vm3279, %v3030, %v3310
      %3312 = vst [vmem:[%s3276 + $0x30] sm:$0xf] %v3311
      %3313 = vst [vmem:[%s3276 + $0x34] sm:$0xf] %v3039
      %v3314 = vld [vmem:[%s3276 + $0x38] sm:$0x1]
      %v3315 = vsel %vm3285, %v3040, %v3314
      %3316 = vst [vmem:[%s3276 + $0x38] sm:$0x1] %v3315
      %v3317 = vld [vmem:[%s3276 + $0x3c] sm:$0xf]
      %v3318 = vsel %vm3279, %v3047, %v3317
      %3319 = vst [vmem:[%s3276 + $0x3c] sm:$0xf] %v3318
      %3320 = vst [vmem:[%s3276 + $0x40] sm:$0xf] %v3056
      %v3321 = vld [vmem:[%s3276 + $0x44] sm:$0x1]
      %v3322 = vsel %vm3285, %v3057, %v3321
      %3323 = vst [vmem:[%s3276 + $0x44] sm:$0x1] %v3322
      %v3324 = vld [vmem:[%s3276 + $0x48] sm:$0xf]
      %v3325 = vsel %vm3279, %v3064, %v3324
      %3326 = vst [vmem:[%s3276 + $0x48] sm:$0xf] %v3325
      %3327 = vst [vmem:[%s3276 + $0x4c] sm:$0xf] %v3073
      %v3328 = vld [vmem:[%s3276 + $0x50] sm:$0x1]
      %v3329 = vsel %vm3285, %v3074, %v3328
      %3330 = vst [vmem:[%s3276 + $0x50] sm:$0x1] %v3329
      %v3331 = vld [vmem:[%s3276 + $0x54] sm:$0xf]
      %v3332 = vsel %vm3279, %v3081, %v3331
      %3333 = vst [vmem:[%s3276 + $0x54] sm:$0xf] %v3332
      %3334 = vst [vmem:[%s3276 + $0x58] sm:$0xf] %v3090
      %v3335 = vld [vmem:[%s3276 + $0x5c] sm:$0x1]
      %v3336 = vsel %vm3285, %v3091, %v3335
      %3337 = vst [vmem:[%s3276 + $0x5c] sm:$0x1] %v3336
      %v3338 = vld [vmem:[%s3276 + $0x60] sm:$0xf]
      %v3339 = vsel %vm3279, %v3098, %v3338
      %3340 = vst [vmem:[%s3276 + $0x60] sm:$0xf] %v3339
      %3341 = vst [vmem:[%s3276 + $0x64] sm:$0xf] %v3107
      %v3342 = vld [vmem:[%s3276 + $0x68] sm:$0x1]
      %v3343 = vsel %vm3285, %v3108, %v3342
      %3344 = vst [vmem:[%s3276 + $0x68] sm:$0x1] %v3343
      %v3345 = vld [vmem:[%s3276 + $0x6c] sm:$0xf]
      %v3346 = vsel %vm3279, %v3115, %v3345
      %3347 = vst [vmem:[%s3276 + $0x6c] sm:$0xf] %v3346
      %3348 = vst [vmem:[%s3276 + $0x70] sm:$0xf] %v3124
      %v3349 = vld [vmem:[%s3276 + $0x74] sm:$0x1]
      %v3350 = vsel %vm3285, %v3125, %v3349
      %3351 = vst [vmem:[%s3276 + $0x74] sm:$0x1] %v3350
      %v3352 = vld [vmem:[%s3276 + $0x78] sm:$0xf]
      %v3353 = vsel %vm3279, %v3132, %v3352
      %3354 = vst [vmem:[%s3276 + $0x78] sm:$0xf] %v3353
      %3355 = vst [vmem:[%s3276 + $0x7c] sm:$0xf] %v3141
      %v3356 = vld [vmem:[%s3276 + $0x80] sm:$0x1]
      %v3357 = vsel %vm3285, %v3142, %v3356
      %3358 = vst [vmem:[%s3276 + $0x80] sm:$0x1] %v3357
      %v3359 = vld [vmem:[%s3276 + $0x84] sm:$0xf]
      %v3360 = vsel %vm3279, %v3149, %v3359
      %3361 = vst [vmem:[%s3276 + $0x84] sm:$0xf] %v3360
      %3362 = vst [vmem:[%s3276 + $0x88] sm:$0xf] %v3158
      %v3363 = vld [vmem:[%s3276 + $0x8c] sm:$0x1]
      %v3364 = vsel %vm3285, %v3159, %v3363
      %3365 = vst [vmem:[%s3276 + $0x8c] sm:$0x1] %v3364
      %v3366 = vld [vmem:[%s3276 + $0x90] sm:$0xf]
      %v3367 = vsel %vm3279, %v3166, %v3366
      %3368 = vst [vmem:[%s3276 + $0x90] sm:$0xf] %v3367
      %3369 = vst [vmem:[%s3276 + $0x94] sm:$0xf] %v3175
      %v3370 = vld [vmem:[%s3276 + $0x98] sm:$0x1]
      %v3371 = vsel %vm3285, %v3176, %v3370
      %3372 = vst [vmem:[%s3276 + $0x98] sm:$0x1] %v3371
      %v3373 = vld [vmem:[%s3276 + $0x9c] sm:$0xf]
      %v3374 = vsel %vm3279, %v3183, %v3373
      %3375 = vst [vmem:[%s3276 + $0x9c] sm:$0xf] %v3374
      %3376 = vst [vmem:[%s3276 + $0xa0] sm:$0xf] %v3192
      %v3377 = vld [vmem:[%s3276 + $0xa4] sm:$0x1]
      %v3378 = vsel %vm3285, %v3193, %v3377
      %3379 = vst [vmem:[%s3276 + $0xa4] sm:$0x1] %v3378
      %v3380 = vld [vmem:[%s3276 + $0xa8] sm:$0xf]
      %v3381 = vsel %vm3279, %v3200, %v3380
      %3382 = vst [vmem:[%s3276 + $0xa8] sm:$0xf] %v3381
      %3383 = vst [vmem:[%s3276 + $0xac] sm:$0xf] %v3209
      %v3384 = vld [vmem:[%s3276 + $0xb0] sm:$0x1]
      %v3385 = vsel %vm3285, %v3210, %v3384
      %3386 = vst [vmem:[%s3276 + $0xb0] sm:$0x1] %v3385
      %v3387 = vld [vmem:[%s3276 + $0xb4] sm:$0xf]
      %v3388 = vsel %vm3279, %v3217, %v3387
      %3389 = vst [vmem:[%s3276 + $0xb4] sm:$0xf] %v3388
      %3390 = vst [vmem:[%s3276 + $0xb8] sm:$0xf] %v3226
      %v3391 = vld [vmem:[%s3276 + $0xbc] sm:$0x1]
      %v3392 = vsel %vm3285, %v3227, %v3391
      %3393 = vst [vmem:[%s3276 + $0xbc] sm:$0x1] %v3392
      %v3394 = vld [vmem:[#allocation2] sm:$0xf]
      %v3395 = vld [vmem:[#allocation2 + $0x4] sm:$0xf]
      %v3396 = vld [vmem:[#allocation2 + $0x8] sm:$0x1]
      %v3397 = vld [vmem:[#allocation2 + $0xc] sm:$0xf]
      %v3398 = vld [vmem:[#allocation2 + $0x10] sm:$0xf]
      %v3399 = vld [vmem:[#allocation2 + $0x14] sm:$0x1]
      %v3400 = vld [vmem:[#allocation2 + $0x18] sm:$0xf]
      %v3401 = vld [vmem:[#allocation2 + $0x1c] sm:$0xf]
      %v3402 = vld [vmem:[#allocation2 + $0x20] sm:$0x1]
      %v3403 = vld [vmem:[#allocation2 + $0x24] sm:$0xf]
      %v3404 = vld [vmem:[#allocation2 + $0x28] sm:$0xf]
      %v3405 = vld [vmem:[#allocation2 + $0x2c] sm:$0x1]
      %v3406 = vld [vmem:[#allocation2 + $0x30] sm:$0xf]
      %v3407 = vld [vmem:[#allocation2 + $0x34] sm:$0xf]
      %v3408 = vld [vmem:[#allocation2 + $0x38] sm:$0x1]
      %v3409 = vld [vmem:[#allocation2 + $0x3c] sm:$0xf]
      %v3410 = vld [vmem:[#allocation2 + $0x40] sm:$0xf]
      %v3411 = vld [vmem:[#allocation2 + $0x44] sm:$0x1]
      %v3412 = vld [vmem:[#allocation2 + $0x48] sm:$0xf]
      %v3413 = vld [vmem:[#allocation2 + $0x4c] sm:$0xf]
      %v3414 = vld [vmem:[#allocation2 + $0x50] sm:$0x1]
      %v3415 = vld [vmem:[#allocation2 + $0x54] sm:$0xf]
      %v3416 = vld [vmem:[#allocation2 + $0x58] sm:$0xf]
      %v3417 = vld [vmem:[#allocation2 + $0x5c] sm:$0x1]
      %v3418 = vld [vmem:[#allocation2 + $0x60] sm:$0xf]
      %v3419 = vld [vmem:[#allocation2 + $0x64] sm:$0xf]
      %v3420 = vld [vmem:[#allocation2 + $0x68] sm:$0x1]
      %v3421 = vld [vmem:[#allocation2 + $0x6c] sm:$0xf]
      %v3422 = vld [vmem:[#allocation2 + $0x70] sm:$0xf]
      %v3423 = vld [vmem:[#allocation2 + $0x74] sm:$0x1]
      %v3424 = vld [vmem:[#allocation2 + $0x78] sm:$0xf]
      %v3425 = vld [vmem:[#allocation2 + $0x7c] sm:$0xf]
      %v3426 = vld [vmem:[#allocation2 + $0x80] sm:$0x1]
      %v3427 = vld [vmem:[#allocation2 + $0x84] sm:$0xf]
      %v3428 = vld [vmem:[#allocation2 + $0x88] sm:$0xf]
      %v3429 = vld [vmem:[#allocation2 + $0x8c] sm:$0x1]
      %v3430 = vld [vmem:[#allocation2 + $0x90] sm:$0xf]
      %v3431 = vld [vmem:[#allocation2 + $0x94] sm:$0xf]
      %v3432 = vld [vmem:[#allocation2 + $0x98] sm:$0x1]
      %v3433 = vld [vmem:[#allocation2 + $0x9c] sm:$0xf]
      %v3434 = vld [vmem:[#allocation2 + $0xa0] sm:$0xf]
      %v3435 = vld [vmem:[#allocation2 + $0xa4] sm:$0x1]
      %v3436 = vld [vmem:[#allocation2 + $0xa8] sm:$0xf]
      %v3437 = vld [vmem:[#allocation2 + $0xac] sm:$0xf]
      %v3438 = vld [vmem:[#allocation2 + $0xb0] sm:$0x1]
      %v3439 = vld [vmem:[#allocation2 + $0xb4] sm:$0xf]
      %v3440 = vld [vmem:[#allocation2 + $0xb8] sm:$0xf]
      %v3441 = vld [vmem:[#allocation2 + $0xbc] sm:$0x1]
      %v3442 = vld [vmem:[#allocation2 + $0xc0] sm:$0xf]
      %v3443 = vld [vmem:[#allocation2 + $0xc4] sm:$0xf]
      %v3444 = vld [vmem:[#allocation2 + $0xc8] sm:$0x1]
      %v3445 = vld [vmem:[#allocation2 + $0xcc] sm:$0xf]
      %v3446 = vld [vmem:[#allocation2 + $0xd0] sm:$0xf]
      %v3447 = vld [vmem:[#allocation2 + $0xd4] sm:$0x1]
      %v3480 = vunpack.c.l.b16 %v3394
      %v3481 = vunpack.c.l.b16 %v3395
      %v3482 = vunpack.c.l.b16 %v3397
      %v3483 = vunpack.c.l.b16 %v3398
      %v3484 = vunpack.c.l.b16 %v3400
      %v3485 = vunpack.c.l.b16 %v3401
      %v3486 = vunpack.c.l.b16 %v3403
      %v3487 = vunpack.c.l.b16 %v3404
      %v3488 = vunpack.c.l.b16 %v3406
      %v3489 = vunpack.c.l.b16 %v3407
      %v3490 = vunpack.c.l.b16 %v3409
      %v3491 = vunpack.c.l.b16 %v3410
      %v3492 = vunpack.c.l.b16 %v3412
      %v3493 = vunpack.c.l.b16 %v3413
      %v3494 = vunpack.c.l.b16 %v3415
      %v3495 = vunpack.c.l.b16 %v3416
      %v3496 = vunpack.c.l.b16 %v3418
      %v3497 = vunpack.c.l.b16 %v3419
      %v3498 = vunpack.c.l.b16 %v3421
      %v3499 = vunpack.c.l.b16 %v3422
      %v3500 = vunpack.c.l.b16 %v3424
      %v3501 = vunpack.c.l.b16 %v3425
      %v3502 = vunpack.c.l.b16 %v3427
      %v3503 = vunpack.c.l.b16 %v3428
      %v3504 = vunpack.c.l.b16 %v3430
      %v3505 = vunpack.c.l.b16 %v3431
      %v3506 = vunpack.c.l.b16 %v3433
      %v3507 = vunpack.c.l.b16 %v3434
      %v3508 = vunpack.c.l.b16 %v3436
      %v3509 = vunpack.c.l.b16 %v3437
      %v3510 = vunpack.c.l.b16 %v3439
      %v3511 = vunpack.c.l.b16 %v3440
      %v3512 = vpack.c.b16 %v3481, %v3480
      %v3513 = vpack.c.b16 %v3483, %v3482
      %v3514 = vpack.c.b16 %v3485, %v3484
      %v3515 = vpack.c.b16 %v3487, %v3486
      %v3516 = vpack.c.b16 %v3489, %v3488
      %v3517 = vpack.c.b16 %v3491, %v3490
      %v3518 = vpack.c.b16 %v3493, %v3492
      %v3519 = vpack.c.b16 %v3495, %v3494
      %v3520 = vpack.c.b16 %v3497, %v3496
      %v3521 = vpack.c.b16 %v3499, %v3498
      %v3522 = vpack.c.b16 %v3501, %v3500
      %v3523 = vpack.c.b16 %v3503, %v3502
      %v3524 = vpack.c.b16 %v3505, %v3504
      %v3525 = vpack.c.b16 %v3507, %v3506
      %v3526 = vpack.c.b16 %v3509, %v3508
      %v3527 = vpack.c.b16 %v3511, %v3510
      %v3560 = vunpack.c.l.b16 %v3396
      %v3561 = vunpack.c.l.b16 %v3399
      %v3562 = vunpack.c.l.b16 %v3402
      %v3563 = vunpack.c.l.b16 %v3405
      %v3564 = vunpack.c.l.b16 %v3408
      %v3565 = vunpack.c.l.b16 %v3411
      %v3566 = vunpack.c.l.b16 %v3414
      %v3567 = vunpack.c.l.b16 %v3417
      %v3568 = vunpack.c.l.b16 %v3420
      %v3569 = vunpack.c.l.b16 %v3423
      %v3570 = vunpack.c.l.b16 %v3426
      %v3571 = vunpack.c.l.b16 %v3429
      %v3572 = vunpack.c.l.b16 %v3432
      %v3573 = vunpack.c.l.b16 %v3435
      %v3574 = vunpack.c.l.b16 %v3438
      %v3575 = vunpack.c.l.b16 %v3441
      %v3576 = vpack.c.b16 %v3560, %v3560
      %v3577 = vpack.c.b16 %v3561, %v3561
      %v3578 = vpack.c.b16 %v3562, %v3562
      %v3579 = vpack.c.b16 %v3563, %v3563
      %v3580 = vpack.c.b16 %v3564, %v3564
      %v3581 = vpack.c.b16 %v3565, %v3565
      %v3582 = vpack.c.b16 %v3566, %v3566
      %v3583 = vpack.c.b16 %v3567, %v3567
      %v3584 = vpack.c.b16 %v3568, %v3568
      %v3585 = vpack.c.b16 %v3569, %v3569
      %v3586 = vpack.c.b16 %v3570, %v3570
      %v3587 = vpack.c.b16 %v3571, %v3571
      %v3588 = vpack.c.b16 %v3572, %v3572
      %v3589 = vpack.c.b16 %v3573, %v3573
      %v3590 = vpack.c.b16 %v3574, %v3574
      %v3591 = vpack.c.b16 %v3575, %v3575
      %v3593 = vshrl.u32 %v3512, 16
      %v3595 = vshll.u32 %v3512, 16
      %v3597 = vrot.slane %v3595, 1
      %v3598 = vor.u32 %v3593, %v3597
      %v3600 = vshll.u32 %v3576, 16
      %v3602 = vrot.slane %v3600, 1
      %v3603 = vsel %vm471, %v3598, %v3602
      %v3605 = vshrl.u32 %v3513, 16
      %v3607 = vshll.u32 %v3513, 16
      %v3609 = vrot.slane %v3607, 1
      %v3610 = vor.u32 %v3605, %v3609
      %v3612 = vshll.u32 %v3577, 16
      %v3614 = vrot.slane %v3612, 1
      %v3615 = vsel %vm471, %v3610, %v3614
      %v3617 = vshrl.u32 %v3514, 16
      %v3619 = vshll.u32 %v3514, 16
      %v3621 = vrot.slane %v3619, 1
      %v3622 = vor.u32 %v3617, %v3621
      %v3624 = vshll.u32 %v3578, 16
      %v3626 = vrot.slane %v3624, 1
      %v3627 = vsel %vm471, %v3622, %v3626
      %v3629 = vshrl.u32 %v3515, 16
      %v3631 = vshll.u32 %v3515, 16
      %v3633 = vrot.slane %v3631, 1
      %v3634 = vor.u32 %v3629, %v3633
      %v3636 = vshll.u32 %v3579, 16
      %v3638 = vrot.slane %v3636, 1
      %v3639 = vsel %vm471, %v3634, %v3638
      %v3641 = vshrl.u32 %v3516, 16
      %v3643 = vshll.u32 %v3516, 16
      %v3645 = vrot.slane %v3643, 1
      %v3646 = vor.u32 %v3641, %v3645
      %v3648 = vshll.u32 %v3580, 16
      %v3650 = vrot.slane %v3648, 1
      %v3651 = vsel %vm471, %v3646, %v3650
      %v3653 = vshrl.u32 %v3517, 16
      %v3655 = vshll.u32 %v3517, 16
      %v3657 = vrot.slane %v3655, 1
      %v3658 = vor.u32 %v3653, %v3657
      %v3660 = vshll.u32 %v3581, 16
      %v3662 = vrot.slane %v3660, 1
      %v3663 = vsel %vm471, %v3658, %v3662
      %v3665 = vshrl.u32 %v3518, 16
      %v3667 = vshll.u32 %v3518, 16
      %v3669 = vrot.slane %v3667, 1
      %v3670 = vor.u32 %v3665, %v3669
      %v3672 = vshll.u32 %v3582, 16
      %v3674 = vrot.slane %v3672, 1
      %v3675 = vsel %vm471, %v3670, %v3674
      %v3677 = vshrl.u32 %v3519, 16
      %v3679 = vshll.u32 %v3519, 16
      %v3681 = vrot.slane %v3679, 1
      %v3682 = vor.u32 %v3677, %v3681
      %v3684 = vshll.u32 %v3583, 16
      %v3686 = vrot.slane %v3684, 1
      %v3687 = vsel %vm471, %v3682, %v3686
      %v3689 = vshrl.u32 %v3520, 16
      %v3691 = vshll.u32 %v3520, 16
      %v3693 = vrot.slane %v3691, 1
      %v3694 = vor.u32 %v3689, %v3693
      %v3696 = vshll.u32 %v3584, 16
      %v3698 = vrot.slane %v3696, 1
      %v3699 = vsel %vm471, %v3694, %v3698
      %v3701 = vshrl.u32 %v3521, 16
      %v3703 = vshll.u32 %v3521, 16
      %v3705 = vrot.slane %v3703, 1
      %v3706 = vor.u32 %v3701, %v3705
      %v3708 = vshll.u32 %v3585, 16
      %v3710 = vrot.slane %v3708, 1
      %v3711 = vsel %vm471, %v3706, %v3710
      %v3713 = vshrl.u32 %v3522, 16
      %v3715 = vshll.u32 %v3522, 16
      %v3717 = vrot.slane %v3715, 1
      %v3718 = vor.u32 %v3713, %v3717
      %v3720 = vshll.u32 %v3586, 16
      %v3722 = vrot.slane %v3720, 1
      %v3723 = vsel %vm471, %v3718, %v3722
      %v3725 = vshrl.u32 %v3523, 16
      %v3727 = vshll.u32 %v3523, 16
      %v3729 = vrot.slane %v3727, 1
      %v3730 = vor.u32 %v3725, %v3729
      %v3732 = vshll.u32 %v3587, 16
      %v3734 = vrot.slane %v3732, 1
      %v3735 = vsel %vm471, %v3730, %v3734
      %v3737 = vshrl.u32 %v3524, 16
      %v3739 = vshll.u32 %v3524, 16
      %v3741 = vrot.slane %v3739, 1
      %v3742 = vor.u32 %v3737, %v3741
      %v3744 = vshll.u32 %v3588, 16
      %v3746 = vrot.slane %v3744, 1
      %v3747 = vsel %vm471, %v3742, %v3746
      %v3749 = vshrl.u32 %v3525, 16
      %v3751 = vshll.u32 %v3525, 16
      %v3753 = vrot.slane %v3751, 1
      %v3754 = vor.u32 %v3749, %v3753
      %v3756 = vshll.u32 %v3589, 16
      %v3758 = vrot.slane %v3756, 1
      %v3759 = vsel %vm471, %v3754, %v3758
      %v3761 = vshrl.u32 %v3526, 16
      %v3763 = vshll.u32 %v3526, 16
      %v3765 = vrot.slane %v3763, 1
      %v3766 = vor.u32 %v3761, %v3765
      %v3768 = vshll.u32 %v3590, 16
      %v3770 = vrot.slane %v3768, 1
      %v3771 = vsel %vm471, %v3766, %v3770
      %v3773 = vshrl.u32 %v3527, 16
      %v3775 = vshll.u32 %v3527, 16
      %v3777 = vrot.slane %v3775, 1
      %v3778 = vor.u32 %v3773, %v3777
      %v3780 = vshll.u32 %v3591, 16
      %v3782 = vrot.slane %v3780, 1
      %v3783 = vsel %vm471, %v3778, %v3782
      %v3800 = vrot.slane %v3512, 1
      %v3801 = vrot.slane %v3576, 1
      %v3802 = vsel %vm680, %v3800, %v3801
      %v3803 = vrot.slane %v3513, 1
      %v3804 = vrot.slane %v3577, 1
      %v3805 = vsel %vm680, %v3803, %v3804
      %v3806 = vrot.slane %v3514, 1
      %v3807 = vrot.slane %v3578, 1
      %v3808 = vsel %vm680, %v3806, %v3807
      %v3809 = vrot.slane %v3515, 1
      %v3810 = vrot.slane %v3579, 1
      %v3811 = vsel %vm680, %v3809, %v3810
      %v3812 = vrot.slane %v3516, 1
      %v3813 = vrot.slane %v3580, 1
      %v3814 = vsel %vm680, %v3812, %v3813
      %v3815 = vrot.slane %v3517, 1
      %v3816 = vrot.slane %v3581, 1
      %v3817 = vsel %vm680, %v3815, %v3816
      %v3818 = vrot.slane %v3518, 1
      %v3819 = vrot.slane %v3582, 1
      %v3820 = vsel %vm680, %v3818, %v3819
      %v3821 = vrot.slane %v3519, 1
      %v3822 = vrot.slane %v3583, 1
      %v3823 = vsel %vm680, %v3821, %v3822
      %v3824 = vrot.slane %v3520, 1
      %v3825 = vrot.slane %v3584, 1
      %v3826 = vsel %vm680, %v3824, %v3825
      %v3827 = vrot.slane %v3521, 1
      %v3828 = vrot.slane %v3585, 1
      %v3829 = vsel %vm680, %v3827, %v3828
      %v3830 = vrot.slane %v3522, 1
      %v3831 = vrot.slane %v3586, 1
      %v3832 = vsel %vm680, %v3830, %v3831
      %v3833 = vrot.slane %v3523, 1
      %v3834 = vrot.slane %v3587, 1
      %v3835 = vsel %vm680, %v3833, %v3834
      %v3836 = vrot.slane %v3524, 1
      %v3837 = vrot.slane %v3588, 1
      %v3838 = vsel %vm680, %v3836, %v3837
      %v3839 = vrot.slane %v3525, 1
      %v3840 = vrot.slane %v3589, 1
      %v3841 = vsel %vm680, %v3839, %v3840
      %v3842 = vrot.slane %v3526, 1
      %v3843 = vrot.slane %v3590, 1
      %v3844 = vsel %vm680, %v3842, %v3843
      %v3845 = vrot.slane %v3527, 1
      %v3846 = vrot.slane %v3591, 1
      %v3847 = vsel %vm680, %v3845, %v3846
      %v3866 = vunpack.c.l.b16 %v3442
      %v3867 = vunpack.c.l.b16 %v3443
      %v3868 = vpack.c.b16 %v3867, %v3866
      %v3871 = vunpack.c.l.b16 %v3444
      %v3872 = vpack.c.b16 %v3871, %v3871
      %v3874 = vshrl.u32 %v3868, 16
      %v3876 = vshll.u32 %v3868, 16
      %v3878 = vrot.slane %v3876, 1
      %v3879 = vor.u32 %v3874, %v3878
      %v3881 = vshll.u32 %v3872, 16
      %v3883 = vrot.slane %v3881, 1
      %v3884 = vsel %vm471, %v3879, %v3883
      %v3886 = vrot.slane %v3868, 1
      %v3887 = vrot.slane %v3872, 1
      %v3888 = vsel %vm680, %v3886, %v3887
      %v3892 = vunpack.c.l.b16 %v3445
      %v3893 = vunpack.c.l.b16 %v3446
      %v3894 = vpack.c.b16 %v3893, %v3892
      %v3897 = vunpack.c.l.b16 %v3447
      %v3898 = vpack.c.b16 %v3897, %v3897
      %v3900 = vshrl.u32 %v3894, 16
      %v3902 = vshll.u32 %v3894, 16
      %v3904 = vrot.slane %v3902, 1
      %v3905 = vor.u32 %v3900, %v3904
      %v3907 = vshll.u32 %v3898, 16
      %v3909 = vrot.slane %v3907, 1
      %v3910 = vsel %vm471, %v3905, %v3909
      %v3912 = vrot.slane %v3894, 1
      %v3913 = vrot.slane %v3898, 1
      %v3914 = vsel %vm680, %v3912, %v3913
      %v3916 = vld [vmem:[%s4] sm:$0xf]
      %v3917 = vld [vmem:[%s4 + $0x4] sm:$0xf]
      %v3918 = vld [vmem:[%s4 + $0x8] sm:$0xf]
      %v3919 = vld [vmem:[%s4 + $0xc] sm:$0xf]
      %v3920 = vld [vmem:[%s4 + $0x10] sm:$0xf]
      %v3921 = vld [vmem:[%s4 + $0x14] sm:$0xf]
      %v3922 = vld [vmem:[%s4 + $0x18] sm:$0xf]
      %v3923 = vld [vmem:[%s4 + $0x1c] sm:$0xf]
      %v3924 = vld [vmem:[%s4 + $0x20] sm:$0xf]
      %v3925 = vld [vmem:[%s4 + $0x24] sm:$0xf]
      %v3926 = vld [vmem:[%s4 + $0x28] sm:$0xf]
      %v3927 = vld [vmem:[%s4 + $0x2c] sm:$0xf]
      %v3928 = vld [vmem:[%s4 + $0x30] sm:$0xf]
      %v3929 = vld [vmem:[%s4 + $0x34] sm:$0xf]
      %v3930 = vld [vmem:[%s4 + $0x38] sm:$0xf]
      %v3931 = vld [vmem:[%s4 + $0x3c] sm:$0xf]
      %v3932 = vld [vmem:[%s4 + $0x40] sm:$0xf]
      %v3933 = vld [vmem:[%s4 + $0x44] sm:$0xf]
      %v3934 = vld [vmem:[%s4 + $0x48] sm:$0xf]
      %v3935 = vld [vmem:[%s4 + $0x4c] sm:$0xf]
      %v3936 = vld [vmem:[%s4 + $0x50] sm:$0xf]
      %v3937 = vld [vmem:[%s4 + $0x54] sm:$0xf]
      %v3938 = vld [vmem:[%s4 + $0x58] sm:$0xf]
      %v3939 = vld [vmem:[%s4 + $0x5c] sm:$0xf]
      %v3940 = vld [vmem:[%s4 + $0x60] sm:$0xf]
      %v3941 = vld [vmem:[%s4 + $0x64] sm:$0xf]
      %v3942 = vld [vmem:[%s4 + $0x68] sm:$0xf]
      %v3943 = vld [vmem:[%s4 + $0x6c] sm:$0xf]
      %v3944 = vld [vmem:[%s4 + $0x70] sm:$0xf]
      %v3945 = vld [vmem:[%s4 + $0x74] sm:$0xf]
      %v3946 = vld [vmem:[%s4 + $0x78] sm:$0xf]
      %v3947 = vld [vmem:[%s4 + $0x7c] sm:$0xf]
      %v3948 = vld [vmem:[%s4 + $0x80] sm:$0xf]
      %v3949 = vld [vmem:[%s4 + $0x84] sm:$0xf]
      %v3950 = vld [vmem:[%s4 + $0x88] sm:$0xf]
      %v3951 = vld [vmem:[%s4 + $0x8c] sm:$0xf]
      %v3952 = vld [vmem:[%s4 + $0x90] sm:$0xf]
      %v3953 = vld [vmem:[%s4 + $0x94] sm:$0xf]
      %v3954 = vld [vmem:[%s4 + $0x98] sm:$0xf]
      %v3955 = vld [vmem:[%s4 + $0x9c] sm:$0xf]
      %v3956 = vld [vmem:[%s4 + $0xa0] sm:$0xf]
      %v3957 = vld [vmem:[%s4 + $0xa4] sm:$0xf]
      %v3958 = vld [vmem:[%s4 + $0xa8] sm:$0xf]
      %v3959 = vld [vmem:[%s4 + $0xac] sm:$0xf]
      %v3960 = vld [vmem:[%s4 + $0xb0] sm:$0xf]
      %v3961 = vld [vmem:[%s4 + $0xb4] sm:$0xf]
      %v3962 = vld [vmem:[%s4 + $0xb8] sm:$0xf]
      %v3963 = vld [vmem:[%s4 + $0xbc] sm:$0xf]
      %v3964 = vld [vmem:[%s4 + $0xc0] sm:$0xf]
      %v3965 = vld [vmem:[%s4 + $0xc4] sm:$0xf]
      %v3966 = vld [vmem:[%s4 + $0xc8] sm:$0xf]
      %v3967 = vld [vmem:[%s4 + $0xcc] sm:$0xf]
      %v3968 = vld [vmem:[%s4 + $0xd0] sm:$0xf]
      %v3969 = vld [vmem:[%s4 + $0xd4] sm:$0xf]
      %v3970 = vld [vmem:[%s4 + $0xd8] sm:$0xf]
      %v3971 = vld [vmem:[%s4 + $0xdc] sm:$0xf]
      %v3972 = vld [vmem:[%s4 + $0xe0] sm:$0xf]
      %v3973 = vld [vmem:[%s4 + $0xe4] sm:$0xf]
      %v3974 = vld [vmem:[%s4 + $0xe8] sm:$0xf]
      %v3975 = vld [vmem:[%s4 + $0xec] sm:$0xf]
      %v3976 = vld [vmem:[%s4 + $0xf0] sm:$0xf]
      %v3977 = vld [vmem:[%s4 + $0xf4] sm:$0xf]
      %v3978 = vld [vmem:[%s4 + $0xf8] sm:$0xf]
      %v3979 = vld [vmem:[%s4 + $0xfc] sm:$0xf]
      %v3980 = vld [vmem:[%s4 + $0x100] sm:$0xf]
      %v3981 = vld [vmem:[%s4 + $0x104] sm:$0xf]
      %v3982 = vld [vmem:[%s4 + $0x108] sm:$0xf]
      %v3983 = vld [vmem:[%s4 + $0x10c] sm:$0xf]
      %v3984 = vld [vmem:[%s4 + $0x110] sm:$0xf]
      %v3985 = vld [vmem:[%s4 + $0x114] sm:$0xf]
      %v3986 = vld [vmem:[%s4 + $0x118] sm:$0xf]
      %v3987 = vld [vmem:[%s4 + $0x11c] sm:$0xf]
      %v3988 = vld [vmem:[%s4 + $0x120] sm:$0xf]
      %v3989 = vld [vmem:[%s4 + $0x124] sm:$0xf]
      %v3990 = vld [vmem:[%s4 + $0x128] sm:$0xf]
      %v3991 = vld [vmem:[%s4 + $0x12c] sm:$0xf]
      %v3992 = vld [vmem:[%s4 + $0x130] sm:$0xf]
      %v3993 = vld [vmem:[%s4 + $0x134] sm:$0xf]
      %v3994 = vld [vmem:[%s4 + $0x138] sm:$0xf]
      %v3995 = vld [vmem:[%s4 + $0x13c] sm:$0xf]
      %v3996 = vld [vmem:[%s4 + $0x140] sm:$0xf]
      %v3997 = vld [vmem:[%s4 + $0x144] sm:$0xf]
      %v3998 = vld [vmem:[%s4 + $0x148] sm:$0xf]
      %v3999 = vld [vmem:[%s4 + $0x14c] sm:$0xf]
      %v4000 = vld [vmem:[%s4 + $0x150] sm:$0xf]
      %v4001 = vld [vmem:[%s4 + $0x154] sm:$0xf]
      %v4002 = vld [vmem:[%s4 + $0x158] sm:$0xf]
      %v4003 = vld [vmem:[%s4 + $0x15c] sm:$0xf]
      %v4004 = vld [vmem:[%s4 + $0x160] sm:$0xf]
      %v4005 = vld [vmem:[%s4 + $0x164] sm:$0xf]
      %v4006 = vld [vmem:[%s4 + $0x168] sm:$0xf]
      %v4007 = vld [vmem:[%s4 + $0x16c] sm:$0xf]
      %v4008 = vld [vmem:[%s4 + $0x170] sm:$0xf]
      %v4009 = vld [vmem:[%s4 + $0x174] sm:$0xf]
      %v4010 = vld [vmem:[%s4 + $0x178] sm:$0xf]
      %v4011 = vld [vmem:[%s4 + $0x17c] sm:$0xf]
      %v4012 = vld [vmem:[%s4 + $0x180] sm:$0xf]
      %v4013 = vld [vmem:[%s4 + $0x184] sm:$0xf]
      %v4014 = vld [vmem:[%s4 + $0x188] sm:$0xf]
      %v4015 = vld [vmem:[%s4 + $0x18c] sm:$0xf]
      %v4016 = vld [vmem:[%s4 + $0x190] sm:$0xf]
      %v4017 = vld [vmem:[%s4 + $0x194] sm:$0xf]
      %v4018 = vld [vmem:[%s4 + $0x198] sm:$0xf]
      %v4019 = vld [vmem:[%s4 + $0x19c] sm:$0xf]
      %v4020 = vld [vmem:[%s4 + $0x1a0] sm:$0xf]
      %v4021 = vld [vmem:[%s4 + $0x1a4] sm:$0xf]
      %v4022 = vld [vmem:[%s4 + $0x1a8] sm:$0xf]
      %v4023 = vld [vmem:[%s4 + $0x1ac] sm:$0xf]
      %v4024 = vld [vmem:[%s4 + $0x1b0] sm:$0xf]
      %v4025 = vld [vmem:[%s4 + $0x1b4] sm:$0xf]
      %v4026 = vld [vmem:[%s4 + $0x1b8] sm:$0xf]
      %v4027 = vld [vmem:[%s4 + $0x1bc] sm:$0xf]
      %v4028 = vld [vmem:[%s4 + $0x1c0] sm:$0xf]
      %v4029 = vld [vmem:[%s4 + $0x1c4] sm:$0xf]
      %v4030 = vld [vmem:[%s4 + $0x1c8] sm:$0xf]
      %v4031 = vld [vmem:[%s4 + $0x1cc] sm:$0xf]
      %v4032 = vld [vmem:[%s4 + $0x1d0] sm:$0xf]
      %v4033 = vld [vmem:[%s4 + $0x1d4] sm:$0xf]
      %v4034 = vld [vmem:[%s4 + $0x1d8] sm:$0xf]
      %v4035 = vld [vmem:[%s4 + $0x1dc] sm:$0xf]
      %v4036 = vld [vmem:[%s4 + $0x1e0] sm:$0xf]
      %v4037 = vld [vmem:[%s4 + $0x1e4] sm:$0xf]
      %v4038 = vld [vmem:[%s4 + $0x1e8] sm:$0xf]
      %v4039 = vld [vmem:[%s4 + $0x1ec] sm:$0xf]
      %v4040 = vld [vmem:[%s4 + $0x1f0] sm:$0xf]
      %v4041 = vld [vmem:[%s4 + $0x1f4] sm:$0xf]
      %v4042 = vld [vmem:[%s4 + $0x1f8] sm:$0xf]
      %v4043 = vld [vmem:[%s4 + $0x1fc] sm:$0xf]
      %v4044 = vld [vmem:[%s4 + $0x200] sm:$0xf]
      %v4045 = vld [vmem:[%s4 + $0x204] sm:$0xf]
      %v4046 = vld [vmem:[%s4 + $0x208] sm:$0xf]
      %v4047 = vld [vmem:[%s4 + $0x20c] sm:$0xf]
      %v4048 = vld [vmem:[%s4 + $0x210] sm:$0xf]
      %v4049 = vld [vmem:[%s4 + $0x214] sm:$0xf]
      %v4050 = vld [vmem:[%s4 + $0x218] sm:$0xf]
      %v4051 = vld [vmem:[%s4 + $0x21c] sm:$0xf]
      %v4052 = vld [vmem:[%s4 + $0x220] sm:$0xf]
      %v4053 = vld [vmem:[%s4 + $0x224] sm:$0xf]
      %v4054 = vld [vmem:[%s4 + $0x228] sm:$0xf]
      %v4055 = vld [vmem:[%s4 + $0x22c] sm:$0xf]
      %v4056 = vld [vmem:[%s4 + $0x230] sm:$0xf]
      %v4057 = vld [vmem:[%s4 + $0x234] sm:$0xf]
      %v4058 = vld [vmem:[%s4 + $0x238] sm:$0xf]
      %v4059 = vld [vmem:[%s4 + $0x23c] sm:$0xf]
      %v4060 = vld [vmem:[%s5] sm:$0x1]
      %v4062 = vlaneseq
      %v4063 = vshrl.u32 %v4062, 7
      %v4064 = vsub.s32 0, %v4063
      %v4065 = vrot.slane %v4060, %v4064
      %v4211 = vunpack.c.l.b16 %v3916
      %v4212 = vunpack.c.l.b16 %v3917
      %v4213 = vunpack.c.l.b16 %v3918
      %v4214 = vunpack.c.l.b16 %v3919
      %v4215 = vunpack.c.l.b16 %v3920
      %v4216 = vunpack.c.l.b16 %v3921
      %v4217 = vunpack.c.l.b16 %v3922
      %v4218 = vunpack.c.l.b16 %v3923
      %v4219 = vunpack.c.l.b16 %v3924
      %v4220 = vunpack.c.l.b16 %v3925
      %v4221 = vunpack.c.l.b16 %v3926
      %v4222 = vunpack.c.l.b16 %v3927
      %v4223 = vunpack.c.l.b16 %v3928
      %v4224 = vunpack.c.l.b16 %v3929
      %v4225 = vunpack.c.l.b16 %v3930
      %v4226 = vunpack.c.l.b16 %v3931
      %v4227 = vunpack.c.l.b16 %v3932
      %v4228 = vunpack.c.l.b16 %v3933
      %v4229 = vunpack.c.l.b16 %v3934
      %v4230 = vunpack.c.l.b16 %v3935
      %v4231 = vunpack.c.l.b16 %v3936
      %v4232 = vunpack.c.l.b16 %v3937
      %v4233 = vunpack.c.l.b16 %v3938
      %v4234 = vunpack.c.l.b16 %v3939
      %v4235 = vunpack.c.l.b16 %v3940
      %v4236 = vunpack.c.l.b16 %v3941
      %v4237 = vunpack.c.l.b16 %v3942
      %v4238 = vunpack.c.l.b16 %v3943
      %v4239 = vunpack.c.l.b16 %v3944
      %v4240 = vunpack.c.l.b16 %v3945
      %v4241 = vunpack.c.l.b16 %v3946
      %v4242 = vunpack.c.l.b16 %v3947
      %v4243 = vunpack.c.l.b16 %v3948
      %v4244 = vunpack.c.l.b16 %v3949
      %v4245 = vunpack.c.l.b16 %v3950
      %v4246 = vunpack.c.l.b16 %v3951
      %v4247 = vunpack.c.l.b16 %v3952
      %v4248 = vunpack.c.l.b16 %v3953
      %v4249 = vunpack.c.l.b16 %v3954
      %v4250 = vunpack.c.l.b16 %v3955
      %v4251 = vunpack.c.l.b16 %v3956
      %v4252 = vunpack.c.l.b16 %v3957
      %v4253 = vunpack.c.l.b16 %v3958
      %v4254 = vunpack.c.l.b16 %v3959
      %v4255 = vunpack.c.l.b16 %v3960
      %v4256 = vunpack.c.l.b16 %v3961
      %v4257 = vunpack.c.l.b16 %v3962
      %v4258 = vunpack.c.l.b16 %v3963
      %v4259 = vunpack.c.l.b16 %v3964
      %v4260 = vunpack.c.l.b16 %v3965
      %v4261 = vunpack.c.l.b16 %v3966
      %v4262 = vunpack.c.l.b16 %v3967
      %v4263 = vunpack.c.l.b16 %v3968
      %v4264 = vunpack.c.l.b16 %v3969
      %v4265 = vunpack.c.l.b16 %v3970
      %v4266 = vunpack.c.l.b16 %v3971
      %v4267 = vunpack.c.l.b16 %v3972
      %v4268 = vunpack.c.l.b16 %v3973
      %v4269 = vunpack.c.l.b16 %v3974
      %v4270 = vunpack.c.l.b16 %v3975
      %v4271 = vunpack.c.l.b16 %v3976
      %v4272 = vunpack.c.l.b16 %v3977
      %v4273 = vunpack.c.l.b16 %v3978
      %v4274 = vunpack.c.l.b16 %v3979
      %v4275 = vunpack.c.l.b16 %v3980
      %v4276 = vunpack.c.l.b16 %v3981
      %v4277 = vunpack.c.l.b16 %v3982
      %v4278 = vunpack.c.l.b16 %v3983
      %v4279 = vunpack.c.l.b16 %v3984
      %v4280 = vunpack.c.l.b16 %v3985
      %v4281 = vunpack.c.l.b16 %v3986
      %v4282 = vunpack.c.l.b16 %v3987
      %v4283 = vunpack.c.l.b16 %v3988
      %v4284 = vunpack.c.l.b16 %v3989
      %v4285 = vunpack.c.l.b16 %v3990
      %v4286 = vunpack.c.l.b16 %v3991
      %v4287 = vunpack.c.l.b16 %v3992
      %v4288 = vunpack.c.l.b16 %v3993
      %v4289 = vunpack.c.l.b16 %v3994
      %v4290 = vunpack.c.l.b16 %v3995
      %v4291 = vunpack.c.l.b16 %v3996
      %v4292 = vunpack.c.l.b16 %v3997
      %v4293 = vunpack.c.l.b16 %v3998
      %v4294 = vunpack.c.l.b16 %v3999
      %v4295 = vunpack.c.l.b16 %v4000
      %v4296 = vunpack.c.l.b16 %v4001
      %v4297 = vunpack.c.l.b16 %v4002
      %v4298 = vunpack.c.l.b16 %v4003
      %v4299 = vunpack.c.l.b16 %v4004
      %v4300 = vunpack.c.l.b16 %v4005
      %v4301 = vunpack.c.l.b16 %v4006
      %v4302 = vunpack.c.l.b16 %v4007
      %v4303 = vunpack.c.l.b16 %v4008
      %v4304 = vunpack.c.l.b16 %v4009
      %v4305 = vunpack.c.l.b16 %v4010
      %v4306 = vunpack.c.l.b16 %v4011
      %v4307 = vunpack.c.l.b16 %v4012
      %v4308 = vunpack.c.l.b16 %v4013
      %v4309 = vunpack.c.l.b16 %v4014
      %v4310 = vunpack.c.l.b16 %v4015
      %v4311 = vunpack.c.l.b16 %v4016
      %v4312 = vunpack.c.l.b16 %v4017
      %v4313 = vunpack.c.l.b16 %v4018
      %v4314 = vunpack.c.l.b16 %v4019
      %v4315 = vunpack.c.l.b16 %v4020
      %v4316 = vunpack.c.l.b16 %v4021
      %v4317 = vunpack.c.l.b16 %v4022
      %v4318 = vunpack.c.l.b16 %v4023
      %v4319 = vunpack.c.l.b16 %v4024
      %v4320 = vunpack.c.l.b16 %v4025
      %v4321 = vunpack.c.l.b16 %v4026
      %v4322 = vunpack.c.l.b16 %v4027
      %v4323 = vunpack.c.l.b16 %v4028
      %v4324 = vunpack.c.l.b16 %v4029
      %v4325 = vunpack.c.l.b16 %v4030
      %v4326 = vunpack.c.l.b16 %v4031
      %v4327 = vunpack.c.l.b16 %v4032
      %v4328 = vunpack.c.l.b16 %v4033
      %v4329 = vunpack.c.l.b16 %v4034
      %v4330 = vunpack.c.l.b16 %v4035
      %v4331 = vunpack.c.l.b16 %v4036
      %v4332 = vunpack.c.l.b16 %v4037
      %v4333 = vunpack.c.l.b16 %v4038
      %v4334 = vunpack.c.l.b16 %v4039
      %v4335 = vunpack.c.l.b16 %v4040
      %v4336 = vunpack.c.l.b16 %v4041
      %v4337 = vunpack.c.l.b16 %v4042
      %v4338 = vunpack.c.l.b16 %v4043
      %v4339 = vunpack.c.l.b16 %v4044
      %v4340 = vunpack.c.l.b16 %v4045
      %v4341 = vunpack.c.l.b16 %v4046
      %v4342 = vunpack.c.l.b16 %v4047
      %v4343 = vunpack.c.l.b16 %v4048
      %v4344 = vunpack.c.l.b16 %v4049
      %v4345 = vunpack.c.l.b16 %v4050
      %v4346 = vunpack.c.l.b16 %v4051
      %v4347 = vunpack.c.l.b16 %v4052
      %v4348 = vunpack.c.l.b16 %v4053
      %v4349 = vunpack.c.l.b16 %v4054
      %v4350 = vunpack.c.l.b16 %v4055
      %v4351 = vunpack.c.l.b16 %v4056
      %v4352 = vunpack.c.l.b16 %v4057
      %v4353 = vunpack.c.l.b16 %v4058
      %v4354 = vunpack.c.l.b16 %v4059
      %v4355 = vpack.c.b16 %v4212, %v4211
      %v4356 = vpack.c.b16 %v4214, %v4213
      %v4357 = vpack.c.b16 %v4216, %v4215
      %v4358 = vpack.c.b16 %v4218, %v4217
      %v4359 = vpack.c.b16 %v4220, %v4219
      %v4360 = vpack.c.b16 %v4222, %v4221
      %v4361 = vpack.c.b16 %v4224, %v4223
      %v4362 = vpack.c.b16 %v4226, %v4225
      %v4363 = vpack.c.b16 %v4228, %v4227
      %v4364 = vpack.c.b16 %v4230, %v4229
      %v4365 = vpack.c.b16 %v4232, %v4231
      %v4366 = vpack.c.b16 %v4234, %v4233
      %v4367 = vpack.c.b16 %v4236, %v4235
      %v4368 = vpack.c.b16 %v4238, %v4237
      %v4369 = vpack.c.b16 %v4240, %v4239
      %v4370 = vpack.c.b16 %v4242, %v4241
      %v4371 = vpack.c.b16 %v4244, %v4243
      %v4372 = vpack.c.b16 %v4246, %v4245
      %v4373 = vpack.c.b16 %v4248, %v4247
      %v4374 = vpack.c.b16 %v4250, %v4249
      %v4375 = vpack.c.b16 %v4252, %v4251
      %v4376 = vpack.c.b16 %v4254, %v4253
      %v4377 = vpack.c.b16 %v4256, %v4255
      %v4378 = vpack.c.b16 %v4258, %v4257
      %v4379 = vpack.c.b16 %v4260, %v4259
      %v4380 = vpack.c.b16 %v4262, %v4261
      %v4381 = vpack.c.b16 %v4264, %v4263
      %v4382 = vpack.c.b16 %v4266, %v4265
      %v4383 = vpack.c.b16 %v4268, %v4267
      %v4384 = vpack.c.b16 %v4270, %v4269
      %v4385 = vpack.c.b16 %v4272, %v4271
      %v4386 = vpack.c.b16 %v4274, %v4273
      %v4387 = vpack.c.b16 %v4276, %v4275
      %v4388 = vpack.c.b16 %v4278, %v4277
      %v4389 = vpack.c.b16 %v4280, %v4279
      %v4390 = vpack.c.b16 %v4282, %v4281
      %v4391 = vpack.c.b16 %v4284, %v4283
      %v4392 = vpack.c.b16 %v4286, %v4285
      %v4393 = vpack.c.b16 %v4288, %v4287
      %v4394 = vpack.c.b16 %v4290, %v4289
      %v4395 = vpack.c.b16 %v4292, %v4291
      %v4396 = vpack.c.b16 %v4294, %v4293
      %v4397 = vpack.c.b16 %v4296, %v4295
      %v4398 = vpack.c.b16 %v4298, %v4297
      %v4399 = vpack.c.b16 %v4300, %v4299
      %v4400 = vpack.c.b16 %v4302, %v4301
      %v4401 = vpack.c.b16 %v4304, %v4303
      %v4402 = vpack.c.b16 %v4306, %v4305
      %v4403 = vpack.c.b16 %v4308, %v4307
      %v4404 = vpack.c.b16 %v4310, %v4309
      %v4405 = vpack.c.b16 %v4312, %v4311
      %v4406 = vpack.c.b16 %v4314, %v4313
      %v4407 = vpack.c.b16 %v4316, %v4315
      %v4408 = vpack.c.b16 %v4318, %v4317
      %v4409 = vpack.c.b16 %v4320, %v4319
      %v4410 = vpack.c.b16 %v4322, %v4321
      %v4411 = vpack.c.b16 %v4324, %v4323
      %v4412 = vpack.c.b16 %v4326, %v4325
      %v4413 = vpack.c.b16 %v4328, %v4327
      %v4414 = vpack.c.b16 %v4330, %v4329
      %v4415 = vpack.c.b16 %v4332, %v4331
      %v4416 = vpack.c.b16 %v4334, %v4333
      %v4417 = vpack.c.b16 %v4336, %v4335
      %v4418 = vpack.c.b16 %v4338, %v4337
      %v4419 = vpack.c.b16 %v4340, %v4339
      %v4420 = vpack.c.b16 %v4342, %v4341
      %v4421 = vpack.c.b16 %v4344, %v4343
      %v4422 = vpack.c.b16 %v4346, %v4345
      %v4423 = vpack.c.b16 %v4348, %v4347
      %v4424 = vpack.c.b16 %v4350, %v4349
      %v4425 = vpack.c.b16 %v4352, %v4351
      %v4426 = vpack.c.b16 %v4354, %v4353
      %4499 = vmatprep.subr.bf16.mxu0 0
      %4500 = vmatpush1.bf16.msra.mxu0 %v4355
      %4501 = vmatprep.subr.bf16.mxu0 0
      %4502 = vmatpush1.bf16.msra.mxu0 %v4356
      %4503 = vmatprep.subr.bf16.mxu0 0
      %4504 = vmatpush1.bf16.msra.mxu0 %v4357
      %4505 = vmatprep.subr.bf16.mxu0 0
      %4506 = vmatpush1.bf16.msra.mxu0 %v4358
      %4507 = vmatprep.subr.bf16.mxu0 0
      %4508 = vmatpush1.bf16.msra.mxu0 %v4359
      %4509 = vmatprep.subr.bf16.mxu0 0
      %4510 = vmatpush1.bf16.msra.mxu0 %v4360
      %4511 = vmatprep.subr.bf16.mxu0 0
      %4512 = vmatpush1.bf16.msra.mxu0 %v4361
      %4513 = vmatprep.subr.bf16.mxu0 0
      %4514 = vmatpush1.bf16.msra.mxu0 %v4362
      %4515 = vmatprep.subr.bf16.mxu0 0
      %4516 = vmatpush1.bf16.msra.mxu0 %v4363
      %4517 = vmatprep.subr.bf16.mxu0 0
      %4518 = vmatpush1.bf16.msra.mxu0 %v4364
      %4519 = vmatprep.subr.bf16.mxu0 0
      %4520 = vmatpush1.bf16.msra.mxu0 %v4365
      %4521 = vmatprep.subr.bf16.mxu0 0
      %4522 = vmatpush1.bf16.msra.mxu0 %v4366
      %4523 = vmatprep.subr.bf16.mxu0 0
      %4524 = vmatpush1.bf16.msra.mxu0 %v4367
      %4525 = vmatprep.subr.bf16.mxu0 0
      %4526 = vmatpush1.bf16.msra.mxu0 %v4368
      %4527 = vmatprep.subr.bf16.mxu0 0
      %4528 = vmatpush1.bf16.msra.mxu0 %v4369
      %4529 = vmatprep.subr.bf16.mxu0 0
      %4530 = vmatpush1.bf16.msra.mxu0 %v4370
      %4531 = vmatprep.mubr.bf16.mxu0 %v3603
      %4532 = vmatmul.mubr.bf16.gmra.mrb[0].mxu0 %v3512
      %v4533 = vpop.f32.mrb[0].mxu0
      %v4534 = vadd.f32 %v4065, %v4533
      %v4535 = vpop.f32.mrb[0].mxu0
      %v4536 = vpop.f32.mrb[0].mxu0
      %v4537 = vadd.f32 %v4065, %v4536
      %v4538 = vpop.f32.mrb[0].mxu0
      %4539 = vmatprep.mubr.bf16.mxu0 %v3615
      %4540 = vmatmul.mubr.bf16.gmra.mrb[0].mxu0 %v3513
      %v4541 = vpop.f32.mrb[0].mxu0
      %v4542 = vadd.f32 %v4065, %v4541
      %v4543 = vpop.f32.mrb[0].mxu0
      %v4544 = vpop.f32.mrb[0].mxu0
      %v4545 = vadd.f32 %v4065, %v4544
      %v4546 = vpop.f32.mrb[0].mxu0
      %4547 = vmatprep.mubr.bf16.mxu0 %v3627
      %4548 = vmatmul.mubr.bf16.gmra.mrb[0].mxu0 %v3514
      %v4549 = vpop.f32.mrb[0].mxu0
      %v4550 = vadd.f32 %v4065, %v4549
      %v4551 = vpop.f32.mrb[0].mxu0
      %v4552 = vpop.f32.mrb[0].mxu0
      %v4553 = vadd.f32 %v4065, %v4552
      %v4554 = vpop.f32.mrb[0].mxu0
      %4555 = vmatprep.mubr.bf16.mxu0 %v3639
      %4556 = vmatmul.mubr.bf16.gmra.mrb[0].mxu0 %v3515
      %v4557 = vpop.f32.mrb[0].mxu0
      %v4558 = vadd.f32 %v4065, %v4557
      %v4559 = vpop.f32.mrb[0].mxu0
      %v4560 = vpop.f32.mrb[0].mxu0
      %v4561 = vadd.f32 %v4065, %v4560
      %v4562 = vpop.f32.mrb[0].mxu0
      %4563 = vmatprep.mubr.bf16.mxu0 %v3651
      %4564 = vmatmul.mubr.bf16.gmra.mrb[0].mxu0 %v3516
      %v4565 = vpop.f32.mrb[0].mxu0
      %v4566 = vadd.f32 %v4065, %v4565
      %v4567 = vpop.f32.mrb[0].mxu0
      %v4568 = vpop.f32.mrb[0].mxu0
      %v4569 = vadd.f32 %v4065, %v4568
      %v4570 = vpop.f32.mrb[0].mxu0
      %4571 = vmatprep.mubr.bf16.mxu0 %v3663
      %4572 = vmatmul.mubr.bf16.gmra.mrb[0].mxu0 %v3517
      %v4573 = vpop.f32.mrb[0].mxu0
      %v4574 = vadd.f32 %v4065, %v4573
      %v4575 = vpop.f32.mrb[0].mxu0
      %v4576 = vpop.f32.mrb[0].mxu0
      %v4577 = vadd.f32 %v4065, %v4576
      %v4578 = vpop.f32.mrb[0].mxu0
      %4579 = vmatprep.mubr.bf16.mxu0 %v3675
      %4580 = vmatmul.mubr.bf16.gmra.mrb[0].mxu0 %v3518
      %v4581 = vpop.f32.mrb[0].mxu0
      %v4582 = vadd.f32 %v4065, %v4581
      %v4583 = vpop.f32.mrb[0].mxu0
      %v4584 = vpop.f32.mrb[0].mxu0
      %v4585 = vadd.f32 %v4065, %v4584
      %v4586 = vpop.f32.mrb[0].mxu0
      %4587 = vmatprep.mubr.bf16.mxu0 %v3687
      %4588 = vmatmul.mubr.bf16.gmra.mrb[0].mxu0 %v3519
      %v4589 = vpop.f32.mrb[0].mxu0
      %v4590 = vadd.f32 %v4065, %v4589
      %v4591 = vpop.f32.mrb[0].mxu0
      %v4592 = vpop.f32.mrb[0].mxu0
      %v4593 = vadd.f32 %v4065, %v4592
      %v4594 = vpop.f32.mrb[0].mxu0
      %4595 = vmatprep.mubr.bf16.mxu0 %v3699
      %4596 = vmatmul.mubr.bf16.gmra.mrb[0].mxu0 %v3520
      %v4597 = vpop.f32.mrb[0].mxu0
      %v4598 = vadd.f32 %v4065, %v4597
      %v4599 = vpop.f32.mrb[0].mxu0
      %v4600 = vpop.f32.mrb[0].mxu0
      %v4601 = vadd.f32 %v4065, %v4600
      %v4602 = vpop.f32.mrb[0].mxu0
      %4603 = vmatprep.mubr.bf16.mxu0 %v3711
      %4604 = vmatmul.mubr.bf16.gmra.mrb[0].mxu0 %v3521
      %v4605 = vpop.f32.mrb[0].mxu0
      %v4606 = vadd.f32 %v4065, %v4605
      %v4607 = vpop.f32.mrb[0].mxu0
      %v4608 = vpop.f32.mrb[0].mxu0
      %v4609 = vadd.f32 %v4065, %v4608
      %v4610 = vpop.f32.mrb[0].mxu0
      %4611 = vmatprep.mubr.bf16.mxu0 %v3723
      %4612 = vmatmul.mubr.bf16.gmra.mrb[0].mxu0 %v3522
      %v4613 = vpop.f32.mrb[0].mxu0
      %v4614 = vadd.f32 %v4065, %v4613
      %v4615 = vpop.f32.mrb[0].mxu0
      %v4616 = vpop.f32.mrb[0].mxu0
      %v4617 = vadd.f32 %v4065, %v4616
      %v4618 = vpop.f32.mrb[0].mxu0
      %4619 = vmatprep.mubr.bf16.mxu0 %v3735
      %4620 = vmatmul.mubr.bf16.gmra.mrb[0].mxu0 %v3523
      %v4621 = vpop.f32.mrb[0].mxu0
      %v4622 = vadd.f32 %v4065, %v4621
      %v4623 = vpop.f32.mrb[0].mxu0
      %v4624 = vpop.f32.mrb[0].mxu0
      %v4625 = vadd.f32 %v4065, %v4624
      %v4626 = vpop.f32.mrb[0].mxu0
      %4627 = vmatprep.mubr.bf16.mxu0 %v3747
      %4628 = vmatmul.mubr.bf16.gmra.mrb[0].mxu0 %v3524
      %v4629 = vpop.f32.mrb[0].mxu0
      %v4630 = vadd.f32 %v4065, %v4629
      %v4631 = vpop.f32.mrb[0].mxu0
      %v4632 = vpop.f32.mrb[0].mxu0
      %v4633 = vadd.f32 %v4065, %v4632
      %v4634 = vpop.f32.mrb[0].mxu0
      %4635 = vmatprep.mubr.bf16.mxu0 %v3759
      %4636 = vmatmul.mubr.bf16.gmra.mrb[0].mxu0 %v3525
      %v4637 = vpop.f32.mrb[0].mxu0
      %v4638 = vadd.f32 %v4065, %v4637
      %v4639 = vpop.f32.mrb[0].mxu0
      %v4640 = vpop.f32.mrb[0].mxu0
      %v4641 = vadd.f32 %v4065, %v4640
      %v4642 = vpop.f32.mrb[0].mxu0
      %4643 = vmatprep.mubr.bf16.mxu0 %v3771
      %4644 = vmatmul.mubr.bf16.gmra.mrb[0].mxu0 %v3526
      %v4645 = vpop.f32.mrb[0].mxu0
      %v4646 = vadd.f32 %v4065, %v4645
      %v4647 = vpop.f32.mrb[0].mxu0
      %v4648 = vpop.f32.mrb[0].mxu0
      %v4649 = vadd.f32 %v4065, %v4648
      %v4650 = vpop.f32.mrb[0].mxu0
      %4651 = vmatprep.mubr.bf16.mxu0 %v3783
      %4652 = vmatmul.mubr.bf16.gmra.mrb[0].mxu0 %v3527
      %v4653 = vpop.f32.mrb[0].mxu0
      %v4654 = vadd.f32 %v4065, %v4653
      %v4655 = vpop.f32.mrb[0].mxu0
      %v4656 = vpop.f32.mrb[0].mxu0
      %v4657 = vadd.f32 %v4065, %v4656
      %v4658 = vpop.f32.mrb[0].mxu0
      %4659 = vdwg.mxu0
      %4660 = vmatprep.subr.bf16.mxu0 0
      %4661 = vmatpush1.bf16.msra.mxu0 %v4371
      %4662 = vmatprep.subr.bf16.mxu0 0
      %4663 = vmatpush1.bf16.msra.mxu0 %v4372
      %4664 = vmatprep.subr.bf16.mxu0 0
      %4665 = vmatpush1.bf16.msra.mxu0 %v4373
      %4666 = vmatprep.subr.bf16.mxu0 0
      %4667 = vmatpush1.bf16.msra.mxu0 %v4374
      %4668 = vmatprep.subr.bf16.mxu0 0
      %4669 = vmatpush1.bf16.msra.mxu0 %v4375
      %4670 = vmatprep.subr.bf16.mxu0 0
      %4671 = vmatpush1.bf16.msra.mxu0 %v4376
      %4672 = vmatprep.subr.bf16.mxu0 0
      %4673 = vmatpush1.bf16.msra.mxu0 %v4377
      %4674 = vmatprep.subr.bf16.mxu0 0
      %4675 = vmatpush1.bf16.msra.mxu0 %v4378
      %4676 = vmatprep.subr.bf16.mxu0 0
      %4677 = vmatpush1.bf16.msra.mxu0 %v4379
      %4678 = vmatprep.subr.bf16.mxu0 0
      %4679 = vmatpush1.bf16.msra.mxu0 %v4380
      %4680 = vmatprep.subr.bf16.mxu0 0
      %4681 = vmatpush1.bf16.msra.mxu0 %v4381
      %4682 = vmatprep.subr.bf16.mxu0 0
      %4683 = vmatpush1.bf16.msra.mxu0 %v4382
      %4684 = vmatprep.subr.bf16.mxu0 0
      %4685 = vmatpush1.bf16.msra.mxu0 %v4383
      %4686 = vmatprep.subr.bf16.mxu0 0
      %4687 = vmatpush1.bf16.msra.mxu0 %v4384
      %4688 = vmatprep.subr.bf16.mxu0 0
      %4689 = vmatpush1.bf16.msra.mxu0 %v4385
      %4690 = vmatprep.subr.bf16.mxu0 0
      %4691 = vmatpush1.bf16.msra.mxu0 %v4386
      %4692 = vmatprep.mubr.bf16.mxu0 %v3513
      %4693 = vmatmul.mubr.bf16.gmra.mrb[0].mxu0 %v3802
      %v4694 = vpop.f32.mrb[0].mxu0
      %v4695 = vadd.f32 %v4534, %v4694
      %v4696 = vpop.f32.mrb[0].mxu0
      %v4697 = vpop.f32.mrb[0].mxu0
      %v4698 = vadd.f32 %v4537, %v4697
      %v4699 = vpop.f32.mrb[0].mxu0
      %4700 = vmatprep.mubr.bf16.mxu0 %v3514
      %4701 = vmatmul.mubr.bf16.gmra.mrb[0].mxu0 %v3805
      %v4702 = vpop.f32.mrb[0].mxu0
      %v4703 = vadd.f32 %v4542, %v4702
      %v4704 = vpop.f32.mrb[0].mxu0
      %v4705 = vpop.f32.mrb[0].mxu0
      %v4706 = vadd.f32 %v4545, %v4705
      %v4707 = vpop.f32.mrb[0].mxu0
      %4708 = vmatprep.mubr.bf16.mxu0 %v3515
      %4709 = vmatmul.mubr.bf16.gmra.mrb[0].mxu0 %v3808
      %v4710 = vpop.f32.mrb[0].mxu0
      %v4711 = vadd.f32 %v4550, %v4710
      %v4712 = vpop.f32.mrb[0].mxu0
      %v4713 = vpop.f32.mrb[0].mxu0
      %v4714 = vadd.f32 %v4553, %v4713
      %v4715 = vpop.f32.mrb[0].mxu0
      %4716 = vmatprep.mubr.bf16.mxu0 %v3516
      %4717 = vmatmul.mubr.bf16.gmra.mrb[0].mxu0 %v3811
      %v4718 = vpop.f32.mrb[0].mxu0
      %v4719 = vadd.f32 %v4558, %v4718
      %v4720 = vpop.f32.mrb[0].mxu0
      %v4721 = vpop.f32.mrb[0].mxu0
      %v4722 = vadd.f32 %v4561, %v4721
      %v4723 = vpop.f32.mrb[0].mxu0
      %4724 = vmatprep.mubr.bf16.mxu0 %v3517
      %4725 = vmatmul.mubr.bf16.gmra.mrb[0].mxu0 %v3814
      %v4726 = vpop.f32.mrb[0].mxu0
      %v4727 = vadd.f32 %v4566, %v4726
      %v4728 = vpop.f32.mrb[0].mxu0
      %v4729 = vpop.f32.mrb[0].mxu0
      %v4730 = vadd.f32 %v4569, %v4729
      %v4731 = vpop.f32.mrb[0].mxu0
      %4732 = vmatprep.mubr.bf16.mxu0 %v3518
      %4733 = vmatmul.mubr.bf16.gmra.mrb[0].mxu0 %v3817
      %v4734 = vpop.f32.mrb[0].mxu0
      %v4735 = vadd.f32 %v4574, %v4734
      %v4736 = vpop.f32.mrb[0].mxu0
      %v4737 = vpop.f32.mrb[0].mxu0
      %v4738 = vadd.f32 %v4577, %v4737
      %v4739 = vpop.f32.mrb[0].mxu0
      %4740 = vmatprep.mubr.bf16.mxu0 %v3519
      %4741 = vmatmul.mubr.bf16.gmra.mrb[0].mxu0 %v3820
      %v4742 = vpop.f32.mrb[0].mxu0
      %v4743 = vadd.f32 %v4582, %v4742
      %v4744 = vpop.f32.mrb[0].mxu0
      %v4745 = vpop.f32.mrb[0].mxu0
      %v4746 = vadd.f32 %v4585, %v4745
      %v4747 = vpop.f32.mrb[0].mxu0
      %4748 = vmatprep.mubr.bf16.mxu0 %v3520
      %4749 = vmatmul.mubr.bf16.gmra.mrb[0].mxu0 %v3823
      %v4750 = vpop.f32.mrb[0].mxu0
      %v4751 = vadd.f32 %v4590, %v4750
      %v4752 = vpop.f32.mrb[0].mxu0
      %v4753 = vpop.f32.mrb[0].mxu0
      %v4754 = vadd.f32 %v4593, %v4753
      %v4755 = vpop.f32.mrb[0].mxu0
      %4756 = vmatprep.mubr.bf16.mxu0 %v3521
      %4757 = vmatmul.mubr.bf16.gmra.mrb[0].mxu0 %v3826
      %v4758 = vpop.f32.mrb[0].mxu0
      %v4759 = vadd.f32 %v4598, %v4758
      %v4760 = vpop.f32.mrb[0].mxu0
      %v4761 = vpop.f32.mrb[0].mxu0
      %v4762 = vadd.f32 %v4601, %v4761
      %v4763 = vpop.f32.mrb[0].mxu0
      %4764 = vmatprep.mubr.bf16.mxu0 %v3522
      %4765 = vmatmul.mubr.bf16.gmra.mrb[0].mxu0 %v3829
      %v4766 = vpop.f32.mrb[0].mxu0
      %v4767 = vadd.f32 %v4606, %v4766
      %v4768 = vpop.f32.mrb[0].mxu0
      %v4769 = vpop.f32.mrb[0].mxu0
      %v4770 = vadd.f32 %v4609, %v4769
      %v4771 = vpop.f32.mrb[0].mxu0
      %4772 = vmatprep.mubr.bf16.mxu0 %v3523
      %4773 = vmatmul.mubr.bf16.gmra.mrb[0].mxu0 %v3832
      %v4774 = vpop.f32.mrb[0].mxu0
      %v4775 = vadd.f32 %v4614, %v4774
      %v4776 = vpop.f32.mrb[0].mxu0
      %v4777 = vpop.f32.mrb[0].mxu0
      %v4778 = vadd.f32 %v4617, %v4777
      %v4779 = vpop.f32.mrb[0].mxu0
      %4780 = vmatprep.mubr.bf16.mxu0 %v3524
      %4781 = vmatmul.mubr.bf16.gmra.mrb[0].mxu0 %v3835
      %v4782 = vpop.f32.mrb[0].mxu0
      %v4783 = vadd.f32 %v4622, %v4782
      %v4784 = vpop.f32.mrb[0].mxu0
      %v4785 = vpop.f32.mrb[0].mxu0
      %v4786 = vadd.f32 %v4625, %v4785
      %v4787 = vpop.f32.mrb[0].mxu0
      %4788 = vmatprep.mubr.bf16.mxu0 %v3525
      %4789 = vmatmul.mubr.bf16.gmra.mrb[0].mxu0 %v3838
      %v4790 = vpop.f32.mrb[0].mxu0
      %v4791 = vadd.f32 %v4630, %v4790
      %v4792 = vpop.f32.mrb[0].mxu0
      %v4793 = vpop.f32.mrb[0].mxu0
      %v4794 = vadd.f32 %v4633, %v4793
      %v4795 = vpop.f32.mrb[0].mxu0
      %4796 = vmatprep.mubr.bf16.mxu0 %v3526
      %4797 = vmatmul.mubr.bf16.gmra.mrb[0].mxu0 %v3841
      %v4798 = vpop.f32.mrb[0].mxu0
      %v4799 = vadd.f32 %v4638, %v4798
      %v4800 = vpop.f32.mrb[0].mxu0
      %v4801 = vpop.f32.mrb[0].mxu0
      %v4802 = vadd.f32 %v4641, %v4801
      %v4803 = vpop.f32.mrb[0].mxu0
      %4804 = vmatprep.mubr.bf16.mxu0 %v3527
      %4805 = vmatmul.mubr.bf16.gmra.mrb[0].mxu0 %v3844
      %v4806 = vpop.f32.mrb[0].mxu0
      %v4807 = vadd.f32 %v4646, %v4806
      %v4808 = vpop.f32.mrb[0].mxu0
      %v4809 = vpop.f32.mrb[0].mxu0
      %v4810 = vadd.f32 %v4649, %v4809
      %v4811 = vpop.f32.mrb[0].mxu0
      %4812 = vmatprep.mubr.bf16.mxu0 %v3868
      %4813 = vmatmul.mubr.bf16.gmra.mrb[0].mxu0 %v3847
      %v4814 = vpop.f32.mrb[0].mxu0
      %v4815 = vadd.f32 %v4654, %v4814
      %v4816 = vpop.f32.mrb[0].mxu0
      %v4817 = vpop.f32.mrb[0].mxu0
      %v4818 = vadd.f32 %v4657, %v4817
      %v4819 = vpop.f32.mrb[0].mxu0
      %4820 = vdwg.mxu0
      %4821 = vmatprep.subr.bf16.mxu0 0
      %4822 = vmatpush1.bf16.msra.mxu0 %v4387
      %4823 = vmatprep.subr.bf16.mxu0 0
      %4824 = vmatpush1.bf16.msra.mxu0 %v4388
      %4825 = vmatprep.subr.bf16.mxu0 0
      %4826 = vmatpush1.bf16.msra.mxu0 %v4389
      %4827 = vmatprep.subr.bf16.mxu0 0
      %4828 = vmatpush1.bf16.msra.mxu0 %v4390
      %4829 = vmatprep.subr.bf16.mxu0 0
      %4830 = vmatpush1.bf16.msra.mxu0 %v4391
      %4831 = vmatprep.subr.bf16.mxu0 0
      %4832 = vmatpush1.bf16.msra.mxu0 %v4392
      %4833 = vmatprep.subr.bf16.mxu0 0
      %4834 = vmatpush1.bf16.msra.mxu0 %v4393
      %4835 = vmatprep.subr.bf16.mxu0 0
      %4836 = vmatpush1.bf16.msra.mxu0 %v4394
      %4837 = vmatprep.subr.bf16.mxu0 0
      %4838 = vmatpush1.bf16.msra.mxu0 %v4395
      %4839 = vmatprep.subr.bf16.mxu0 0
      %4840 = vmatpush1.bf16.msra.mxu0 %v4396
      %4841 = vmatprep.subr.bf16.mxu0 0
      %4842 = vmatpush1.bf16.msra.mxu0 %v4397
      %4843 = vmatprep.subr.bf16.mxu0 0
      %4844 = vmatpush1.bf16.msra.mxu0 %v4398
      %4845 = vmatprep.subr.bf16.mxu0 0
      %4846 = vmatpush1.bf16.msra.mxu0 %v4399
      %4847 = vmatprep.subr.bf16.mxu0 0
      %4848 = vmatpush1.bf16.msra.mxu0 %v4400
      %4849 = vmatprep.subr.bf16.mxu0 0
      %4850 = vmatpush1.bf16.msra.mxu0 %v4401
      %4851 = vmatprep.subr.bf16.mxu0 0
      %4852 = vmatpush1.bf16.msra.mxu0 %v4402
      %4853 = vmatprep.mubr.bf16.mxu0 %v3805
      %4854 = vmatmul.mubr.bf16.gmra.mrb[0].mxu0 %v3615
      %v4855 = vpop.f32.mrb[0].mxu0
      %v4856 = vadd.f32 %v4695, %v4855
      %v4857 = vpop.f32.mrb[0].mxu0
      %v4858 = vpop.f32.mrb[0].mxu0
      %v4859 = vadd.f32 %v4698, %v4858
      %v4860 = vpop.f32.mrb[0].mxu0
      %4861 = vmatprep.mubr.bf16.mxu0 %v3808
      %4862 = vmatmul.mubr.bf16.gmra.mrb[0].mxu0 %v3627
      %v4863 = vpop.f32.mrb[0].mxu0
      %v4864 = vadd.f32 %v4703, %v4863
      %v4865 = vpop.f32.mrb[0].mxu0
      %v4866 = vpop.f32.mrb[0].mxu0
      %v4867 = vadd.f32 %v4706, %v4866
      %v4868 = vpop.f32.mrb[0].mxu0
      %4869 = vmatprep.mubr.bf16.mxu0 %v3811
      %4870 = vmatmul.mubr.bf16.gmra.mrb[0].mxu0 %v3639
      %v4871 = vpop.f32.mrb[0].mxu0
      %v4872 = vadd.f32 %v4711, %v4871
      %v4873 = vpop.f32.mrb[0].mxu0
      %v4874 = vpop.f32.mrb[0].mxu0
      %v4875 = vadd.f32 %v4714, %v4874
      %v4876 = vpop.f32.mrb[0].mxu0
      %4877 = vmatprep.mubr.bf16.mxu0 %v3814
      %4878 = vmatmul.mubr.bf16.gmra.mrb[0].mxu0 %v3651
      %v4879 = vpop.f32.mrb[0].mxu0
      %v4880 = vadd.f32 %v4719, %v4879
      %v4881 = vpop.f32.mrb[0].mxu0
      %v4882 = vpop.f32.mrb[0].mxu0
      %v4883 = vadd.f32 %v4722, %v4882
      %v4884 = vpop.f32.mrb[0].mxu0
      %4885 = vmatprep.mubr.bf16.mxu0 %v3817
      %4886 = vmatmul.mubr.bf16.gmra.mrb[0].mxu0 %v3663
      %v4887 = vpop.f32.mrb[0].mxu0
      %v4888 = vadd.f32 %v4727, %v4887
      %v4889 = vpop.f32.mrb[0].mxu0
      %v4890 = vpop.f32.mrb[0].mxu0
      %v4891 = vadd.f32 %v4730, %v4890
      %v4892 = vpop.f32.mrb[0].mxu0
      %4893 = vmatprep.mubr.bf16.mxu0 %v3820
      %4894 = vmatmul.mubr.bf16.gmra.mrb[0].mxu0 %v3675
      %v4895 = vpop.f32.mrb[0].mxu0
      %v4896 = vadd.f32 %v4735, %v4895
      %v4897 = vpop.f32.mrb[0].mxu0
      %v4898 = vpop.f32.mrb[0].mxu0
      %v4899 = vadd.f32 %v4738, %v4898
      %v4900 = vpop.f32.mrb[0].mxu0
      %4901 = vmatprep.mubr.bf16.mxu0 %v3823
      %4902 = vmatmul.mubr.bf16.gmra.mrb[0].mxu0 %v3687
      %v4903 = vpop.f32.mrb[0].mxu0
      %v4904 = vadd.f32 %v4743, %v4903
      %v4905 = vpop.f32.mrb[0].mxu0
      %v4906 = vpop.f32.mrb[0].mxu0
      %v4907 = vadd.f32 %v4746, %v4906
      %v4908 = vpop.f32.mrb[0].mxu0
      %4909 = vmatprep.mubr.bf16.mxu0 %v3826
      %4910 = vmatmul.mubr.bf16.gmra.mrb[0].mxu0 %v3699
      %v4911 = vpop.f32.mrb[0].mxu0
      %v4912 = vadd.f32 %v4751, %v4911
      %v4913 = vpop.f32.mrb[0].mxu0
      %v4914 = vpop.f32.mrb[0].mxu0
      %v4915 = vadd.f32 %v4754, %v4914
      %v4916 = vpop.f32.mrb[0].mxu0
      %4917 = vmatprep.mubr.bf16.mxu0 %v3829
      %4918 = vmatmul.mubr.bf16.gmra.mrb[0].mxu0 %v3711
      %v4919 = vpop.f32.mrb[0].mxu0
      %v4920 = vadd.f32 %v4759, %v4919
      %v4921 = vpop.f32.mrb[0].mxu0
      %v4922 = vpop.f32.mrb[0].mxu0
      %v4923 = vadd.f32 %v4762, %v4922
      %v4924 = vpop.f32.mrb[0].mxu0
      %4925 = vmatprep.mubr.bf16.mxu0 %v3832
      %4926 = vmatmul.mubr.bf16.gmra.mrb[0].mxu0 %v3723
      %v4927 = vpop.f32.mrb[0].mxu0
      %v4928 = vadd.f32 %v4767, %v4927
      %v4929 = vpop.f32.mrb[0].mxu0
      %v4930 = vpop.f32.mrb[0].mxu0
      %v4931 = vadd.f32 %v4770, %v4930
      %v4932 = vpop.f32.mrb[0].mxu0
      %4933 = vmatprep.mubr.bf16.mxu0 %v3835
      %4934 = vmatmul.mubr.bf16.gmra.mrb[0].mxu0 %v3735
      %v4935 = vpop.f32.mrb[0].mxu0
      %v4936 = vadd.f32 %v4775, %v4935
      %v4937 = vpop.f32.mrb[0].mxu0
      %v4938 = vpop.f32.mrb[0].mxu0
      %v4939 = vadd.f32 %v4778, %v4938
      %v4940 = vpop.f32.mrb[0].mxu0
      %4941 = vmatprep.mubr.bf16.mxu0 %v3838
      %4942 = vmatmul.mubr.bf16.gmra.mrb[0].mxu0 %v3747
      %v4943 = vpop.f32.mrb[0].mxu0
      %v4944 = vadd.f32 %v4783, %v4943
      %v4945 = vpop.f32.mrb[0].mxu0
      %v4946 = vpop.f32.mrb[0].mxu0
      %v4947 = vadd.f32 %v4786, %v4946
      %v4948 = vpop.f32.mrb[0].mxu0
      %4949 = vmatprep.mubr.bf16.mxu0 %v3841
      %4950 = vmatmul.mubr.bf16.gmra.mrb[0].mxu0 %v3759
      %v4951 = vpop.f32.mrb[0].mxu0
      %v4952 = vadd.f32 %v4791, %v4951
      %v4953 = vpop.f32.mrb[0].mxu0
      %v4954 = vpop.f32.mrb[0].mxu0
      %v4955 = vadd.f32 %v4794, %v4954
      %v4956 = vpop.f32.mrb[0].mxu0
      %4957 = vmatprep.mubr.bf16.mxu0 %v3844
      %4958 = vmatmul.mubr.bf16.gmra.mrb[0].mxu0 %v3771
      %v4959 = vpop.f32.mrb[0].mxu0
      %v4960 = vadd.f32 %v4799, %v4959
      %v4961 = vpop.f32.mrb[0].mxu0
      %v4962 = vpop.f32.mrb[0].mxu0
      %v4963 = vadd.f32 %v4802, %v4962
      %v4964 = vpop.f32.mrb[0].mxu0
      %4965 = vmatprep.mubr.bf16.mxu0 %v3847
      %4966 = vmatmul.mubr.bf16.gmra.mrb[0].mxu0 %v3783
      %v4967 = vpop.f32.mrb[0].mxu0
      %v4968 = vadd.f32 %v4807, %v4967
      %v4969 = vpop.f32.mrb[0].mxu0
      %v4970 = vpop.f32.mrb[0].mxu0
      %v4971 = vadd.f32 %v4810, %v4970
      %v4972 = vpop.f32.mrb[0].mxu0
      %4973 = vmatprep.mubr.bf16.mxu0 %v3888
      %4974 = vmatmul.mubr.bf16.gmra.mrb[0].mxu0 %v3884
      %v4975 = vpop.f32.mrb[0].mxu0
      %v4976 = vadd.f32 %v4815, %v4975
      %v4977 = vpop.f32.mrb[0].mxu0
      %v4978 = vpop.f32.mrb[0].mxu0
      %v4979 = vadd.f32 %v4818, %v4978
      %v4980 = vpop.f32.mrb[0].mxu0
      %4981 = vdwg.mxu0
      %4982 = vmatprep.subr.bf16.mxu0 0
      %4983 = vmatpush1.bf16.msra.mxu0 %v4403
      %4984 = vmatprep.subr.bf16.mxu0 0
      %4985 = vmatpush1.bf16.msra.mxu0 %v4404
      %4986 = vmatprep.subr.bf16.mxu0 0
      %4987 = vmatpush1.bf16.msra.mxu0 %v4405
      %4988 = vmatprep.subr.bf16.mxu0 0
      %4989 = vmatpush1.bf16.msra.mxu0 %v4406
      %4990 = vmatprep.subr.bf16.mxu0 0
      %4991 = vmatpush1.bf16.msra.mxu0 %v4407
      %4992 = vmatprep.subr.bf16.mxu0 0
      %4993 = vmatpush1.bf16.msra.mxu0 %v4408
      %4994 = vmatprep.subr.bf16.mxu0 0
      %4995 = vmatpush1.bf16.msra.mxu0 %v4409
      %4996 = vmatprep.subr.bf16.mxu0 0
      %4997 = vmatpush1.bf16.msra.mxu0 %v4410
      %4998 = vmatprep.subr.bf16.mxu0 0
      %4999 = vmatpush1.bf16.msra.mxu0 %v4411
      %5000 = vmatprep.subr.bf16.mxu0 0
      %5001 = vmatpush1.bf16.msra.mxu0 %v4412
      %5002 = vmatprep.subr.bf16.mxu0 0
      %5003 = vmatpush1.bf16.msra.mxu0 %v4413
      %5004 = vmatprep.subr.bf16.mxu0 0
      %5005 = vmatpush1.bf16.msra.mxu0 %v4414
      %5006 = vmatprep.subr.bf16.mxu0 0
      %5007 = vmatpush1.bf16.msra.mxu0 %v4415
      %5008 = vmatprep.subr.bf16.mxu0 0
      %5009 = vmatpush1.bf16.msra.mxu0 %v4416
      %5010 = vmatprep.subr.bf16.mxu0 0
      %5011 = vmatpush1.bf16.msra.mxu0 %v4417
      %5012 = vmatprep.subr.bf16.mxu0 0
      %5013 = vmatpush1.bf16.msra.mxu0 %v4418
      %5014 = vmatprep.mubr.bf16.mxu0 %v3627
      %5015 = vmatmul.mubr.bf16.gmra.mrb[0].mxu0 %v3514
      %v5016 = vpop.f32.mrb[0].mxu0
      %v5017 = vadd.f32 %v4856, %v5016
      %v5018 = vpop.f32.mrb[0].mxu0
      %v5019 = vpop.f32.mrb[0].mxu0
      %v5020 = vadd.f32 %v4859, %v5019
      %v5021 = vpop.f32.mrb[0].mxu0
      %5022 = vmatprep.mubr.bf16.mxu0 %v3639
      %5023 = vmatmul.mubr.bf16.gmra.mrb[0].mxu0 %v3515
      %v5024 = vpop.f32.mrb[0].mxu0
      %v5025 = vadd.f32 %v4864, %v5024
      %v5026 = vpop.f32.mrb[0].mxu0
      %v5027 = vpop.f32.mrb[0].mxu0
      %v5028 = vadd.f32 %v4867, %v5027
      %v5029 = vpop.f32.mrb[0].mxu0
      %5030 = vmatprep.mubr.bf16.mxu0 %v3651
      %5031 = vmatmul.mubr.bf16.gmra.mrb[0].mxu0 %v3516
      %v5032 = vpop.f32.mrb[0].mxu0
      %v5033 = vadd.f32 %v4872, %v5032
      %v5034 = vpop.f32.mrb[0].mxu0
      %v5035 = vpop.f32.mrb[0].mxu0
      %v5036 = vadd.f32 %v4875, %v5035
      %v5037 = vpop.f32.mrb[0].mxu0
      %5038 = vmatprep.mubr.bf16.mxu0 %v3663
      %5039 = vmatmul.mubr.bf16.gmra.mrb[0].mxu0 %v3517
      %v5040 = vpop.f32.mrb[0].mxu0
      %v5041 = vadd.f32 %v4880, %v5040
      %v5042 = vpop.f32.mrb[0].mxu0
      %v5043 = vpop.f32.mrb[0].mxu0
      %v5044 = vadd.f32 %v4883, %v5043
      %v5045 = vpop.f32.mrb[0].mxu0
      %5046 = vmatprep.mubr.bf16.mxu0 %v3675
      %5047 = vmatmul.mubr.bf16.gmra.mrb[0].mxu0 %v3518
      %v5048 = vpop.f32.mrb[0].mxu0
      %v5049 = vadd.f32 %v4888, %v5048
      %v5050 = vpop.f32.mrb[0].mxu0
      %v5051 = vpop.f32.mrb[0].mxu0
      %v5052 = vadd.f32 %v4891, %v5051
      %v5053 = vpop.f32.mrb[0].mxu0
      %5054 = vmatprep.mubr.bf16.mxu0 %v3687
      %5055 = vmatmul.mubr.bf16.gmra.mrb[0].mxu0 %v3519
      %v5056 = vpop.f32.mrb[0].mxu0
      %v5057 = vadd.f32 %v4896, %v5056
      %v5058 = vpop.f32.mrb[0].mxu0
      %v5059 = vpop.f32.mrb[0].mxu0
      %v5060 = vadd.f32 %v4899, %v5059
      %v5061 = vpop.f32.mrb[0].mxu0
      %5062 = vmatprep.mubr.bf16.mxu0 %v3699
      %5063 = vmatmul.mubr.bf16.gmra.mrb[0].mxu0 %v3520
      %v5064 = vpop.f32.mrb[0].mxu0
      %v5065 = vadd.f32 %v4904, %v5064
      %v5066 = vpop.f32.mrb[0].mxu0
      %v5067 = vpop.f32.mrb[0].mxu0
      %v5068 = vadd.f32 %v4907, %v5067
      %v5069 = vpop.f32.mrb[0].mxu0
      %5070 = vmatprep.mubr.bf16.mxu0 %v3711
      %5071 = vmatmul.mubr.bf16.gmra.mrb[0].mxu0 %v3521
      %v5072 = vpop.f32.mrb[0].mxu0
      %v5073 = vadd.f32 %v4912, %v5072
      %v5074 = vpop.f32.mrb[0].mxu0
      %v5075 = vpop.f32.mrb[0].mxu0
      %v5076 = vadd.f32 %v4915, %v5075
      %v5077 = vpop.f32.mrb[0].mxu0
      %5078 = vmatprep.mubr.bf16.mxu0 %v3723
      %5079 = vmatmul.mubr.bf16.gmra.mrb[0].mxu0 %v3522
      %v5080 = vpop.f32.mrb[0].mxu0
      %v5081 = vadd.f32 %v4920, %v5080
      %v5082 = vpop.f32.mrb[0].mxu0
      %v5083 = vpop.f32.mrb[0].mxu0
      %v5084 = vadd.f32 %v4923, %v5083
      %v5085 = vpop.f32.mrb[0].mxu0
      %5086 = vmatprep.mubr.bf16.mxu0 %v3735
      %5087 = vmatmul.mubr.bf16.gmra.mrb[0].mxu0 %v3523
      %v5088 = vpop.f32.mrb[0].mxu0
      %v5089 = vadd.f32 %v4928, %v5088
      %v5090 = vpop.f32.mrb[0].mxu0
      %v5091 = vpop.f32.mrb[0].mxu0
      %v5092 = vadd.f32 %v4931, %v5091
      %v5093 = vpop.f32.mrb[0].mxu0
      %5094 = vmatprep.mubr.bf16.mxu0 %v3747
      %5095 = vmatmul.mubr.bf16.gmra.mrb[0].mxu0 %v3524
      %v5096 = vpop.f32.mrb[0].mxu0
      %v5097 = vadd.f32 %v4936, %v5096
      %v5098 = vpop.f32.mrb[0].mxu0
      %v5099 = vpop.f32.mrb[0].mxu0
      %v5100 = vadd.f32 %v4939, %v5099
      %v5101 = vpop.f32.mrb[0].mxu0
      %5102 = vmatprep.mubr.bf16.mxu0 %v3759
      %5103 = vmatmul.mubr.bf16.gmra.mrb[0].mxu0 %v3525
      %v5104 = vpop.f32.mrb[0].mxu0
      %v5105 = vadd.f32 %v4944, %v5104
      %v5106 = vpop.f32.mrb[0].mxu0
      %v5107 = vpop.f32.mrb[0].mxu0
      %v5108 = vadd.f32 %v4947, %v5107
      %v5109 = vpop.f32.mrb[0].mxu0
      %5110 = vmatprep.mubr.bf16.mxu0 %v3771
      %5111 = vmatmul.mubr.bf16.gmra.mrb[0].mxu0 %v3526
      %v5112 = vpop.f32.mrb[0].mxu0
      %v5113 = vadd.f32 %v4952, %v5112
      %v5114 = vpop.f32.mrb[0].mxu0
      %v5115 = vpop.f32.mrb[0].mxu0
      %v5116 = vadd.f32 %v4955, %v5115
      %v5117 = vpop.f32.mrb[0].mxu0
      %5118 = vmatprep.mubr.bf16.mxu0 %v3783
      %5119 = vmatmul.mubr.bf16.gmra.mrb[0].mxu0 %v3527
      %v5120 = vpop.f32.mrb[0].mxu0
      %v5121 = vadd.f32 %v4960, %v5120
      %v5122 = vpop.f32.mrb[0].mxu0
      %v5123 = vpop.f32.mrb[0].mxu0
      %v5124 = vadd.f32 %v4963, %v5123
      %v5125 = vpop.f32.mrb[0].mxu0
      %5126 = vmatprep.mubr.bf16.mxu0 %v3884
      %5127 = vmatmul.mubr.bf16.gmra.mrb[0].mxu0 %v3868
      %v5128 = vpop.f32.mrb[0].mxu0
      %v5129 = vadd.f32 %v4968, %v5128
      %v5130 = vpop.f32.mrb[0].mxu0
      %v5131 = vpop.f32.mrb[0].mxu0
      %v5132 = vadd.f32 %v4971, %v5131
      %v5133 = vpop.f32.mrb[0].mxu0
      %5134 = vmatprep.mubr.bf16.mxu0 %v3910
      %5135 = vmatmul.mubr.bf16.gmra.mrb[0].mxu0 %v3894
      %v5136 = vpop.f32.mrb[0].mxu0
      %v5137 = vadd.f32 %v4976, %v5136
      %v5138 = vpop.f32.mrb[0].mxu0
      %v5139 = vpop.f32.mrb[0].mxu0
      %v5140 = vadd.f32 %v4979, %v5139
      %v5141 = vpop.f32.mrb[0].mxu0
      %5142 = vdwg.mxu0
      %5143 = vmatprep.subr.bf16.mxu0 0
      %5144 = vmatpush1.bf16.msra.mxu0 %v4419
      %5145 = vmatprep.subr.bf16.mxu0 0
      %5146 = vmatpush1.bf16.msra.mxu0 %v4420
      %5147 = vmatprep.subr.bf16.mxu0 0
      %5148 = vmatpush1.bf16.msra.mxu0 %v4421
      %5149 = vmatprep.subr.bf16.mxu0 0
      %5150 = vmatpush1.bf16.msra.mxu0 %v4422
      %5151 = vmatprep.subr.bf16.mxu0 0
      %5152 = vmatpush1.bf16.msra.mxu0 %v4423
      %5153 = vmatprep.subr.bf16.mxu0 0
      %5154 = vmatpush1.bf16.msra.mxu0 %v4424
      %5155 = vmatprep.subr.bf16.mxu0 0
      %5156 = vmatpush1.bf16.msra.mxu0 %v4425
      %5157 = vmatprep.subr.bf16.mxu0 0
      %5158 = vmatpush1.bf16.msra.mxu0 %v4426
      %5159 = vmatprep.subr.bf16.mxu0 0
      %5160 = vmatpush1.bf16.msra.mxu0 0
      %5161 = vmatprep.subr.bf16.mxu0 0
      %5162 = vmatpush1.bf16.msra.mxu0 0
      %5163 = vmatprep.subr.bf16.mxu0 0
      %5164 = vmatpush1.bf16.msra.mxu0 0
      %5165 = vmatprep.subr.bf16.mxu0 0
      %5166 = vmatpush1.bf16.msra.mxu0 0
      %5167 = vmatprep.subr.bf16.mxu0 0
      %5168 = vmatpush1.bf16.msra.mxu0 0
      %5169 = vmatprep.subr.bf16.mxu0 0
      %5170 = vmatpush1.bf16.msra.mxu0 0
      %5171 = vmatprep.subr.bf16.mxu0 0
      %5172 = vmatpush1.bf16.msra.mxu0 0
      %5173 = vmatprep.subr.bf16.mxu0 0
      %5174 = vmatpush1.bf16.msra.mxu0 0
      %5175 = vmatprep.mubr.bf16.mxu0 0
      %5176 = vmatmul.mubr.bf16.gmra.mrb[0].mxu0 %v3808
      %v5177 = vpop.f32.mrb[0].mxu0
      %v5178 = vadd.f32 %v5017, %v5177
      %v5179 = vpop.f32.mrb[0].mxu0
      %v5180 = vpop.f32.mrb[0].mxu0
      %v5181 = vadd.f32 %v5020, %v5180
      %v5182 = vpop.f32.mrb[0].mxu0
      %5183 = vmatprep.mubr.bf16.mxu0 0
      %5184 = vmatmul.mubr.bf16.gmra.mrb[0].mxu0 %v3811
      %v5185 = vpop.f32.mrb[0].mxu0
      %v5186 = vadd.f32 %v5025, %v5185
      %v5187 = vpop.f32.mrb[0].mxu0
      %v5188 = vpop.f32.mrb[0].mxu0
      %v5189 = vadd.f32 %v5028, %v5188
      %v5190 = vpop.f32.mrb[0].mxu0
      %5191 = vmatprep.mubr.bf16.mxu0 0
      %5192 = vmatmul.mubr.bf16.gmra.mrb[0].mxu0 %v3814
      %v5193 = vpop.f32.mrb[0].mxu0
      %v5194 = vadd.f32 %v5033, %v5193
      %v5195 = vpop.f32.mrb[0].mxu0
      %v5196 = vpop.f32.mrb[0].mxu0
      %v5197 = vadd.f32 %v5036, %v5196
      %v5198 = vpop.f32.mrb[0].mxu0
      %5199 = vmatprep.mubr.bf16.mxu0 0
      %5200 = vmatmul.mubr.bf16.gmra.mrb[0].mxu0 %v3817
      %v5201 = vpop.f32.mrb[0].mxu0
      %v5202 = vadd.f32 %v5041, %v5201
      %v5203 = vpop.f32.mrb[0].mxu0
      %v5204 = vpop.f32.mrb[0].mxu0
      %v5205 = vadd.f32 %v5044, %v5204
      %v5206 = vpop.f32.mrb[0].mxu0
      %5207 = vmatprep.mubr.bf16.mxu0 0
      %5208 = vmatmul.mubr.bf16.gmra.mrb[0].mxu0 %v3820
      %v5209 = vpop.f32.mrb[0].mxu0
      %v5210 = vadd.f32 %v5049, %v5209
      %v5211 = vpop.f32.mrb[0].mxu0
      %v5212 = vpop.f32.mrb[0].mxu0
      %v5213 = vadd.f32 %v5052, %v5212
      %v5214 = vpop.f32.mrb[0].mxu0
      %5215 = vmatprep.mubr.bf16.mxu0 0
      %5216 = vmatmul.mubr.bf16.gmra.mrb[0].mxu0 %v3823
      %v5217 = vpop.f32.mrb[0].mxu0
      %v5218 = vadd.f32 %v5057, %v5217
      %v5219 = vpop.f32.mrb[0].mxu0
      %v5220 = vpop.f32.mrb[0].mxu0
      %v5221 = vadd.f32 %v5060, %v5220
      %v5222 = vpop.f32.mrb[0].mxu0
      %5223 = vmatprep.mubr.bf16.mxu0 0
      %5224 = vmatmul.mubr.bf16.gmra.mrb[0].mxu0 %v3826
      %v5225 = vpop.f32.mrb[0].mxu0
      %v5226 = vadd.f32 %v5065, %v5225
      %v5227 = vpop.f32.mrb[0].mxu0
      %v5228 = vpop.f32.mrb[0].mxu0
      %v5229 = vadd.f32 %v5068, %v5228
      %v5230 = vpop.f32.mrb[0].mxu0
      %5231 = vmatprep.mubr.bf16.mxu0 0
      %5232 = vmatmul.mubr.bf16.gmra.mrb[0].mxu0 %v3829
      %v5233 = vpop.f32.mrb[0].mxu0
      %v5234 = vadd.f32 %v5073, %v5233
      %v5235 = vpop.f32.mrb[0].mxu0
      %v5236 = vpop.f32.mrb[0].mxu0
      %v5237 = vadd.f32 %v5076, %v5236
      %v5238 = vpop.f32.mrb[0].mxu0
      %5239 = vmatprep.mubr.bf16.mxu0 0
      %5240 = vmatmul.mubr.bf16.gmra.mrb[0].mxu0 %v3832
      %v5241 = vpop.f32.mrb[0].mxu0
      %v5242 = vadd.f32 %v5081, %v5241
      %v5243 = vpop.f32.mrb[0].mxu0
      %v5244 = vpop.f32.mrb[0].mxu0
      %v5245 = vadd.f32 %v5084, %v5244
      %v5246 = vpop.f32.mrb[0].mxu0
      %5247 = vmatprep.mubr.bf16.mxu0 0
      %5248 = vmatmul.mubr.bf16.gmra.mrb[0].mxu0 %v3835
      %v5249 = vpop.f32.mrb[0].mxu0
      %v5250 = vadd.f32 %v5089, %v5249
      %v5251 = vpop.f32.mrb[0].mxu0
      %v5252 = vpop.f32.mrb[0].mxu0
      %v5253 = vadd.f32 %v5092, %v5252
      %v5254 = vpop.f32.mrb[0].mxu0
      %5255 = vmatprep.mubr.bf16.mxu0 0
      %5256 = vmatmul.mubr.bf16.gmra.mrb[0].mxu0 %v3838
      %v5257 = vpop.f32.mrb[0].mxu0
      %v5258 = vadd.f32 %v5097, %v5257
      %v5259 = vpop.f32.mrb[0].mxu0
      %v5260 = vpop.f32.mrb[0].mxu0
      %v5261 = vadd.f32 %v5100, %v5260
      %v5262 = vpop.f32.mrb[0].mxu0
      %5263 = vmatprep.mubr.bf16.mxu0 0
      %5264 = vmatmul.mubr.bf16.gmra.mrb[0].mxu0 %v3841
      %v5265 = vpop.f32.mrb[0].mxu0
      %v5266 = vadd.f32 %v5105, %v5265
      %v5267 = vpop.f32.mrb[0].mxu0
      %v5268 = vpop.f32.mrb[0].mxu0
      %v5269 = vadd.f32 %v5108, %v5268
      %v5270 = vpop.f32.mrb[0].mxu0
      %5271 = vmatprep.mubr.bf16.mxu0 0
      %5272 = vmatmul.mubr.bf16.gmra.mrb[0].mxu0 %v3844
      %v5273 = vpop.f32.mrb[0].mxu0
      %v5274 = vadd.f32 %v5113, %v5273
      %v5275 = vpop.f32.mrb[0].mxu0
      %v5276 = vpop.f32.mrb[0].mxu0
      %v5277 = vadd.f32 %v5116, %v5276
      %v5278 = vpop.f32.mrb[0].mxu0
      %5279 = vmatprep.mubr.bf16.mxu0 0
      %5280 = vmatmul.mubr.bf16.gmra.mrb[0].mxu0 %v3847
      %v5281 = vpop.f32.mrb[0].mxu0
      %v5282 = vadd.f32 %v5121, %v5281
      %v5283 = vpop.f32.mrb[0].mxu0
      %v5284 = vpop.f32.mrb[0].mxu0
      %v5285 = vadd.f32 %v5124, %v5284
      %v5286 = vpop.f32.mrb[0].mxu0
      %5287 = vmatprep.mubr.bf16.mxu0 0
      %5288 = vmatmul.mubr.bf16.gmra.mrb[0].mxu0 %v3888
      %v5289 = vpop.f32.mrb[0].mxu0
      %v5290 = vadd.f32 %v5129, %v5289
      %v5291 = vpop.f32.mrb[0].mxu0
      %v5292 = vpop.f32.mrb[0].mxu0
      %v5293 = vadd.f32 %v5132, %v5292
      %v5294 = vpop.f32.mrb[0].mxu0
      %5295 = vmatprep.mubr.bf16.mxu0 0
      %5296 = vmatmul.mubr.bf16.gmra.mrb[0].mxu0 %v3914
      %v5297 = vpop.f32.mrb[0].mxu0
      %v5298 = vadd.f32 %v5137, %v5297
      %v5299 = vpop.f32.mrb[0].mxu0
      %v5300 = vpop.f32.mrb[0].mxu0
      %v5301 = vadd.f32 %v5140, %v5300
      %v5302 = vpop.f32.mrb[0].mxu0
      %5303 = vdwg.mxu0
      %5304 = vst [vmem:[%s271] sm:$0xff] %v5178
      %5305 = vst [vmem:[%s271 + $0x8] sm:$0xff] %v5181
      %5306 = vst [vmem:[%s271 + $0x10] sm:$0xff] %v5186
      %5307 = vst [vmem:[%s271 + $0x18] sm:$0xff] %v5189
      %5308 = vst [vmem:[%s271 + $0x20] sm:$0xff] %v5194
      %5309 = vst [vmem:[%s271 + $0x28] sm:$0xff] %v5197
      %5310 = vst [vmem:[%s271 + $0x30] sm:$0xff] %v5202
      %5311 = vst [vmem:[%s271 + $0x38] sm:$0xff] %v5205
      %5312 = vst [vmem:[%s271 + $0x40] sm:$0xff] %v5210
      %5313 = vst [vmem:[%s271 + $0x48] sm:$0xff] %v5213
      %5314 = vst [vmem:[%s271 + $0x50] sm:$0xff] %v5218
      %5315 = vst [vmem:[%s271 + $0x58] sm:$0xff] %v5221
      %5316 = vst [vmem:[%s271 + $0x60] sm:$0xff] %v5226
      %5317 = vst [vmem:[%s271 + $0x68] sm:$0xff] %v5229
      %5318 = vst [vmem:[%s271 + $0x70] sm:$0xff] %v5234
      %5319 = vst [vmem:[%s271 + $0x78] sm:$0xff] %v5237
      %5320 = vst [vmem:[%s271 + $0x80] sm:$0xff] %v5242
      %5321 = vst [vmem:[%s271 + $0x88] sm:$0xff] %v5245
      %5322 = vst [vmem:[%s271 + $0x90] sm:$0xff] %v5250
      %5323 = vst [vmem:[%s271 + $0x98] sm:$0xff] %v5253
      %5324 = vst [vmem:[%s271 + $0xa0] sm:$0xff] %v5258
      %5325 = vst [vmem:[%s271 + $0xa8] sm:$0xff] %v5261
      %5326 = vst [vmem:[%s271 + $0xb0] sm:$0xff] %v5266
      %5327 = vst [vmem:[%s271 + $0xb8] sm:$0xff] %v5269
      %5328 = vst [vmem:[%s271 + $0xc0] sm:$0xff] %v5274
      %5329 = vst [vmem:[%s271 + $0xc8] sm:$0xff] %v5277
      %5330 = vst [vmem:[%s271 + $0xd0] sm:$0xff] %v5282
      %5331 = vst [vmem:[%s271 + $0xd8] sm:$0xff] %v5285
      %5332 = vst [vmem:[%s271 + $0xe0] sm:$0xff] %v5290
      %5333 = vst [vmem:[%s271 + $0xe8] sm:$0xff] %v5293
      %5334 = vst [vmem:[%s271 + $0xf0] sm:$0xff] %v5298
      %5335 = vst [vmem:[%s271 + $0xf8] sm:$0xff] %v5301
      %p5336 = scmp.lt.s32.totalorder %s17, 1
      %s5337 = scalar_select %p5336, %s17, 1
      %s5338 = smul.addr %s5337, 32
      %s5339 = smul.addr %s5338, 8
      %s5340 = scalar_lea.vmem %s6, %s5339
      // Predicated region
      $region45: #{scconv_forward.3} parent=43 // pred_check
        %p5341 = pneg %p171
      $region46: #{scconv_forward.3} parent=43 // pred_check_branch
        %5343 = sbr.rel (%p5341) target = $region48
      $region47: #{scconv_forward.3} parent=43 // pred_region
        _
      $region48: #{scconv_forward.3} parent=43 // pred_fallthru
        _
    $region44: #{scconv_forward.3} parent=5 // pred_fallthru
      _
    %p5344 = scmp.le.s32.totalorder 2, %s12
    // Predicated region
    $region49: #{scconv_forward.3} parent=5 // pred_check
      %p5345 = pneg %p5344
    $region50: #{scconv_forward.3} parent=5 // pred_check_branch
      %5347 = sbr.rel (%p5345) target = $region52
    $region51: #{scconv_forward.3} parent=5 // pred_region
      %s5348 = ssub.s32 %s12, 2
      // Predicated region
      $region53: #{scconv_forward.3} parent=51 // pred_check
        %p5349 = pneg %p177
      $region54: #{scconv_forward.3} parent=51 // pred_check_branch
        %5351 = sbr.rel (%p5349) target = $region56
      $region55: #{scconv_forward.3} parent=51 // pred_region
        %p5352 = scmp.lt.s32.totalorder %s18, 1
        %s5353 = scalar_select %p5352, %s18, 1
        %s5354 = smul.addr %s5353, 32
        %s5355 = smul.addr %s5354, 8
        %s5356 = scalar_lea.vmem %s6, %s5355
      $region56: #{scconv_forward.3} parent=51 // pred_fallthru
        _
    $region52: #{scconv_forward.3} parent=5 // pred_fallthru
      _
  $region6: #{scconv_forward.3} parent=0 // loop_footer
    %s16 = sadd.s32 1, %s12
  $region7: #{scconv_forward.3} parent=0 // loop_footer_branch
    %11 = sbr.rel target = $region3
  $region8: #{scconv_forward.3} parent=0 // loop_exit
    _

</llo_original>
